<compile_context>
chip_gen: v5e
topology: v5e:2x2
jax: 0.10.0
libtpu: 0.0.40
codegen_flags: <defaults>
</compile_context>

<pallas_src>
import functools

import jax
import jax.numpy as jnp
from jax.experimental import pallas as pl
from jax.experimental.pallas import tpu as pltpu

HIDDEN = 512


def _round_up(x, m):
    return ((x + m - 1) // m) * m


def _mlp_kernel(x_ref, w1_ref, b1_ref, w2_ref, b2_ref, w3_ref, b3_ref, o_ref):
    # Three bf16 MXU matmuls with f32 accumulation; bias-add + ReLU on the VPU
    # (done on the f32 accumulator, single bf16 cast afterwards).
    x = x_ref[...].astype(jnp.bfloat16)                                 # cast in-kernel, no wrapper pass

    h1 = jnp.dot(x, w1_ref[...], preferred_element_type=jnp.float32) + b1_ref[...]
    h1 = jnp.maximum(h1, 0.0).astype(jnp.bfloat16)                      # ReLU; Dropout = identity (eval)

    h2 = jnp.dot(h1, w2_ref[...], preferred_element_type=jnp.float32) + b2_ref[...]
    h2 = jnp.maximum(h2, 0.0).astype(jnp.bfloat16)                      # ReLU; Dropout = identity (eval)

    out = jnp.dot(h2, w3_ref[...], preferred_element_type=jnp.float32) + b3_ref[...]
    o_ref[...] = out.astype(o_ref.dtype)


def prepare_params(w1, b1, w2, b2, w3, b3):
    """One-time conversion: bf16 MXU weights (layout (in, out)), f32 (1, out) biases.

    Hoisted out of the per-call path so repeated inference calls don't re-read
    and re-write the weights in separate XLA ops.
    """
    to_w = lambda w: jnp.asarray(w, jnp.bfloat16)
    to_b = lambda b: jnp.asarray(b, jnp.float32).reshape(1, -1)
    return to_w(w1), to_b(b1), to_w(w2), to_b(b2), to_w(w3), to_b(b3)


@functools.partial(jax.jit, static_argnames=("block_b",))
def mlp_forward(x, w1, b1, w2, b2, w3, b3, *, block_b=1024):
    """x: (B, D_in) f32.  Params as produced by prepare_params()."""
    B, D_in = x.shape
    D_out = w3.shape[1]

    # Batch tile: as large as block_b, but keep >= 2 grid steps when B > 8 so
    # both TensorCores get work on v7x.
    bb = max(8, min(block_b, _round_up((B + 1) // 2, 8)))
    b_p = _round_up(B, bb)
    x_in = x if b_p == B else jnp.pad(x, ((0, b_p - B), (0, 0)))

    grid = (b_p // bb,)

    out = pl.pallas_call(
        _mlp_kernel,
        out_shape=jax.ShapeDtypeStruct((b_p, D_out), jnp.float32),
        grid_spec=pltpu.PrefetchScalarGridSpec(
            num_scalar_prefetch=0,
            grid=grid,
            in_specs=[
                pl.BlockSpec((bb, D_in), lambda i: (i, 0)),        # x tile (f32, true width, pipelined)
                pl.BlockSpec((D_in, HIDDEN), lambda i: (0, 0)),    # W1 (constant block -> VMEM resident)
                pl.BlockSpec((1, HIDDEN), lambda i: (0, 0)),       # b1
                pl.BlockSpec((HIDDEN, HIDDEN), lambda i: (0, 0)),  # W2
                pl.BlockSpec((1, HIDDEN), lambda i: (0, 0)),       # b2
                pl.BlockSpec((HIDDEN, D_out), lambda i: (0, 0)),   # W3 (true N=D_out)
                pl.BlockSpec((1, D_out), lambda i: (0, 0)),        # b3
            ],
            out_specs=pl.BlockSpec((bb, D_out), lambda i: (i, 0)),  # unpadded f32 output (8x less HBM)
        ),
        compiler_params=pltpu.CompilerParams(
            dimension_semantics=("parallel",),          # batch axis; shardable across TCs on v7x
            vmem_limit_bytes=32 * 1024 * 1024,          # ~10 MiB used at bb=1024
        ),
    )(x_in, w1, b1, w2, b2, w3, b3)

    return out[:B].astype(x.dtype)


def init_params(key, input_dim, output_dim):
    """Deterministic PyTorch-style (Kaiming-uniform-ish) init, stored as (in, out)."""
    ks = jax.random.split(key, 6)

    def linear(kw, kb, fan_in, fan_out):
        bound = 1.0 / jnp.sqrt(fan_in)
        w = jax.random.uniform(kw, (fan_in, fan_out), jnp.float32, -bound, bound)
        b = jax.random.uniform(kb, (1, fan_out), jnp.float32, -bound, bound)
        return w, b

    w1, b1 = linear(ks[0], ks[1], input_dim, HIDDEN)
    w2, b2 = linear(ks[2], ks[3], HIDDEN, HIDDEN)
    w3, b3 = linear(ks[4], ks[5], HIDDEN, output_dim)
    return w1, b1, w2, b2, w3, b3


def reference_forward(x, w1, b1, w2, b2, w3, b3):
    """Pure-JAX reference mirroring the kernel's bf16-operand / f32-accumulate math."""
    xb = x.astype(jnp.bfloat16)
    w1b, w2b, w3b = (w.astype(jnp.bfloat16) for w in (w1, w2, w3))
    h1 = jnp.maximum(jnp.dot(xb, w1b, preferred_element_type=jnp.float32) + b1, 0.0)
    h1 = h1.astype(jnp.bfloat16)
    h2 = jnp.maximum(jnp.dot(h1, w2b, preferred_element_type=jnp.float32) + b2, 0.0)
    h2 = h2.astype(jnp.bfloat16)
    return jnp.dot(h2, w3b, preferred_element_type=jnp.float32) + b3


if __name__ == "__main__":
    key = jax.random.PRNGKey(0)
    k_x, k_p = jax.random.split(key)

    # Small model; B=512 gives a 2-step grid (bb=256) so both v7x cores get work.
    B, INPUT_DIM, OUTPUT_DIM = 512, 32, 16
    x = jax.random.normal(k_x, (B, INPUT_DIM), jnp.float32)
    params = init_params(k_p, INPUT_DIM, OUTPUT_DIM)

    prepared = prepare_params(*params)          # one-time weight/bias prep (hoisted out of the call)
    out = mlp_forward(x, *prepared)
    out = jax.block_until_ready(out)

    ref = reference_forward(x, *params)
    assert out.shape == (B, OUTPUT_DIM), out.shape
    assert jnp.allclose(out, ref, atol=2e-2, rtol=2e-2), "mismatch vs reference"

    print("KERNEL_OK")
</pallas_src>

<mosaic_0001>
module attributes {stable_mosaic.version = 11 : i64} {
  func.func @_mlp_kernel(%arg0: i32, %arg1: memref<256x32xf32, #tpu.memory_space<vmem>>, %arg2: memref<32x512xbf16, #tpu.memory_space<vmem>>, %arg3: memref<1x512xf32, #tpu.memory_space<vmem>>, %arg4: memref<512x512xbf16, #tpu.memory_space<vmem>>, %arg5: memref<1x512xf32, #tpu.memory_space<vmem>>, %arg6: memref<512x16xbf16, #tpu.memory_space<vmem>>, %arg7: memref<1x16xf32, #tpu.memory_space<vmem>>, %arg8: memref<256x16xf32, #tpu.memory_space<vmem>>) attributes {dimension_semantics = [#tpu.dimension_semantics<parallel>], iteration_bounds = array<i64: 2>, scalar_prefetch = 0 : i64, scratch_operands = 0 : i64, tpu.core_type = #tpu.core_type<tc>, window_params = [{transform_indices = @transform_0, window_bounds = array<i64: 256, 32>}, {pipeline_mode = #tpu.pipeline_mode<synchronous>, transform_indices = @transform_1, window_bounds = array<i64: 32, 512>}, {pipeline_mode = #tpu.pipeline_mode<synchronous>, transform_indices = @transform_2, window_bounds = array<i64: 1, 512>}, {pipeline_mode = #tpu.pipeline_mode<synchronous>, transform_indices = @transform_3, window_bounds = array<i64: 512, 512>}, {pipeline_mode = #tpu.pipeline_mode<synchronous>, transform_indices = @transform_4, window_bounds = array<i64: 1, 512>}, {pipeline_mode = #tpu.pipeline_mode<synchronous>, transform_indices = @transform_5, window_bounds = array<i64: 512, 16>}, {pipeline_mode = #tpu.pipeline_mode<synchronous>, transform_indices = @transform_6, window_bounds = array<i64: 1, 16>}, {transform_indices = @transform_7, window_bounds = array<i64: 256, 16>}]} {
    %c0 = arith.constant 0 : index
    %c0_0 = arith.constant 0 : index
    %0 = vector.load %arg1[%c0, %c0_0] : memref<256x32xf32, #tpu.memory_space<vmem>>, vector<256x32xf32>
    %1 = arith.truncf %0 : vector<256x32xf32> to vector<256x32xbf16>
    %c0_1 = arith.constant 0 : index
    %c0_2 = arith.constant 0 : index
    %2 = vector.load %arg2[%c0_1, %c0_2] : memref<32x512xbf16, #tpu.memory_space<vmem>>, vector<32x512xbf16>
    %cst = arith.constant dense<0.000000e+00> : vector<256x512xf32>
    %3 = tpu.matmul %1, %2, %cst {dimension_numbers = #tpu.dot_dimension_numbers<[1], [0], [0], [1], [0, 0, 1, 1], [], []>} : vector<256x32xbf16>, vector<32x512xbf16>, vector<256x512xf32> -> vector<256x512xf32>
    %c0_3 = arith.constant 0 : index
    %c0_4 = arith.constant 0 : index
    %4 = vector.load %arg3[%c0_3, %c0_4] : memref<1x512xf32, #tpu.memory_space<vmem>>, vector<1x512xf32>
    %5 = vector.broadcast %4 : vector<1x512xf32> to vector<256x512xf32>
    %6 = arith.addf %3, %5 : vector<256x512xf32>
    %cst_5 = arith.constant 0.000000e+00 : f32
    %7 = vector.broadcast %cst_5 : f32 to vector<256x512xf32>
    %8 = arith.maximumf %6, %7 : vector<256x512xf32>
    %9 = arith.truncf %8 : vector<256x512xf32> to vector<256x512xbf16>
    %c0_6 = arith.constant 0 : index
    %c0_7 = arith.constant 0 : index
    %10 = vector.load %arg4[%c0_6, %c0_7] : memref<512x512xbf16, #tpu.memory_space<vmem>>, vector<512x512xbf16>
    %cst_8 = arith.constant dense<0.000000e+00> : vector<256x512xf32>
    %11 = tpu.matmul %9, %10, %cst_8 {dimension_numbers = #tpu.dot_dimension_numbers<[1], [0], [0], [1], [0, 0, 1, 1], [], []>} : vector<256x512xbf16>, vector<512x512xbf16>, vector<256x512xf32> -> vector<256x512xf32>
    %c0_9 = arith.constant 0 : index
    %c0_10 = arith.constant 0 : index
    %12 = vector.load %arg5[%c0_9, %c0_10] : memref<1x512xf32, #tpu.memory_space<vmem>>, vector<1x512xf32>
    %13 = vector.broadcast %12 : vector<1x512xf32> to vector<256x512xf32>
    %14 = arith.addf %11, %13 : vector<256x512xf32>
    %cst_11 = arith.constant 0.000000e+00 : f32
    %15 = vector.broadcast %cst_11 : f32 to vector<256x512xf32>
    %16 = arith.maximumf %14, %15 : vector<256x512xf32>
    %17 = arith.truncf %16 : vector<256x512xf32> to vector<256x512xbf16>
    %c0_12 = arith.constant 0 : index
    %c0_13 = arith.constant 0 : index
    %18 = vector.load %arg6[%c0_12, %c0_13] : memref<512x16xbf16, #tpu.memory_space<vmem>>, vector<512x16xbf16>
    %cst_14 = arith.constant dense<0.000000e+00> : vector<256x16xf32>
    %19 = tpu.matmul %17, %18, %cst_14 {dimension_numbers = #tpu.dot_dimension_numbers<[1], [0], [0], [1], [0, 0, 1, 1], [], []>} : vector<256x512xbf16>, vector<512x16xbf16>, vector<256x16xf32> -> vector<256x16xf32>
    %c0_15 = arith.constant 0 : index
    %c0_16 = arith.constant 0 : index
    %20 = vector.load %arg7[%c0_15, %c0_16] : memref<1x16xf32, #tpu.memory_space<vmem>>, vector<1x16xf32>
    %21 = vector.broadcast %20 : vector<1x16xf32> to vector<256x16xf32>
    %22 = arith.addf %19, %21 : vector<256x16xf32>
    %c0_17 = arith.constant 0 : index
    %c0_18 = arith.constant 0 : index
    %23 = vector.load %arg8[%c0_17, %c0_18] : memref<256x16xf32, #tpu.memory_space<vmem>>, vector<256x16xf32>
    tpu.vector_store %arg8[%c0_17, %c0_18], %22 {strides = array<i32>} : memref<256x16xf32, #tpu.memory_space<vmem>>, vector<256x16xf32>,
    return
  }
  func.func @transform_0(%arg0: i32) -> (i32, i32) {
    %c0_i32 = arith.constant 0 : i32
    %c0_i32_0 = arith.constant 0 : i32
    return %arg0, %c0_i32 : i32, i32
  }
  func.func @transform_1(%arg0: i32) -> (i32, i32) {
    %c0_i32 = arith.constant 0 : i32
    %c0_i32_0 = arith.constant 0 : i32
    %c0_i32_1 = arith.constant 0 : i32
    return %c0_i32, %c0_i32_0 : i32, i32
  }
  func.func @transform_2(%arg0: i32) -> (i32, i32) {
    %c0_i32 = arith.constant 0 : i32
    %c0_i32_0 = arith.constant 0 : i32
    %c0_i32_1 = arith.constant 0 : i32
    return %c0_i32, %c0_i32_0 : i32, i32
  }
  func.func @transform_3(%arg0: i32) -> (i32, i32) {
    %c0_i32 = arith.constant 0 : i32
    %c0_i32_0 = arith.constant 0 : i32
    %c0_i32_1 = arith.constant 0 : i32
    return %c0_i32, %c0_i32_0 : i32, i32
  }
  func.func @transform_4(%arg0: i32) -> (i32, i32) {
    %c0_i32 = arith.constant 0 : i32
    %c0_i32_0 = arith.constant 0 : i32
    %c0_i32_1 = arith.constant 0 : i32
    return %c0_i32, %c0_i32_0 : i32, i32
  }
  func.func @transform_5(%arg0: i32) -> (i32, i32) {
    %c0_i32 = arith.constant 0 : i32
    %c0_i32_0 = arith.constant 0 : i32
    %c0_i32_1 = arith.constant 0 : i32
    return %c0_i32, %c0_i32_0 : i32, i32
  }
  func.func @transform_6(%arg0: i32) -> (i32, i32) {
    %c0_i32 = arith.constant 0 : i32
    %c0_i32_0 = arith.constant 0 : i32
    %c0_i32_1 = arith.constant 0 : i32
    return %c0_i32, %c0_i32_0 : i32, i32
  }
  func.func @transform_7(%arg0: i32) -> (i32, i32) {
    %c0_i32 = arith.constant 0 : i32
    %c0_i32_0 = arith.constant 0 : i32
    return %arg0, %c0_i32 : i32, i32
  }
}

</mosaic_0001>

<llo_original>
// kernel: mlp_forward.1
$region0: #{mlp_forward.1}
  #allocation0 [shape = 'u32[]', space=smem, size = 0x4, offset = 0x4, fixed_abs, tag = 'smem constant byte address 0x4 - core index']
  #allocation1 [shape = 'u32[72,128]{1,0:T(1,128)}', space=vmem, size = 0x9000, scoped, tag = 'internal scratch']
  %s0 = inlined_call_operand.vmem [shape: f32[512,32], index: 0, kind: input, shape index: {}]
  %s1 = inlined_call_operand.vmem [shape: bf16[32,512], index: 1, kind: input, shape index: {}]
  %s2 = inlined_call_operand.vmem [shape: f32[1,512], index: 2, kind: input, shape index: {}]
  %s3 = inlined_call_operand.hbm [shape: bf16[512,512], index: 3, kind: input, shape index: {}]
  %s4 = inlined_call_operand.vmem [shape: f32[1,512], index: 4, kind: input, shape index: {}]
  %s5 = inlined_call_operand.vmem [shape: bf16[512,16], index: 5, kind: input, shape index: {}]
  %s6 = inlined_call_operand.vmem [shape: f32[1,16], index: 6, kind: input, shape index: {}]
  %s7 = inlined_call_operand.vmem [shape: f32[512,16], index: 7, kind: output, shape index: {}]
  %s8 = sld [smem:[#allocation0]]
  $region65: #{mlp_forward.1} parent=0
    _
  %s10 = ssub.s32 1, %s8
  %s11 = scalar_select 0, %s10, %s8
  $region1: #{mlp_forward.1} parent=0
    #allocation2 [shape = 'u8[524288]{0}', space=vmem, size = 0x80000, scoped, tag = 'input window, operand 3, single buffered']
    #allocation3 [shape = 's32[2]{0}', space=sflag, size = 0x8, scoped, tag = 'scoped memory for mlp_forward.1']
    %12 = vsyncpa [#allocation3], 0
    loop: start=0, step=1, limit=4
    $region2: #{mlp_forward.1} parent=1 // loop_pre_header
      _
    $region3: #{mlp_forward.1} parent=1 // loop_header
      %s14 = sphi 0, %s18
      %p15 = scmp.ge.s32.totalorder %s14, 4
      %s24 = sphi 0, %s26
      %s27 = sphi 0, %s24
      %s28 = sphi 0, %s27
      %s44 = sphi 0, %s28
      %s48 = sphi 0, %s48
      %s50 = sphi 0, %s48
      %s51 = sphi 0, %s50
      %s65 = sphi 0, %s51
      %s69 = sphi 0, %s69
      %s71 = sphi 0, %s69
      %s72 = sphi 0, %s71
      %s86 = sphi 0, %s72
      %s90 = sphi 0, %s90
      %s92 = sphi 0, %s90
      %s93 = sphi 0, %s92
      %s107 = sphi 0, %s93
      %s111 = sphi 0, %s111
      %s113 = sphi 0, %s111
      %s114 = sphi 0, %s113
      %s128 = sphi 0, %s114
      %s132 = sphi 0, %s132
      %s134 = sphi 0, %s132
      %s135 = sphi 0, %s134
      %s149 = sphi 0, %s135
      %s153 = sphi 0, %s153
      %s155 = sphi 0, %s153
      %s156 = sphi 0, %s155
      %s170 = sphi 0, %s156
      %s176 = sphi 0, %s178
      %s179 = sphi 0, %s176
      %s180 = sphi 0, %s179
      %s196 = sphi 0, %s180
    $region4: #{mlp_forward.1} parent=1 // loop_header_branch
      %17 = sbr.rel (%p15) target = $region8
    $region5: #{mlp_forward.1} parent=1 // loop_body
      %s19 = ssub.s32 %s14, 1
      %s20 = ssub.s32 %s14, 2
      %s21 = sadd.s32 %s14, 1
      %s22 = ssub.s32 %s14, %s21
      %p23 = scmp.eq.s32.totalorder %s22, 0
      %s25 = sadd.s32 %s24, 1
      %s26 = scalar_select %p23, %s24, %s25
      %p29 = pneg %p23
      %p30 = scmp.eq.s32.totalorder %s14, 1
      %p31 = por %p29, %p30
      %p32 = scmp.ne.s32.totalorder %s24, %s27
      %p33 = scmp.eq.s32.totalorder %s14, 0
      %p34 = por %p32, %p33
      %p35 = scmp.ne.s32.totalorder %s24, %s27
      %p36 = scmp.eq.s32.totalorder %s19, 1
      %p37 = por %p35, %p36
      %p38 = scmp.ne.s32.totalorder %s27, %s28
      %p39 = scmp.eq.s32.totalorder %s19, 0
      %p40 = por %p38, %p39
      %p41 = scmp.ne.s32.totalorder %s27, %s28
      %p42 = scmp.eq.s32.totalorder %s20, 1
      %p43 = por %p41, %p42
      %p45 = scmp.ne.s32.totalorder %s28, %s44
      %p46 = scmp.eq.s32.totalorder %s20, 0
      %p47 = por %p45, %p46
      %s49 = sadd.s32 %s48, 1
      %p52 = scmp.eq.s32.totalorder %s14, 1
      %p53 = scmp.ne.s32.totalorder %s48, %s50
      %p54 = scmp.eq.s32.totalorder %s14, 0
      %p55 = por %p53, %p54
      %p56 = scmp.ne.s32.totalorder %s48, %s50
      %p57 = scmp.eq.s32.totalorder %s19, 1
      %p58 = por %p56, %p57
      %p59 = scmp.ne.s32.totalorder %s50, %s51
      %p60 = scmp.eq.s32.totalorder %s19, 0
      %p61 = por %p59, %p60
      %p62 = scmp.ne.s32.totalorder %s50, %s51
      %p63 = scmp.eq.s32.totalorder %s20, 1
      %p64 = por %p62, %p63
      %p66 = scmp.ne.s32.totalorder %s51, %s65
      %p67 = scmp.eq.s32.totalorder %s20, 0
      %p68 = por %p66, %p67
      %s70 = sadd.s32 %s69, 1
      %p73 = scmp.eq.s32.totalorder %s14, 1
      %p74 = scmp.ne.s32.totalorder %s69, %s71
      %p75 = scmp.eq.s32.totalorder %s14, 0
      %p76 = por %p74, %p75
      %p77 = scmp.ne.s32.totalorder %s69, %s71
      %p78 = scmp.eq.s32.totalorder %s19, 1
      %p79 = por %p77, %p78
      %p80 = scmp.ne.s32.totalorder %s71, %s72
      %p81 = scmp.eq.s32.totalorder %s19, 0
      %p82 = por %p80, %p81
      %p83 = scmp.ne.s32.totalorder %s71, %s72
      %p84 = scmp.eq.s32.totalorder %s20, 1
      %p85 = por %p83, %p84
      %p87 = scmp.ne.s32.totalorder %s72, %s86
      %p88 = scmp.eq.s32.totalorder %s20, 0
      %p89 = por %p87, %p88
      %s91 = sadd.s32 %s90, 1
      %p94 = scmp.eq.s32.totalorder %s14, 1
      %p95 = scmp.ne.s32.totalorder %s90, %s92
      %p96 = scmp.eq.s32.totalorder %s14, 0
      %p97 = por %p95, %p96
      %p98 = scmp.ne.s32.totalorder %s90, %s92
      %p99 = scmp.eq.s32.totalorder %s19, 1
      %p100 = por %p98, %p99
      %p101 = scmp.ne.s32.totalorder %s92, %s93
      %p102 = scmp.eq.s32.totalorder %s19, 0
      %p103 = por %p101, %p102
      %p104 = scmp.ne.s32.totalorder %s92, %s93
      %p105 = scmp.eq.s32.totalorder %s20, 1
      %p106 = por %p104, %p105
      %p108 = scmp.ne.s32.totalorder %s93, %s107
      %p109 = scmp.eq.s32.totalorder %s20, 0
      %p110 = por %p108, %p109
      %s112 = sadd.s32 %s111, 1
      %p115 = scmp.eq.s32.totalorder %s14, 1
      %p116 = scmp.ne.s32.totalorder %s111, %s113
      %p117 = scmp.eq.s32.totalorder %s14, 0
      %p118 = por %p116, %p117
      %p119 = scmp.ne.s32.totalorder %s111, %s113
      %p120 = scmp.eq.s32.totalorder %s19, 1
      %p121 = por %p119, %p120
      %p122 = scmp.ne.s32.totalorder %s113, %s114
      %p123 = scmp.eq.s32.totalorder %s19, 0
      %p124 = por %p122, %p123
      %p125 = scmp.ne.s32.totalorder %s113, %s114
      %p126 = scmp.eq.s32.totalorder %s20, 1
      %p127 = por %p125, %p126
      %p129 = scmp.ne.s32.totalorder %s114, %s128
      %p130 = scmp.eq.s32.totalorder %s20, 0
      %p131 = por %p129, %p130
      %s133 = sadd.s32 %s132, 1
      %p136 = scmp.eq.s32.totalorder %s14, 1
      %p137 = scmp.ne.s32.totalorder %s132, %s134
      %p138 = scmp.eq.s32.totalorder %s14, 0
      %p139 = por %p137, %p138
      %p140 = scmp.ne.s32.totalorder %s132, %s134
      %p141 = scmp.eq.s32.totalorder %s19, 1
      %p142 = por %p140, %p141
      %p143 = scmp.ne.s32.totalorder %s134, %s135
      %p144 = scmp.eq.s32.totalorder %s19, 0
      %p145 = por %p143, %p144
      %p146 = scmp.ne.s32.totalorder %s134, %s135
      %p147 = scmp.eq.s32.totalorder %s20, 1
      %p148 = por %p146, %p147
      %p150 = scmp.ne.s32.totalorder %s135, %s149
      %p151 = scmp.eq.s32.totalorder %s20, 0
      %p152 = por %p150, %p151
      %s154 = sadd.s32 %s153, 1
      %p157 = scmp.eq.s32.totalorder %s14, 1
      %p158 = scmp.ne.s32.totalorder %s153, %s155
      %p159 = scmp.eq.s32.totalorder %s14, 0
      %p160 = por %p158, %p159
      %p161 = scmp.ne.s32.totalorder %s153, %s155
      %p162 = scmp.eq.s32.totalorder %s19, 1
      %p163 = por %p161, %p162
      %p164 = scmp.ne.s32.totalorder %s155, %s156
      %p165 = scmp.eq.s32.totalorder %s19, 0
      %p166 = por %p164, %p165
      %p167 = scmp.ne.s32.totalorder %s155, %s156
      %p168 = scmp.eq.s32.totalorder %s20, 1
      %p169 = por %p167, %p168
      %p171 = scmp.ne.s32.totalorder %s156, %s170
      %p172 = scmp.eq.s32.totalorder %s20, 0
      %p173 = por %p171, %p172
      %s174 = ssub.s32 %s14, %s21
      %p175 = scmp.eq.s32.totalorder %s174, 0
      %s177 = sadd.s32 %s176, 1
      %s178 = scalar_select %p175, %s176, %s177
      %p181 = pneg %p175
      %p182 = scmp.eq.s32.totalorder %s14, 1
      %p183 = por %p181, %p182
      %p184 = scmp.ne.s32.totalorder %s176, %s179
      %p185 = scmp.eq.s32.totalorder %s14, 0
      %p186 = por %p184, %p185
      %p187 = scmp.ne.s32.totalorder %s176, %s179
      %p188 = scmp.eq.s32.totalorder %s19, 1
      %p189 = por %p187, %p188
      %p190 = scmp.ne.s32.totalorder %s179, %s180
      %p191 = scmp.eq.s32.totalorder %s19, 0
      %p192 = por %p190, %p191
      %p193 = scmp.ne.s32.totalorder %s179, %s180
      %p194 = scmp.eq.s32.totalorder %s20, 1
      %p195 = por %p193, %p194
      %p197 = scmp.ne.s32.totalorder %s180, %s196
      %p198 = scmp.eq.s32.totalorder %s20, 0
      %p199 = por %p197, %p198
      %p200 = scmp.le.s32.totalorder 1, %s14
      %p201 = scmp.lt.s32.totalorder %s14, 3
      %p202 = pnand %p200, %p201
      %p203 = pneg %p202
      // Predicated region
      $region9: #{mlp_forward.1} parent=5 // pred_check
        _
      $region10: #{mlp_forward.1} parent=5 // pred_check_branch
        %205 = sbr.rel (%p202) target = $region12
      $region11: #{mlp_forward.1} parent=5 // pred_region
        %s206 = ssub.s32 %s14, 1
        // Predicated region
        $region13: #{mlp_forward.1} parent=11 // pred_check
          %p207 = pneg %p61
        $region14: #{mlp_forward.1} parent=11 // pred_check_branch
          %209 = sbr.rel (%p207) target = $region16
        $region15: #{mlp_forward.1} parent=11 // pred_region
          _
        $region16: #{mlp_forward.1} parent=11 // pred_fallthru
          _
        // Predicated region
        $region17: #{mlp_forward.1} parent=11 // pred_check
          %p210 = pneg %p82
        $region18: #{mlp_forward.1} parent=11 // pred_check_branch
          %212 = sbr.rel (%p210) target = $region20
        $region19: #{mlp_forward.1} parent=11 // pred_region
          _
        $region20: #{mlp_forward.1} parent=11 // pred_fallthru
          _
        // Predicated region
        $region21: #{mlp_forward.1} parent=11 // pred_check
          %p213 = pneg %p103
        $region22: #{mlp_forward.1} parent=11 // pred_check_branch
          %215 = sbr.rel (%p213) target = $region24
        $region23: #{mlp_forward.1} parent=11 // pred_region
          %217 = vsyncadd [#allocation3], 0
          %s218 = sshll.u32 %s3, 4
          %s219 = int_to_ptr.hbm [resolvable:$true] %s218
          %s220 = sshll.u32 [#allocation2], 4
          %s221 = int_to_ptr.vmem [resolvable:$true] %s220
          %226 = dma.hbm_to_vmem [thread:$0]  %s219, 16384, %s221, [#allocation3], 256, 256, 16
        $region24: #{mlp_forward.1} parent=11 // pred_fallthru
          _
        // Predicated region
        $region25: #{mlp_forward.1} parent=11 // pred_check
          %p227 = pneg %p124
        $region26: #{mlp_forward.1} parent=11 // pred_check_branch
          %229 = sbr.rel (%p227) target = $region28
        $region27: #{mlp_forward.1} parent=11 // pred_region
          _
        $region28: #{mlp_forward.1} parent=11 // pred_fallthru
          _
        // Predicated region
        $region29: #{mlp_forward.1} parent=11 // pred_check
          %p230 = pneg %p145
        $region30: #{mlp_forward.1} parent=11 // pred_check_branch
          %232 = sbr.rel (%p230) target = $region32
        $region31: #{mlp_forward.1} parent=11 // pred_region
          _
        $region32: #{mlp_forward.1} parent=11 // pred_fallthru
          _
        // Predicated region
        $region33: #{mlp_forward.1} parent=11 // pred_check
          %p233 = pneg %p166
        $region34: #{mlp_forward.1} parent=11 // pred_check_branch
          %235 = sbr.rel (%p233) target = $region36
        $region35: #{mlp_forward.1} parent=11 // pred_region
          _
        $region36: #{mlp_forward.1} parent=11 // pred_fallthru
          _
      $region12: #{mlp_forward.1} parent=5 // pred_fallthru
        _
      %p236 = scmp.lt.s32.totalorder %s14, 2
      // Predicated region
      $region37: #{mlp_forward.1} parent=5 // pred_check
        %p237 = pneg %p236
      $region38: #{mlp_forward.1} parent=5 // pred_check_branch
        %239 = sbr.rel (%p237) target = $region40
      $region39: #{mlp_forward.1} parent=5 // pred_region
        // Predicated region
        $region41: #{mlp_forward.1} parent=39 // pred_check
          %p240 = pneg %p34
        $region42: #{mlp_forward.1} parent=39 // pred_check_branch
          %242 = sbr.rel (%p240) target = $region44
        $region43: #{mlp_forward.1} parent=39 // pred_region
          %s243 = smul.u32 32, %s14
          %p244 = scmp.lt.s32.totalorder %s243, 63
          %s245 = scalar_select %p244, %s243, 63
          %s246 = smul.addr %s245, 8
          %s247 = scalar_lea.vmem %s0, %s246
          %s248 = smul.u32 32, %s14
        $region44: #{mlp_forward.1} parent=39 // pred_fallthru
          _
      $region40: #{mlp_forward.1} parent=5 // pred_fallthru
        _
      %p249 = scmp.le.s32.totalorder 1, %s14
      %p250 = scmp.lt.s32.totalorder %s14, 3
      %p251 = pnand %p249, %p250
      %p252 = pneg %p251
      // Predicated region
      $region45: #{mlp_forward.1} parent=5 // pred_check
        _
      $region46: #{mlp_forward.1} parent=5 // pred_check_branch
        %254 = sbr.rel (%p251) target = $region48
      $region47: #{mlp_forward.1} parent=5 // pred_region
        %s255 = ssub.s32 %s14, 1
        // Predicated region
        $region49: #{mlp_forward.1} parent=47 // pred_check
          %p256 = pneg %p103
        $region50: #{mlp_forward.1} parent=47 // pred_check_branch
          %258 = sbr.rel (%p256) target = $region52
        $region51: #{mlp_forward.1} parent=47 // pred_region
          %260 = dma.done [#allocation3], 16384
        $region52: #{mlp_forward.1} parent=47 // pred_fallthru
          _
        %s261 = smul.u32 32, %s19
        %p262 = scmp.lt.s32.totalorder %s261, 63
        %s263 = scalar_select %p262, %s261, 63
        %s264 = smul.addr %s263, 8
        %s265 = scalar_lea.vmem %s0, %s264
        %p266 = pneg %p40
        %p267 = pneg %p37
        %p268 = pneg %p61
        %p269 = pneg %p58
        %p270 = pneg %p82
        %p271 = pneg %p79
        %p272 = pneg %p103
        %p273 = pneg %p100
        %p274 = pneg %p124
        %p275 = pneg %p121
        %p276 = pneg %p145
        %p277 = pneg %p142
        %p278 = pneg %p166
        %p279 = pneg %p163
        %p280 = pneg %p192
        %p281 = pneg %p189
        %s282 = smul.u32 32, %s19
        %p283 = scmp.lt.s32.totalorder %s282, 63
        %s284 = scalar_select %p283, %s282, 63
        %s285 = smul.addr %s284, 8
        %s286 = scalar_lea.vmem %s7, %s285
        %s287 = smul.u32 32, %s19
        %p288 = scmp.lt.s32.totalorder %s287, 63
        %s289 = scalar_select %p288, %s287, 63
        %s290 = smul.addr %s289, 8
        %s291 = scalar_lea.vmem %s0, %s290
        %s292 = smul.u32 32, %s19
        %s293 = smul.u32 32, %s19
        %p294 = scmp.lt.s32.totalorder %s293, 63
        %s295 = scalar_select %p294, %s293, 63
        %s296 = smul.addr %s295, 8
        %s297 = scalar_lea.vmem %s7, %s296
        %s298 = smul.u32 32, %s19
        %v300 = vld [vmem:[%s291] sm:$0xff]
        %v301 = vld [vmem:[%s291 + $0x8] sm:$0xff]
        %v302 = vld [vmem:[%s291 + $0x10] sm:$0xff]
        %v303 = vld [vmem:[%s291 + $0x18] sm:$0xff]
        %v304 = vld [vmem:[%s291 + $0x20] sm:$0xff]
        %v305 = vld [vmem:[%s291 + $0x28] sm:$0xff]
        %v306 = vld [vmem:[%s291 + $0x30] sm:$0xff]
        %v307 = vld [vmem:[%s291 + $0x38] sm:$0xff]
        %v308 = vld [vmem:[%s291 + $0x40] sm:$0xff]
        %v309 = vld [vmem:[%s291 + $0x48] sm:$0xff]
        %v310 = vld [vmem:[%s291 + $0x50] sm:$0xff]
        %v311 = vld [vmem:[%s291 + $0x58] sm:$0xff]
        %v312 = vld [vmem:[%s291 + $0x60] sm:$0xff]
        %v313 = vld [vmem:[%s291 + $0x68] sm:$0xff]
        %v314 = vld [vmem:[%s291 + $0x70] sm:$0xff]
        %v315 = vld [vmem:[%s291 + $0x78] sm:$0xff]
        %v316 = vld [vmem:[%s291 + $0x80] sm:$0xff]
        %v317 = vld [vmem:[%s291 + $0x88] sm:$0xff]
        %v318 = vld [vmem:[%s291 + $0x90] sm:$0xff]
        %v319 = vld [vmem:[%s291 + $0x98] sm:$0xff]
        %v320 = vld [vmem:[%s291 + $0xa0] sm:$0xff]
        %v321 = vld [vmem:[%s291 + $0xa8] sm:$0xff]
        %v322 = vld [vmem:[%s291 + $0xb0] sm:$0xff]
        %v323 = vld [vmem:[%s291 + $0xb8] sm:$0xff]
        %v324 = vld [vmem:[%s291 + $0xc0] sm:$0xff]
        %v325 = vld [vmem:[%s291 + $0xc8] sm:$0xff]
        %v326 = vld [vmem:[%s291 + $0xd0] sm:$0xff]
        %v327 = vld [vmem:[%s291 + $0xd8] sm:$0xff]
        %v328 = vld [vmem:[%s291 + $0xe0] sm:$0xff]
        %v329 = vld [vmem:[%s291 + $0xe8] sm:$0xff]
        %v330 = vld [vmem:[%s291 + $0xf0] sm:$0xff]
        %v331 = vld [vmem:[%s291 + $0xf8] sm:$0xff]
        %v332 = vpack.c.bf16 %v301, %v300
        %v333 = vpack.c.bf16 %v303, %v302
        %v334 = vpack.c.bf16 %v305, %v304
        %v335 = vpack.c.bf16 %v307, %v306
        %v336 = vpack.c.bf16 %v309, %v308
        %v337 = vpack.c.bf16 %v311, %v310
        %v338 = vpack.c.bf16 %v313, %v312
        %v339 = vpack.c.bf16 %v315, %v314
        %v340 = vpack.c.bf16 %v317, %v316
        %v341 = vpack.c.bf16 %v319, %v318
        %v342 = vpack.c.bf16 %v321, %v320
        %v343 = vpack.c.bf16 %v323, %v322
        %v344 = vpack.c.bf16 %v325, %v324
        %v345 = vpack.c.bf16 %v327, %v326
        %v346 = vpack.c.bf16 %v329, %v328
        %v347 = vpack.c.bf16 %v331, %v330
        %v348 = vld [vmem:[%s1] sm:$0xff]
        %v349 = vld [vmem:[%s1 + $0x8] sm:$0xff]
        %v350 = vld [vmem:[%s1 + $0x10] sm:$0xff]
        %v351 = vld [vmem:[%s1 + $0x18] sm:$0xff]
        %v352 = vld [vmem:[%s1 + $0x20] sm:$0xff]
        %v353 = vld [vmem:[%s1 + $0x28] sm:$0xff]
        %v354 = vld [vmem:[%s1 + $0x30] sm:$0xff]
        %v355 = vld [vmem:[%s1 + $0x38] sm:$0xff]
        %v356 = vld [vmem:[%s2] sm:$0xf]
        %v358 = vperm.slane %v356, 0
        %v359 = vperm.slane %v356, 1
        %v360 = vperm.slane %v356, 2
        %v361 = vperm.slane %v356, 3
        %v374 = vunpack.c.l.b16 %v348
        %v375 = vunpack.c.h.b16 %v348
        %v376 = vunpack.c.l.b16 %v349
        %v377 = vunpack.c.h.b16 %v349
        %v378 = vunpack.c.l.b16 %v350
        %v379 = vunpack.c.h.b16 %v350
        %v380 = vunpack.c.l.b16 %v351
        %v381 = vunpack.c.h.b16 %v351
        %v382 = vunpack.c.l.b16 %v352
        %v383 = vunpack.c.h.b16 %v352
        %v384 = vunpack.c.l.b16 %v353
        %v385 = vunpack.c.h.b16 %v353
        %v386 = vunpack.c.l.b16 %v354
        %v387 = vunpack.c.h.b16 %v354
        %v388 = vunpack.c.l.b16 %v355
        %v389 = vunpack.c.h.b16 %v355
        %v390 = vpack.c.b16 %v378, %v374
        %v391 = vpack.c.b16 %v379, %v375
        %v392 = vpack.c.b16 %v380, %v376
        %v393 = vpack.c.b16 %v381, %v377
        %v394 = vpack.c.b16 %v386, %v382
        %v395 = vpack.c.b16 %v387, %v383
        %v396 = vpack.c.b16 %v388, %v384
        %v397 = vpack.c.b16 %v389, %v385
        %vm406 = vcmask 261120
        %v408 = vsel %vm406, %v332, 0
        %v411 = vsel %vm406, %v333, 0
        %v414 = vsel %vm406, %v334, 0
        %v417 = vsel %vm406, %v335, 0
        %v420 = vsel %vm406, %v336, 0
        %v423 = vsel %vm406, %v337, 0
        %v426 = vsel %vm406, %v338, 0
        %v429 = vsel %vm406, %v339, 0
        %v432 = vsel %vm406, %v340, 0
        %v435 = vsel %vm406, %v341, 0
        %v438 = vsel %vm406, %v342, 0
        %v441 = vsel %vm406, %v343, 0
        %v444 = vsel %vm406, %v344, 0
        %v447 = vsel %vm406, %v345, 0
        %v450 = vsel %vm406, %v346, 0
        %v453 = vsel %vm406, %v347, 0
        %455 = vmatpush.bf16.msra.mxu0 0
        %456 = vmatpush.bf16.msra.mxu0 0
        %457 = vmatpush.bf16.msra.mxu0 0
        %458 = vmatpush.bf16.msra.mxu0 0
        %459 = vmatpush.bf16.msra.mxu0 0
        %460 = vmatpush.bf16.msra.mxu0 0
        %461 = vmatpush.bf16.msra.mxu0 %v394
        %462 = vmatpush.bf16.msra.mxu0 %v390
        %463 = vmatmul.bf16.gmra.mxu0 %v408
        %v464 = vpop.f32.mrf.mxu0
        %v465 = vadd.f32 %v358, %v464
        %v466 = vpop.f32.mrf.mxu0
        %v467 = vadd.f32 %v358, %v466
        %468 = vmatmul.bf16.gmra.mxu0 %v411
        %v469 = vpop.f32.mrf.mxu0
        %v470 = vadd.f32 %v358, %v469
        %v471 = vpop.f32.mrf.mxu0
        %v472 = vadd.f32 %v358, %v471
        %473 = vmatmul.bf16.gmra.mxu0 %v414
        %v474 = vpop.f32.mrf.mxu0
        %v475 = vadd.f32 %v358, %v474
        %v476 = vpop.f32.mrf.mxu0
        %v477 = vadd.f32 %v358, %v476
        %478 = vmatmul.bf16.gmra.mxu0 %v417
        %v479 = vpop.f32.mrf.mxu0
        %v480 = vadd.f32 %v358, %v479
        %v481 = vpop.f32.mrf.mxu0
        %v482 = vadd.f32 %v358, %v481
        %483 = vmatmul.bf16.gmra.mxu0 %v420
        %v484 = vpop.f32.mrf.mxu0
        %v485 = vadd.f32 %v358, %v484
        %v486 = vpop.f32.mrf.mxu0
        %v487 = vadd.f32 %v358, %v486
        %488 = vmatmul.bf16.gmra.mxu0 %v423
        %v489 = vpop.f32.mrf.mxu0
        %v490 = vadd.f32 %v358, %v489
        %v491 = vpop.f32.mrf.mxu0
        %v492 = vadd.f32 %v358, %v491
        %493 = vmatmul.bf16.gmra.mxu0 %v426
        %v494 = vpop.f32.mrf.mxu0
        %v495 = vadd.f32 %v358, %v494
        %v496 = vpop.f32.mrf.mxu0
        %v497 = vadd.f32 %v358, %v496
        %498 = vmatmul.bf16.gmra.mxu0 %v429
        %v499 = vpop.f32.mrf.mxu0
        %v500 = vadd.f32 %v358, %v499
        %v501 = vpop.f32.mrf.mxu0
        %v502 = vadd.f32 %v358, %v501
        %503 = vmatmul.bf16.gmra.mxu0 %v432
        %v504 = vpop.f32.mrf.mxu0
        %v505 = vadd.f32 %v358, %v504
        %v506 = vpop.f32.mrf.mxu0
        %v507 = vadd.f32 %v358, %v506
        %508 = vmatmul.bf16.gmra.mxu0 %v435
        %v509 = vpop.f32.mrf.mxu0
        %v510 = vadd.f32 %v358, %v509
        %v511 = vpop.f32.mrf.mxu0
        %v512 = vadd.f32 %v358, %v511
        %513 = vmatmul.bf16.gmra.mxu0 %v438
        %v514 = vpop.f32.mrf.mxu0
        %v515 = vadd.f32 %v358, %v514
        %v516 = vpop.f32.mrf.mxu0
        %v517 = vadd.f32 %v358, %v516
        %518 = vmatmul.bf16.gmra.mxu0 %v441
        %v519 = vpop.f32.mrf.mxu0
        %v520 = vadd.f32 %v358, %v519
        %v521 = vpop.f32.mrf.mxu0
        %v522 = vadd.f32 %v358, %v521
        %523 = vmatmul.bf16.gmra.mxu0 %v444
        %v524 = vpop.f32.mrf.mxu0
        %v525 = vadd.f32 %v358, %v524
        %v526 = vpop.f32.mrf.mxu0
        %v527 = vadd.f32 %v358, %v526
        %528 = vmatmul.bf16.gmra.mxu0 %v447
        %v529 = vpop.f32.mrf.mxu0
        %v530 = vadd.f32 %v358, %v529
        %v531 = vpop.f32.mrf.mxu0
        %v532 = vadd.f32 %v358, %v531
        %533 = vmatmul.bf16.gmra.mxu0 %v450
        %v534 = vpop.f32.mrf.mxu0
        %v535 = vadd.f32 %v358, %v534
        %v536 = vpop.f32.mrf.mxu0
        %v537 = vadd.f32 %v358, %v536
        %538 = vmatmul.bf16.gmra.mxu0 %v453
        %v539 = vpop.f32.mrf.mxu0
        %v540 = vadd.f32 %v358, %v539
        %v541 = vpop.f32.mrf.mxu0
        %v542 = vadd.f32 %v358, %v541
        %543 = vdwg.mxu0
        %544 = vmatpush.bf16.msra.mxu0 0
        %545 = vmatpush.bf16.msra.mxu0 0
        %546 = vmatpush.bf16.msra.mxu0 0
        %547 = vmatpush.bf16.msra.mxu0 0
        %548 = vmatpush.bf16.msra.mxu0 0
        %549 = vmatpush.bf16.msra.mxu0 0
        %550 = vmatpush.bf16.msra.mxu0 %v395
        %551 = vmatpush.bf16.msra.mxu0 %v391
        %552 = vmatmul.bf16.gmra.mxu0 %v408
        %v553 = vpop.f32.mrf.mxu0
        %v554 = vadd.f32 %v359, %v553
        %v555 = vpop.f32.mrf.mxu0
        %v556 = vadd.f32 %v359, %v555
        %557 = vmatmul.bf16.gmra.mxu0 %v411
        %v558 = vpop.f32.mrf.mxu0
        %v559 = vadd.f32 %v359, %v558
        %v560 = vpop.f32.mrf.mxu0
        %v561 = vadd.f32 %v359, %v560
        %562 = vmatmul.bf16.gmra.mxu0 %v414
        %v563 = vpop.f32.mrf.mxu0
        %v564 = vadd.f32 %v359, %v563
        %v565 = vpop.f32.mrf.mxu0
        %v566 = vadd.f32 %v359, %v565
        %567 = vmatmul.bf16.gmra.mxu0 %v417
        %v568 = vpop.f32.mrf.mxu0
        %v569 = vadd.f32 %v359, %v568
        %v570 = vpop.f32.mrf.mxu0
        %v571 = vadd.f32 %v359, %v570
        %572 = vmatmul.bf16.gmra.mxu0 %v420
        %v573 = vpop.f32.mrf.mxu0
        %v574 = vadd.f32 %v359, %v573
        %v575 = vpop.f32.mrf.mxu0
        %v576 = vadd.f32 %v359, %v575
        %577 = vmatmul.bf16.gmra.mxu0 %v423
        %v578 = vpop.f32.mrf.mxu0
        %v579 = vadd.f32 %v359, %v578
        %v580 = vpop.f32.mrf.mxu0
        %v581 = vadd.f32 %v359, %v580
        %582 = vmatmul.bf16.gmra.mxu0 %v426
        %v583 = vpop.f32.mrf.mxu0
        %v584 = vadd.f32 %v359, %v583
        %v585 = vpop.f32.mrf.mxu0
        %v586 = vadd.f32 %v359, %v585
        %587 = vmatmul.bf16.gmra.mxu0 %v429
        %v588 = vpop.f32.mrf.mxu0
        %v589 = vadd.f32 %v359, %v588
        %v590 = vpop.f32.mrf.mxu0
        %v591 = vadd.f32 %v359, %v590
        %592 = vmatmul.bf16.gmra.mxu0 %v432
        %v593 = vpop.f32.mrf.mxu0
        %v594 = vadd.f32 %v359, %v593
        %v595 = vpop.f32.mrf.mxu0
        %v596 = vadd.f32 %v359, %v595
        %597 = vmatmul.bf16.gmra.mxu0 %v435
        %v598 = vpop.f32.mrf.mxu0
        %v599 = vadd.f32 %v359, %v598
        %v600 = vpop.f32.mrf.mxu0
        %v601 = vadd.f32 %v359, %v600
        %602 = vmatmul.bf16.gmra.mxu0 %v438
        %v603 = vpop.f32.mrf.mxu0
        %v604 = vadd.f32 %v359, %v603
        %v605 = vpop.f32.mrf.mxu0
        %v606 = vadd.f32 %v359, %v605
        %607 = vmatmul.bf16.gmra.mxu0 %v441
        %v608 = vpop.f32.mrf.mxu0
        %v609 = vadd.f32 %v359, %v608
        %v610 = vpop.f32.mrf.mxu0
        %v611 = vadd.f32 %v359, %v610
        %612 = vmatmul.bf16.gmra.mxu0 %v444
        %v613 = vpop.f32.mrf.mxu0
        %v614 = vadd.f32 %v359, %v613
        %v615 = vpop.f32.mrf.mxu0
        %v616 = vadd.f32 %v359, %v615
        %617 = vmatmul.bf16.gmra.mxu0 %v447
        %v618 = vpop.f32.mrf.mxu0
        %v619 = vadd.f32 %v359, %v618
        %v620 = vpop.f32.mrf.mxu0
        %v621 = vadd.f32 %v359, %v620
        %622 = vmatmul.bf16.gmra.mxu0 %v450
        %v623 = vpop.f32.mrf.mxu0
        %v624 = vadd.f32 %v359, %v623
        %v625 = vpop.f32.mrf.mxu0
        %v626 = vadd.f32 %v359, %v625
        %627 = vmatmul.bf16.gmra.mxu0 %v453
        %v628 = vpop.f32.mrf.mxu0
        %v629 = vadd.f32 %v359, %v628
        %v630 = vpop.f32.mrf.mxu0
        %v631 = vadd.f32 %v359, %v630
        %632 = vdwg.mxu0
        %633 = vmatpush.bf16.msra.mxu0 0
        %634 = vmatpush.bf16.msra.mxu0 0
        %635 = vmatpush.bf16.msra.mxu0 0
        %636 = vmatpush.bf16.msra.mxu0 0
        %637 = vmatpush.bf16.msra.mxu0 0
        %638 = vmatpush.bf16.msra.mxu0 0
        %639 = vmatpush.bf16.msra.mxu0 %v396
        %640 = vmatpush.bf16.msra.mxu0 %v392
        %641 = vmatmul.bf16.gmra.mxu0 %v408
        %v642 = vpop.f32.mrf.mxu0
        %v643 = vadd.f32 %v360, %v642
        %v644 = vpop.f32.mrf.mxu0
        %v645 = vadd.f32 %v360, %v644
        %646 = vmatmul.bf16.gmra.mxu0 %v411
        %v647 = vpop.f32.mrf.mxu0
        %v648 = vadd.f32 %v360, %v647
        %v649 = vpop.f32.mrf.mxu0
        %v650 = vadd.f32 %v360, %v649
        %651 = vmatmul.bf16.gmra.mxu0 %v414
        %v652 = vpop.f32.mrf.mxu0
        %v653 = vadd.f32 %v360, %v652
        %v654 = vpop.f32.mrf.mxu0
        %v655 = vadd.f32 %v360, %v654
        %656 = vmatmul.bf16.gmra.mxu0 %v417
        %v657 = vpop.f32.mrf.mxu0
        %v658 = vadd.f32 %v360, %v657
        %v659 = vpop.f32.mrf.mxu0
        %v660 = vadd.f32 %v360, %v659
        %661 = vmatmul.bf16.gmra.mxu0 %v420
        %v662 = vpop.f32.mrf.mxu0
        %v663 = vadd.f32 %v360, %v662
        %v664 = vpop.f32.mrf.mxu0
        %v665 = vadd.f32 %v360, %v664
        %666 = vmatmul.bf16.gmra.mxu0 %v423
        %v667 = vpop.f32.mrf.mxu0
        %v668 = vadd.f32 %v360, %v667
        %v669 = vpop.f32.mrf.mxu0
        %v670 = vadd.f32 %v360, %v669
        %671 = vmatmul.bf16.gmra.mxu0 %v426
        %v672 = vpop.f32.mrf.mxu0
        %v673 = vadd.f32 %v360, %v672
        %v674 = vpop.f32.mrf.mxu0
        %v675 = vadd.f32 %v360, %v674
        %676 = vmatmul.bf16.gmra.mxu0 %v429
        %v677 = vpop.f32.mrf.mxu0
        %v678 = vadd.f32 %v360, %v677
        %v679 = vpop.f32.mrf.mxu0
        %v680 = vadd.f32 %v360, %v679
        %681 = vmatmul.bf16.gmra.mxu0 %v432
        %v682 = vpop.f32.mrf.mxu0
        %v683 = vadd.f32 %v360, %v682
        %v684 = vpop.f32.mrf.mxu0
        %v685 = vadd.f32 %v360, %v684
        %686 = vmatmul.bf16.gmra.mxu0 %v435
        %v687 = vpop.f32.mrf.mxu0
        %v688 = vadd.f32 %v360, %v687
        %v689 = vpop.f32.mrf.mxu0
        %v690 = vadd.f32 %v360, %v689
        %691 = vmatmul.bf16.gmra.mxu0 %v438
        %v692 = vpop.f32.mrf.mxu0
        %v693 = vadd.f32 %v360, %v692
        %v694 = vpop.f32.mrf.mxu0
        %v695 = vadd.f32 %v360, %v694
        %696 = vmatmul.bf16.gmra.mxu0 %v441
        %v697 = vpop.f32.mrf.mxu0
        %v698 = vadd.f32 %v360, %v697
        %v699 = vpop.f32.mrf.mxu0
        %v700 = vadd.f32 %v360, %v699
        %701 = vmatmul.bf16.gmra.mxu0 %v444
        %v702 = vpop.f32.mrf.mxu0
        %v703 = vadd.f32 %v360, %v702
        %v704 = vpop.f32.mrf.mxu0
        %v705 = vadd.f32 %v360, %v704
        %706 = vmatmul.bf16.gmra.mxu0 %v447
        %v707 = vpop.f32.mrf.mxu0
        %v708 = vadd.f32 %v360, %v707
        %v709 = vpop.f32.mrf.mxu0
        %v710 = vadd.f32 %v360, %v709
        %711 = vmatmul.bf16.gmra.mxu0 %v450
        %v712 = vpop.f32.mrf.mxu0
        %v713 = vadd.f32 %v360, %v712
        %v714 = vpop.f32.mrf.mxu0
        %v715 = vadd.f32 %v360, %v714
        %716 = vmatmul.bf16.gmra.mxu0 %v453
        %v717 = vpop.f32.mrf.mxu0
        %v718 = vadd.f32 %v360, %v717
        %v719 = vpop.f32.mrf.mxu0
        %v720 = vadd.f32 %v360, %v719
        %721 = vdwg.mxu0
        %722 = vmatpush.bf16.msra.mxu0 0
        %723 = vmatpush.bf16.msra.mxu0 0
        %724 = vmatpush.bf16.msra.mxu0 0
        %725 = vmatpush.bf16.msra.mxu0 0
        %726 = vmatpush.bf16.msra.mxu0 0
        %727 = vmatpush.bf16.msra.mxu0 0
        %728 = vmatpush.bf16.msra.mxu0 %v397
        %729 = vmatpush.bf16.msra.mxu0 %v393
        %730 = vmatmul.bf16.gmra.mxu0 %v408
        %v731 = vpop.f32.mrf.mxu0
        %v732 = vadd.f32 %v361, %v731
        %v733 = vpop.f32.mrf.mxu0
        %v734 = vadd.f32 %v361, %v733
        %735 = vmatmul.bf16.gmra.mxu0 %v411
        %v736 = vpop.f32.mrf.mxu0
        %v737 = vadd.f32 %v361, %v736
        %v738 = vpop.f32.mrf.mxu0
        %v739 = vadd.f32 %v361, %v738
        %740 = vmatmul.bf16.gmra.mxu0 %v414
        %v741 = vpop.f32.mrf.mxu0
        %v742 = vadd.f32 %v361, %v741
        %v743 = vpop.f32.mrf.mxu0
        %v744 = vadd.f32 %v361, %v743
        %745 = vmatmul.bf16.gmra.mxu0 %v417
        %v746 = vpop.f32.mrf.mxu0
        %v747 = vadd.f32 %v361, %v746
        %v748 = vpop.f32.mrf.mxu0
        %v749 = vadd.f32 %v361, %v748
        %750 = vmatmul.bf16.gmra.mxu0 %v420
        %v751 = vpop.f32.mrf.mxu0
        %v752 = vadd.f32 %v361, %v751
        %v753 = vpop.f32.mrf.mxu0
        %v754 = vadd.f32 %v361, %v753
        %755 = vmatmul.bf16.gmra.mxu0 %v423
        %v756 = vpop.f32.mrf.mxu0
        %v757 = vadd.f32 %v361, %v756
        %v758 = vpop.f32.mrf.mxu0
        %v759 = vadd.f32 %v361, %v758
        %760 = vmatmul.bf16.gmra.mxu0 %v426
        %v761 = vpop.f32.mrf.mxu0
        %v762 = vadd.f32 %v361, %v761
        %v763 = vpop.f32.mrf.mxu0
        %v764 = vadd.f32 %v361, %v763
        %765 = vmatmul.bf16.gmra.mxu0 %v429
        %v766 = vpop.f32.mrf.mxu0
        %v767 = vadd.f32 %v361, %v766
        %v768 = vpop.f32.mrf.mxu0
        %v769 = vadd.f32 %v361, %v768
        %770 = vmatmul.bf16.gmra.mxu0 %v432
        %v771 = vpop.f32.mrf.mxu0
        %v772 = vadd.f32 %v361, %v771
        %v773 = vpop.f32.mrf.mxu0
        %v774 = vadd.f32 %v361, %v773
        %775 = vmatmul.bf16.gmra.mxu0 %v435
        %v776 = vpop.f32.mrf.mxu0
        %v777 = vadd.f32 %v361, %v776
        %v778 = vpop.f32.mrf.mxu0
        %v779 = vadd.f32 %v361, %v778
        %780 = vmatmul.bf16.gmra.mxu0 %v438
        %v781 = vpop.f32.mrf.mxu0
        %v782 = vadd.f32 %v361, %v781
        %v783 = vpop.f32.mrf.mxu0
        %v784 = vadd.f32 %v361, %v783
        %785 = vmatmul.bf16.gmra.mxu0 %v441
        %v786 = vpop.f32.mrf.mxu0
        %v787 = vadd.f32 %v361, %v786
        %v788 = vpop.f32.mrf.mxu0
        %v789 = vadd.f32 %v361, %v788
        %790 = vmatmul.bf16.gmra.mxu0 %v444
        %v791 = vpop.f32.mrf.mxu0
        %v792 = vadd.f32 %v361, %v791
        %v793 = vpop.f32.mrf.mxu0
        %v794 = vadd.f32 %v361, %v793
        %795 = vmatmul.bf16.gmra.mxu0 %v447
        %v796 = vpop.f32.mrf.mxu0
        %v797 = vadd.f32 %v361, %v796
        %v798 = vpop.f32.mrf.mxu0
        %v799 = vadd.f32 %v361, %v798
        %800 = vmatmul.bf16.gmra.mxu0 %v450
        %v801 = vpop.f32.mrf.mxu0
        %v802 = vadd.f32 %v361, %v801
        %v803 = vpop.f32.mrf.mxu0
        %v804 = vadd.f32 %v361, %v803
        %805 = vmatmul.bf16.gmra.mxu0 %v453
        %v806 = vpop.f32.mrf.mxu0
        %v807 = vadd.f32 %v361, %v806
        %v808 = vpop.f32.mrf.mxu0
        %v809 = vadd.f32 %v361, %v808
        %810 = vdwg.mxu0
        %v811 = vmax.f32 %v465, 0.0
        %v812 = vmax.f32 %v554, 0.0
        %v813 = vmax.f32 %v643, 0.0
        %v814 = vmax.f32 %v732, 0.0
        %v815 = vmax.f32 %v467, 0.0
        %v816 = vmax.f32 %v556, 0.0
        %v817 = vmax.f32 %v645, 0.0
        %v818 = vmax.f32 %v734, 0.0
        %v819 = vmax.f32 %v470, 0.0
        %v820 = vmax.f32 %v559, 0.0
        %v821 = vmax.f32 %v648, 0.0
        %v822 = vmax.f32 %v737, 0.0
        %v823 = vmax.f32 %v472, 0.0
        %v824 = vmax.f32 %v561, 0.0
        %v825 = vmax.f32 %v650, 0.0
        %v826 = vmax.f32 %v739, 0.0
        %v827 = vmax.f32 %v475, 0.0
        %v828 = vmax.f32 %v564, 0.0
        %v829 = vmax.f32 %v653, 0.0
        %v830 = vmax.f32 %v742, 0.0
        %v831 = vmax.f32 %v477, 0.0
        %v832 = vmax.f32 %v566, 0.0
        %v833 = vmax.f32 %v655, 0.0
        %v834 = vmax.f32 %v744, 0.0
        %v835 = vmax.f32 %v480, 0.0
        %v836 = vmax.f32 %v569, 0.0
        %v837 = vmax.f32 %v658, 0.0
        %v838 = vmax.f32 %v747, 0.0
        %v839 = vmax.f32 %v482, 0.0
        %v840 = vmax.f32 %v571, 0.0
        %v841 = vmax.f32 %v660, 0.0
        %v842 = vmax.f32 %v749, 0.0
        %v843 = vmax.f32 %v485, 0.0
        %v844 = vmax.f32 %v574, 0.0
        %v845 = vmax.f32 %v663, 0.0
        %v846 = vmax.f32 %v752, 0.0
        %v847 = vmax.f32 %v487, 0.0
        %v848 = vmax.f32 %v576, 0.0
        %v849 = vmax.f32 %v665, 0.0
        %v850 = vmax.f32 %v754, 0.0
        %v851 = vmax.f32 %v490, 0.0
        %v852 = vmax.f32 %v579, 0.0
        %v853 = vmax.f32 %v668, 0.0
        %v854 = vmax.f32 %v757, 0.0
        %v855 = vmax.f32 %v492, 0.0
        %v856 = vmax.f32 %v581, 0.0
        %v857 = vmax.f32 %v670, 0.0
        %v858 = vmax.f32 %v759, 0.0
        %v859 = vmax.f32 %v495, 0.0
        %v860 = vmax.f32 %v584, 0.0
        %v861 = vmax.f32 %v673, 0.0
        %v862 = vmax.f32 %v762, 0.0
        %v863 = vmax.f32 %v497, 0.0
        %v864 = vmax.f32 %v586, 0.0
        %v865 = vmax.f32 %v675, 0.0
        %v866 = vmax.f32 %v764, 0.0
        %v867 = vmax.f32 %v500, 0.0
        %v868 = vmax.f32 %v589, 0.0
        %v869 = vmax.f32 %v678, 0.0
        %v870 = vmax.f32 %v767, 0.0
        %v871 = vmax.f32 %v502, 0.0
        %v872 = vmax.f32 %v591, 0.0
        %v873 = vmax.f32 %v680, 0.0
        %v874 = vmax.f32 %v769, 0.0
        %v875 = vmax.f32 %v505, 0.0
        %v876 = vmax.f32 %v594, 0.0
        %v877 = vmax.f32 %v683, 0.0
        %v878 = vmax.f32 %v772, 0.0
        %v879 = vmax.f32 %v507, 0.0
        %v880 = vmax.f32 %v596, 0.0
        %v881 = vmax.f32 %v685, 0.0
        %v882 = vmax.f32 %v774, 0.0
        %v883 = vmax.f32 %v510, 0.0
        %v884 = vmax.f32 %v599, 0.0
        %v885 = vmax.f32 %v688, 0.0
        %v886 = vmax.f32 %v777, 0.0
        %v887 = vmax.f32 %v512, 0.0
        %v888 = vmax.f32 %v601, 0.0
        %v889 = vmax.f32 %v690, 0.0
        %v890 = vmax.f32 %v779, 0.0
        %v891 = vmax.f32 %v515, 0.0
        %v892 = vmax.f32 %v604, 0.0
        %v893 = vmax.f32 %v693, 0.0
        %v894 = vmax.f32 %v782, 0.0
        %v895 = vmax.f32 %v517, 0.0
        %v896 = vmax.f32 %v606, 0.0
        %v897 = vmax.f32 %v695, 0.0
        %v898 = vmax.f32 %v784, 0.0
        %v899 = vmax.f32 %v520, 0.0
        %v900 = vmax.f32 %v609, 0.0
        %v901 = vmax.f32 %v698, 0.0
        %v902 = vmax.f32 %v787, 0.0
        %v903 = vmax.f32 %v522, 0.0
        %v904 = vmax.f32 %v611, 0.0
        %v905 = vmax.f32 %v700, 0.0
        %v906 = vmax.f32 %v789, 0.0
        %v907 = vmax.f32 %v525, 0.0
        %v908 = vmax.f32 %v614, 0.0
        %v909 = vmax.f32 %v703, 0.0
        %v910 = vmax.f32 %v792, 0.0
        %v911 = vmax.f32 %v527, 0.0
        %v912 = vmax.f32 %v616, 0.0
        %v913 = vmax.f32 %v705, 0.0
        %v914 = vmax.f32 %v794, 0.0
        %v915 = vmax.f32 %v530, 0.0
        %v916 = vmax.f32 %v619, 0.0
        %v917 = vmax.f32 %v708, 0.0
        %v918 = vmax.f32 %v797, 0.0
        %v919 = vmax.f32 %v532, 0.0
        %v920 = vmax.f32 %v621, 0.0
        %v921 = vmax.f32 %v710, 0.0
        %v922 = vmax.f32 %v799, 0.0
        %v923 = vmax.f32 %v535, 0.0
        %v924 = vmax.f32 %v624, 0.0
        %v925 = vmax.f32 %v713, 0.0
        %v926 = vmax.f32 %v802, 0.0
        %v927 = vmax.f32 %v537, 0.0
        %v928 = vmax.f32 %v626, 0.0
        %v929 = vmax.f32 %v715, 0.0
        %v930 = vmax.f32 %v804, 0.0
        %v931 = vmax.f32 %v540, 0.0
        %v932 = vmax.f32 %v629, 0.0
        %v933 = vmax.f32 %v718, 0.0
        %v934 = vmax.f32 %v807, 0.0
        %v935 = vmax.f32 %v542, 0.0
        %v936 = vmax.f32 %v631, 0.0
        %v937 = vmax.f32 %v720, 0.0
        %v938 = vmax.f32 %v809, 0.0
        %v939 = vpack.c.bf16 %v815, %v811
        %v940 = vpack.c.bf16 %v816, %v812
        %v941 = vpack.c.bf16 %v817, %v813
        %v942 = vpack.c.bf16 %v818, %v814
        %v943 = vpack.c.bf16 %v823, %v819
        %v944 = vpack.c.bf16 %v824, %v820
        %v945 = vpack.c.bf16 %v825, %v821
        %v946 = vpack.c.bf16 %v826, %v822
        %v947 = vpack.c.bf16 %v831, %v827
        %v948 = vpack.c.bf16 %v832, %v828
        %v949 = vpack.c.bf16 %v833, %v829
        %v950 = vpack.c.bf16 %v834, %v830
        %v951 = vpack.c.bf16 %v839, %v835
        %v952 = vpack.c.bf16 %v840, %v836
        %v953 = vpack.c.bf16 %v841, %v837
        %v954 = vpack.c.bf16 %v842, %v838
        %v955 = vpack.c.bf16 %v847, %v843
        %v956 = vpack.c.bf16 %v848, %v844
        %v957 = vpack.c.bf16 %v849, %v845
        %v958 = vpack.c.bf16 %v850, %v846
        %v959 = vpack.c.bf16 %v855, %v851
        %v960 = vpack.c.bf16 %v856, %v852
        %v961 = vpack.c.bf16 %v857, %v853
        %v962 = vpack.c.bf16 %v858, %v854
        %v963 = vpack.c.bf16 %v863, %v859
        %v964 = vpack.c.bf16 %v864, %v860
        %v965 = vpack.c.bf16 %v865, %v861
        %v966 = vpack.c.bf16 %v866, %v862
        %v967 = vpack.c.bf16 %v871, %v867
        %v968 = vpack.c.bf16 %v872, %v868
        %v969 = vpack.c.bf16 %v873, %v869
        %v970 = vpack.c.bf16 %v874, %v870
        %v971 = vpack.c.bf16 %v879, %v875
        %v972 = vpack.c.bf16 %v880, %v876
        %v973 = vpack.c.bf16 %v881, %v877
        %v974 = vpack.c.bf16 %v882, %v878
        %v975 = vpack.c.bf16 %v887, %v883
        %v976 = vpack.c.bf16 %v888, %v884
        %v977 = vpack.c.bf16 %v889, %v885
        %v978 = vpack.c.bf16 %v890, %v886
        %v979 = vpack.c.bf16 %v895, %v891
        %v980 = vpack.c.bf16 %v896, %v892
        %v981 = vpack.c.bf16 %v897, %v893
        %v982 = vpack.c.bf16 %v898, %v894
        %v983 = vpack.c.bf16 %v903, %v899
        %v984 = vpack.c.bf16 %v904, %v900
        %v985 = vpack.c.bf16 %v905, %v901
        %v986 = vpack.c.bf16 %v906, %v902
        %v987 = vpack.c.bf16 %v911, %v907
        %v988 = vpack.c.bf16 %v912, %v908
        %v989 = vpack.c.bf16 %v913, %v909
        %v990 = vpack.c.bf16 %v914, %v910
        %v991 = vpack.c.bf16 %v919, %v915
        %v992 = vpack.c.bf16 %v920, %v916
        %v993 = vpack.c.bf16 %v921, %v917
        %v994 = vpack.c.bf16 %v922, %v918
        %v995 = vpack.c.bf16 %v927, %v923
        %v996 = vpack.c.bf16 %v928, %v924
        %v997 = vpack.c.bf16 %v929, %v925
        %v998 = vpack.c.bf16 %v930, %v926
        %v999 = vpack.c.bf16 %v935, %v931
        %v1000 = vpack.c.bf16 %v936, %v932
        %v1001 = vpack.c.bf16 %v937, %v933
        %v1002 = vpack.c.bf16 %v938, %v934
        %v1003 = vld [vmem:[#allocation2] sm:$0xff]
        %v1004 = vld [vmem:[#allocation2 + $0x8] sm:$0xff]
        %v1005 = vld [vmem:[#allocation2 + $0x10] sm:$0xff]
        %v1006 = vld [vmem:[#allocation2 + $0x18] sm:$0xff]
        %v1007 = vld [vmem:[#allocation2 + $0x20] sm:$0xff]
        %v1008 = vld [vmem:[#allocation2 + $0x28] sm:$0xff]
        %v1009 = vld [vmem:[#allocation2 + $0x30] sm:$0xff]
        %v1010 = vld [vmem:[#allocation2 + $0x38] sm:$0xff]
        %v1011 = vld [vmem:[#allocation2 + $0x40] sm:$0xff]
        %v1012 = vld [vmem:[#allocation2 + $0x48] sm:$0xff]
        %v1013 = vld [vmem:[#allocation2 + $0x50] sm:$0xff]
        %v1014 = vld [vmem:[#allocation2 + $0x58] sm:$0xff]
        %v1015 = vld [vmem:[#allocation2 + $0x60] sm:$0xff]
        %v1016 = vld [vmem:[#allocation2 + $0x68] sm:$0xff]
        %v1017 = vld [vmem:[#allocation2 + $0x70] sm:$0xff]
        %v1018 = vld [vmem:[#allocation2 + $0x78] sm:$0xff]
        %v1019 = vld [vmem:[#allocation2 + $0x80] sm:$0xff]
        %v1020 = vld [vmem:[#allocation2 + $0x88] sm:$0xff]
        %v1021 = vld [vmem:[#allocation2 + $0x90] sm:$0xff]
        %v1022 = vld [vmem:[#allocation2 + $0x98] sm:$0xff]
        %v1023 = vld [vmem:[#allocation2 + $0xa0] sm:$0xff]
        %v1024 = vld [vmem:[#allocation2 + $0xa8] sm:$0xff]
        %v1025 = vld [vmem:[#allocation2 + $0xb0] sm:$0xff]
        %v1026 = vld [vmem:[#allocation2 + $0xb8] sm:$0xff]
        %v1027 = vld [vmem:[#allocation2 + $0xc0] sm:$0xff]
        %v1028 = vld [vmem:[#allocation2 + $0xc8] sm:$0xff]
        %v1029 = vld [vmem:[#allocation2 + $0xd0] sm:$0xff]
        %v1030 = vld [vmem:[#allocation2 + $0xd8] sm:$0xff]
        %v1031 = vld [vmem:[#allocation2 + $0xe0] sm:$0xff]
        %v1032 = vld [vmem:[#allocation2 + $0xe8] sm:$0xff]
        %v1033 = vld [vmem:[#allocation2 + $0xf0] sm:$0xff]
        %v1034 = vld [vmem:[#allocation2 + $0xf8] sm:$0xff]
        %v1035 = vld [vmem:[#allocation2 + $0x100] sm:$0xff]
        %v1036 = vld [vmem:[#allocation2 + $0x108] sm:$0xff]
        %v1037 = vld [vmem:[#allocation2 + $0x110] sm:$0xff]
        %v1038 = vld [vmem:[#allocation2 + $0x118] sm:$0xff]
        %v1039 = vld [vmem:[#allocation2 + $0x120] sm:$0xff]
        %v1040 = vld [vmem:[#allocation2 + $0x128] sm:$0xff]
        %v1041 = vld [vmem:[#allocation2 + $0x130] sm:$0xff]
        %v1042 = vld [vmem:[#allocation2 + $0x138] sm:$0xff]
        %v1043 = vld [vmem:[#allocation2 + $0x140] sm:$0xff]
        %v1044 = vld [vmem:[#allocation2 + $0x148] sm:$0xff]
        %v1045 = vld [vmem:[#allocation2 + $0x150] sm:$0xff]
        %v1046 = vld [vmem:[#allocation2 + $0x158] sm:$0xff]
        %v1047 = vld [vmem:[#allocation2 + $0x160] sm:$0xff]
        %v1048 = vld [vmem:[#allocation2 + $0x168] sm:$0xff]
        %v1049 = vld [vmem:[#allocation2 + $0x170] sm:$0xff]
        %v1050 = vld [vmem:[#allocation2 + $0x178] sm:$0xff]
        %v1051 = vld [vmem:[#allocation2 + $0x180] sm:$0xff]
        %v1052 = vld [vmem:[#allocation2 + $0x188] sm:$0xff]
        %v1053 = vld [vmem:[#allocation2 + $0x190] sm:$0xff]
        %v1054 = vld [vmem:[#allocation2 + $0x198] sm:$0xff]
        %v1055 = vld [vmem:[#allocation2 + $0x1a0] sm:$0xff]
        %v1056 = vld [vmem:[#allocation2 + $0x1a8] sm:$0xff]
        %v1057 = vld [vmem:[#allocation2 + $0x1b0] sm:$0xff]
        %v1058 = vld [vmem:[#allocation2 + $0x1b8] sm:$0xff]
        %v1059 = vld [vmem:[#allocation2 + $0x1c0] sm:$0xff]
        %v1060 = vld [vmem:[#allocation2 + $0x1c8] sm:$0xff]
        %v1061 = vld [vmem:[#allocation2 + $0x1d0] sm:$0xff]
        %v1062 = vld [vmem:[#allocation2 + $0x1d8] sm:$0xff]
        %v1063 = vld [vmem:[#allocation2 + $0x1e0] sm:$0xff]
        %v1064 = vld [vmem:[#allocation2 + $0x1e8] sm:$0xff]
        %v1065 = vld [vmem:[#allocation2 + $0x1f0] sm:$0xff]
        %v1066 = vld [vmem:[#allocation2 + $0x1f8] sm:$0xff]
        %v1067 = vld [vmem:[#allocation2 + $0x200] sm:$0xff]
        %v1068 = vld [vmem:[#allocation2 + $0x208] sm:$0xff]
        %v1069 = vld [vmem:[#allocation2 + $0x210] sm:$0xff]
        %v1070 = vld [vmem:[#allocation2 + $0x218] sm:$0xff]
        %v1071 = vld [vmem:[#allocation2 + $0x220] sm:$0xff]
        %v1072 = vld [vmem:[#allocation2 + $0x228] sm:$0xff]
        %v1073 = vld [vmem:[#allocation2 + $0x230] sm:$0xff]
        %v1074 = vld [vmem:[#allocation2 + $0x238] sm:$0xff]
        %v1075 = vld [vmem:[#allocation2 + $0x240] sm:$0xff]
        %v1076 = vld [vmem:[#allocation2 + $0x248] sm:$0xff]
        %v1077 = vld [vmem:[#allocation2 + $0x250] sm:$0xff]
        %v1078 = vld [vmem:[#allocation2 + $0x258] sm:$0xff]
        %v1079 = vld [vmem:[#allocation2 + $0x260] sm:$0xff]
        %v1080 = vld [vmem:[#allocation2 + $0x268] sm:$0xff]
        %v1081 = vld [vmem:[#allocation2 + $0x270] sm:$0xff]
        %v1082 = vld [vmem:[#allocation2 + $0x278] sm:$0xff]
        %v1083 = vld [vmem:[#allocation2 + $0x280] sm:$0xff]
        %v1084 = vld [vmem:[#allocation2 + $0x288] sm:$0xff]
        %v1085 = vld [vmem:[#allocation2 + $0x290] sm:$0xff]
        %v1086 = vld [vmem:[#allocation2 + $0x298] sm:$0xff]
        %v1087 = vld [vmem:[#allocation2 + $0x2a0] sm:$0xff]
        %v1088 = vld [vmem:[#allocation2 + $0x2a8] sm:$0xff]
        %v1089 = vld [vmem:[#allocation2 + $0x2b0] sm:$0xff]
        %v1090 = vld [vmem:[#allocation2 + $0x2b8] sm:$0xff]
        %v1091 = vld [vmem:[#allocation2 + $0x2c0] sm:$0xff]
        %v1092 = vld [vmem:[#allocation2 + $0x2c8] sm:$0xff]
        %v1093 = vld [vmem:[#allocation2 + $0x2d0] sm:$0xff]
        %v1094 = vld [vmem:[#allocation2 + $0x2d8] sm:$0xff]
        %v1095 = vld [vmem:[#allocation2 + $0x2e0] sm:$0xff]
        %v1096 = vld [vmem:[#allocation2 + $0x2e8] sm:$0xff]
        %v1097 = vld [vmem:[#allocation2 + $0x2f0] sm:$0xff]
        %v1098 = vld [vmem:[#allocation2 + $0x2f8] sm:$0xff]
        %v1099 = vld [vmem:[#allocation2 + $0x300] sm:$0xff]
        %v1100 = vld [vmem:[#allocation2 + $0x308] sm:$0xff]
        %v1101 = vld [vmem:[#allocation2 + $0x310] sm:$0xff]
        %v1102 = vld [vmem:[#allocation2 + $0x318] sm:$0xff]
        %v1103 = vld [vmem:[#allocation2 + $0x320] sm:$0xff]
        %v1104 = vld [vmem:[#allocation2 + $0x328] sm:$0xff]
        %v1105 = vld [vmem:[#allocation2 + $0x330] sm:$0xff]
        %v1106 = vld [vmem:[#allocation2 + $0x338] sm:$0xff]
        %v1107 = vld [vmem:[#allocation2 + $0x340] sm:$0xff]
        %v1108 = vld [vmem:[#allocation2 + $0x348] sm:$0xff]
        %v1109 = vld [vmem:[#allocation2 + $0x350] sm:$0xff]
        %v1110 = vld [vmem:[#allocation2 + $0x358] sm:$0xff]
        %v1111 = vld [vmem:[#allocation2 + $0x360] sm:$0xff]
        %v1112 = vld [vmem:[#allocation2 + $0x368] sm:$0xff]
        %v1113 = vld [vmem:[#allocation2 + $0x370] sm:$0xff]
        %v1114 = vld [vmem:[#allocation2 + $0x378] sm:$0xff]
        %v1115 = vld [vmem:[#allocation2 + $0x380] sm:$0xff]
        %v1116 = vld [vmem:[#allocation2 + $0x388] sm:$0xff]
        %v1117 = vld [vmem:[#allocation2 + $0x390] sm:$0xff]
        %v1118 = vld [vmem:[#allocation2 + $0x398] sm:$0xff]
        %v1119 = vld [vmem:[#allocation2 + $0x3a0] sm:$0xff]
        %v1120 = vld [vmem:[#allocation2 + $0x3a8] sm:$0xff]
        %v1121 = vld [vmem:[#allocation2 + $0x3b0] sm:$0xff]
        %v1122 = vld [vmem:[#allocation2 + $0x3b8] sm:$0xff]
        %v1123 = vld [vmem:[#allocation2 + $0x3c0] sm:$0xff]
        %v1124 = vld [vmem:[#allocation2 + $0x3c8] sm:$0xff]
        %v1125 = vld [vmem:[#allocation2 + $0x3d0] sm:$0xff]
        %v1126 = vld [vmem:[#allocation2 + $0x3d8] sm:$0xff]
        %v1127 = vld [vmem:[#allocation2 + $0x3e0] sm:$0xff]
        %v1128 = vld [vmem:[#allocation2 + $0x3e8] sm:$0xff]
        %v1129 = vld [vmem:[#allocation2 + $0x3f0] sm:$0xff]
        %v1130 = vld [vmem:[#allocation2 + $0x3f8] sm:$0xff]
        %v1131 = vld [vmem:[%s4] sm:$0xf]
        %v1133 = vperm.slane %v1131, 0
        %v1134 = vperm.slane %v1131, 1
        %v1135 = vperm.slane %v1131, 2
        %v1136 = vperm.slane %v1131, 3
        %v1269 = vunpack.c.l.b16 %v1003
        %v1270 = vunpack.c.h.b16 %v1003
        %v1271 = vunpack.c.l.b16 %v1004
        %v1272 = vunpack.c.h.b16 %v1004
        %v1273 = vunpack.c.l.b16 %v1005
        %v1274 = vunpack.c.h.b16 %v1005
        %v1275 = vunpack.c.l.b16 %v1006
        %v1276 = vunpack.c.h.b16 %v1006
        %v1277 = vunpack.c.l.b16 %v1007
        %v1278 = vunpack.c.h.b16 %v1007
        %v1279 = vunpack.c.l.b16 %v1008
        %v1280 = vunpack.c.h.b16 %v1008
        %v1281 = vunpack.c.l.b16 %v1009
        %v1282 = vunpack.c.h.b16 %v1009
        %v1283 = vunpack.c.l.b16 %v1010
        %v1284 = vunpack.c.h.b16 %v1010
        %v1285 = vunpack.c.l.b16 %v1011
        %v1286 = vunpack.c.h.b16 %v1011
        %v1287 = vunpack.c.l.b16 %v1012
        %v1288 = vunpack.c.h.b16 %v1012
        %v1289 = vunpack.c.l.b16 %v1013
        %v1290 = vunpack.c.h.b16 %v1013
        %v1291 = vunpack.c.l.b16 %v1014
        %v1292 = vunpack.c.h.b16 %v1014
        %v1293 = vunpack.c.l.b16 %v1015
        %v1294 = vunpack.c.h.b16 %v1015
        %v1295 = vunpack.c.l.b16 %v1016
        %v1296 = vunpack.c.h.b16 %v1016
        %v1297 = vunpack.c.l.b16 %v1017
        %v1298 = vunpack.c.h.b16 %v1017
        %v1299 = vunpack.c.l.b16 %v1018
        %v1300 = vunpack.c.h.b16 %v1018
        %v1301 = vunpack.c.l.b16 %v1019
        %v1302 = vunpack.c.h.b16 %v1019
        %v1303 = vunpack.c.l.b16 %v1020
        %v1304 = vunpack.c.h.b16 %v1020
        %v1305 = vunpack.c.l.b16 %v1021
        %v1306 = vunpack.c.h.b16 %v1021
        %v1307 = vunpack.c.l.b16 %v1022
        %v1308 = vunpack.c.h.b16 %v1022
        %v1309 = vunpack.c.l.b16 %v1023
        %v1310 = vunpack.c.h.b16 %v1023
        %v1311 = vunpack.c.l.b16 %v1024
        %v1312 = vunpack.c.h.b16 %v1024
        %v1313 = vunpack.c.l.b16 %v1025
        %v1314 = vunpack.c.h.b16 %v1025
        %v1315 = vunpack.c.l.b16 %v1026
        %v1316 = vunpack.c.h.b16 %v1026
        %v1317 = vunpack.c.l.b16 %v1027
        %v1318 = vunpack.c.h.b16 %v1027
        %v1319 = vunpack.c.l.b16 %v1028
        %v1320 = vunpack.c.h.b16 %v1028
        %v1321 = vunpack.c.l.b16 %v1029
        %v1322 = vunpack.c.h.b16 %v1029
        %v1323 = vunpack.c.l.b16 %v1030
        %v1324 = vunpack.c.h.b16 %v1030
        %v1325 = vunpack.c.l.b16 %v1031
        %v1326 = vunpack.c.h.b16 %v1031
        %v1327 = vunpack.c.l.b16 %v1032
        %v1328 = vunpack.c.h.b16 %v1032
        %v1329 = vunpack.c.l.b16 %v1033
        %v1330 = vunpack.c.h.b16 %v1033
        %v1331 = vunpack.c.l.b16 %v1034
        %v1332 = vunpack.c.h.b16 %v1034
        %v1333 = vunpack.c.l.b16 %v1035
        %v1334 = vunpack.c.h.b16 %v1035
        %v1335 = vunpack.c.l.b16 %v1036
        %v1336 = vunpack.c.h.b16 %v1036
        %v1337 = vunpack.c.l.b16 %v1037
        %v1338 = vunpack.c.h.b16 %v1037
        %v1339 = vunpack.c.l.b16 %v1038
        %v1340 = vunpack.c.h.b16 %v1038
        %v1341 = vunpack.c.l.b16 %v1039
        %v1342 = vunpack.c.h.b16 %v1039
        %v1343 = vunpack.c.l.b16 %v1040
        %v1344 = vunpack.c.h.b16 %v1040
        %v1345 = vunpack.c.l.b16 %v1041
        %v1346 = vunpack.c.h.b16 %v1041
        %v1347 = vunpack.c.l.b16 %v1042
        %v1348 = vunpack.c.h.b16 %v1042
        %v1349 = vunpack.c.l.b16 %v1043
        %v1350 = vunpack.c.h.b16 %v1043
        %v1351 = vunpack.c.l.b16 %v1044
        %v1352 = vunpack.c.h.b16 %v1044
        %v1353 = vunpack.c.l.b16 %v1045
        %v1354 = vunpack.c.h.b16 %v1045
        %v1355 = vunpack.c.l.b16 %v1046
        %v1356 = vunpack.c.h.b16 %v1046
        %v1357 = vunpack.c.l.b16 %v1047
        %v1358 = vunpack.c.h.b16 %v1047
        %v1359 = vunpack.c.l.b16 %v1048
        %v1360 = vunpack.c.h.b16 %v1048
        %v1361 = vunpack.c.l.b16 %v1049
        %v1362 = vunpack.c.h.b16 %v1049
        %v1363 = vunpack.c.l.b16 %v1050
        %v1364 = vunpack.c.h.b16 %v1050
        %v1365 = vunpack.c.l.b16 %v1051
        %v1366 = vunpack.c.h.b16 %v1051
        %v1367 = vunpack.c.l.b16 %v1052
        %v1368 = vunpack.c.h.b16 %v1052
        %v1369 = vunpack.c.l.b16 %v1053
        %v1370 = vunpack.c.h.b16 %v1053
        %v1371 = vunpack.c.l.b16 %v1054
        %v1372 = vunpack.c.h.b16 %v1054
        %v1373 = vunpack.c.l.b16 %v1055
        %v1374 = vunpack.c.h.b16 %v1055
        %v1375 = vunpack.c.l.b16 %v1056
        %v1376 = vunpack.c.h.b16 %v1056
        %v1377 = vunpack.c.l.b16 %v1057
        %v1378 = vunpack.c.h.b16 %v1057
        %v1379 = vunpack.c.l.b16 %v1058
        %v1380 = vunpack.c.h.b16 %v1058
        %v1381 = vunpack.c.l.b16 %v1059
        %v1382 = vunpack.c.h.b16 %v1059
        %v1383 = vunpack.c.l.b16 %v1060
        %v1384 = vunpack.c.h.b16 %v1060
        %v1385 = vunpack.c.l.b16 %v1061
        %v1386 = vunpack.c.h.b16 %v1061
        %v1387 = vunpack.c.l.b16 %v1062
        %v1388 = vunpack.c.h.b16 %v1062
        %v1389 = vunpack.c.l.b16 %v1063
        %v1390 = vunpack.c.h.b16 %v1063
        %v1391 = vunpack.c.l.b16 %v1064
        %v1392 = vunpack.c.h.b16 %v1064
        %v1393 = vunpack.c.l.b16 %v1065
        %v1394 = vunpack.c.h.b16 %v1065
        %v1395 = vunpack.c.l.b16 %v1066
        %v1396 = vunpack.c.h.b16 %v1066
        %v1397 = vunpack.c.l.b16 %v1067
        %v1398 = vunpack.c.h.b16 %v1067
        %v1399 = vunpack.c.l.b16 %v1068
        %v1400 = vunpack.c.h.b16 %v1068
        %v1401 = vunpack.c.l.b16 %v1069
        %v1402 = vunpack.c.h.b16 %v1069
        %v1403 = vunpack.c.l.b16 %v1070
        %v1404 = vunpack.c.h.b16 %v1070
        %v1405 = vunpack.c.l.b16 %v1071
        %v1406 = vunpack.c.h.b16 %v1071
        %v1407 = vunpack.c.l.b16 %v1072
        %v1408 = vunpack.c.h.b16 %v1072
        %v1409 = vunpack.c.l.b16 %v1073
        %v1410 = vunpack.c.h.b16 %v1073
        %v1411 = vunpack.c.l.b16 %v1074
        %v1412 = vunpack.c.h.b16 %v1074
        %v1413 = vunpack.c.l.b16 %v1075
        %v1414 = vunpack.c.h.b16 %v1075
        %v1415 = vunpack.c.l.b16 %v1076
        %v1416 = vunpack.c.h.b16 %v1076
        %v1417 = vunpack.c.l.b16 %v1077
        %v1418 = vunpack.c.h.b16 %v1077
        %v1419 = vunpack.c.l.b16 %v1078
        %v1420 = vunpack.c.h.b16 %v1078
        %v1421 = vunpack.c.l.b16 %v1079
        %v1422 = vunpack.c.h.b16 %v1079
        %v1423 = vunpack.c.l.b16 %v1080
        %v1424 = vunpack.c.h.b16 %v1080
        %v1425 = vunpack.c.l.b16 %v1081
        %v1426 = vunpack.c.h.b16 %v1081
        %v1427 = vunpack.c.l.b16 %v1082
        %v1428 = vunpack.c.h.b16 %v1082
        %v1429 = vunpack.c.l.b16 %v1083
        %v1430 = vunpack.c.h.b16 %v1083
        %v1431 = vunpack.c.l.b16 %v1084
        %v1432 = vunpack.c.h.b16 %v1084
        %v1433 = vunpack.c.l.b16 %v1085
        %v1434 = vunpack.c.h.b16 %v1085
        %v1435 = vunpack.c.l.b16 %v1086
        %v1436 = vunpack.c.h.b16 %v1086
        %v1437 = vunpack.c.l.b16 %v1087
        %v1438 = vunpack.c.h.b16 %v1087
        %v1439 = vunpack.c.l.b16 %v1088
        %v1440 = vunpack.c.h.b16 %v1088
        %v1441 = vunpack.c.l.b16 %v1089
        %v1442 = vunpack.c.h.b16 %v1089
        %v1443 = vunpack.c.l.b16 %v1090
        %v1444 = vunpack.c.h.b16 %v1090
        %v1445 = vunpack.c.l.b16 %v1091
        %v1446 = vunpack.c.h.b16 %v1091
        %v1447 = vunpack.c.l.b16 %v1092
        %v1448 = vunpack.c.h.b16 %v1092
        %v1449 = vunpack.c.l.b16 %v1093
        %v1450 = vunpack.c.h.b16 %v1093
        %v1451 = vunpack.c.l.b16 %v1094
        %v1452 = vunpack.c.h.b16 %v1094
        %v1453 = vunpack.c.l.b16 %v1095
        %v1454 = vunpack.c.h.b16 %v1095
        %v1455 = vunpack.c.l.b16 %v1096
        %v1456 = vunpack.c.h.b16 %v1096
        %v1457 = vunpack.c.l.b16 %v1097
        %v1458 = vunpack.c.h.b16 %v1097
        %v1459 = vunpack.c.l.b16 %v1098
        %v1460 = vunpack.c.h.b16 %v1098
        %v1461 = vunpack.c.l.b16 %v1099
        %v1462 = vunpack.c.h.b16 %v1099
        %v1463 = vunpack.c.l.b16 %v1100
        %v1464 = vunpack.c.h.b16 %v1100
        %v1465 = vunpack.c.l.b16 %v1101
        %v1466 = vunpack.c.h.b16 %v1101
        %v1467 = vunpack.c.l.b16 %v1102
        %v1468 = vunpack.c.h.b16 %v1102
        %v1469 = vunpack.c.l.b16 %v1103
        %v1470 = vunpack.c.h.b16 %v1103
        %v1471 = vunpack.c.l.b16 %v1104
        %v1472 = vunpack.c.h.b16 %v1104
        %v1473 = vunpack.c.l.b16 %v1105
        %v1474 = vunpack.c.h.b16 %v1105
        %v1475 = vunpack.c.l.b16 %v1106
        %v1476 = vunpack.c.h.b16 %v1106
        %v1477 = vunpack.c.l.b16 %v1107
        %v1478 = vunpack.c.h.b16 %v1107
        %v1479 = vunpack.c.l.b16 %v1108
        %v1480 = vunpack.c.h.b16 %v1108
        %v1481 = vunpack.c.l.b16 %v1109
        %v1482 = vunpack.c.h.b16 %v1109
        %v1483 = vunpack.c.l.b16 %v1110
        %v1484 = vunpack.c.h.b16 %v1110
        %v1485 = vunpack.c.l.b16 %v1111
        %v1486 = vunpack.c.h.b16 %v1111
        %v1487 = vunpack.c.l.b16 %v1112
        %v1488 = vunpack.c.h.b16 %v1112
        %v1489 = vunpack.c.l.b16 %v1113
        %v1490 = vunpack.c.h.b16 %v1113
        %v1491 = vunpack.c.l.b16 %v1114
        %v1492 = vunpack.c.h.b16 %v1114
        %v1493 = vunpack.c.l.b16 %v1115
        %v1494 = vunpack.c.h.b16 %v1115
        %v1495 = vunpack.c.l.b16 %v1116
        %v1496 = vunpack.c.h.b16 %v1116
        %v1497 = vunpack.c.l.b16 %v1117
        %v1498 = vunpack.c.h.b16 %v1117
        %v1499 = vunpack.c.l.b16 %v1118
        %v1500 = vunpack.c.h.b16 %v1118
        %v1501 = vunpack.c.l.b16 %v1119
        %v1502 = vunpack.c.h.b16 %v1119
        %v1503 = vunpack.c.l.b16 %v1120
        %v1504 = vunpack.c.h.b16 %v1120
        %v1505 = vunpack.c.l.b16 %v1121
        %v1506 = vunpack.c.h.b16 %v1121
        %v1507 = vunpack.c.l.b16 %v1122
        %v1508 = vunpack.c.h.b16 %v1122
        %v1509 = vunpack.c.l.b16 %v1123
        %v1510 = vunpack.c.h.b16 %v1123
        %v1511 = vunpack.c.l.b16 %v1124
        %v1512 = vunpack.c.h.b16 %v1124
        %v1513 = vunpack.c.l.b16 %v1125
        %v1514 = vunpack.c.h.b16 %v1125
        %v1515 = vunpack.c.l.b16 %v1126
        %v1516 = vunpack.c.h.b16 %v1126
        %v1517 = vunpack.c.l.b16 %v1127
        %v1518 = vunpack.c.h.b16 %v1127
        %v1519 = vunpack.c.l.b16 %v1128
        %v1520 = vunpack.c.h.b16 %v1128
        %v1521 = vunpack.c.l.b16 %v1129
        %v1522 = vunpack.c.h.b16 %v1129
        %v1523 = vunpack.c.l.b16 %v1130
        %v1524 = vunpack.c.h.b16 %v1130
        %v1525 = vpack.c.b16 %v1273, %v1269
        %v1526 = vpack.c.b16 %v1274, %v1270
        %v1527 = vpack.c.b16 %v1275, %v1271
        %v1528 = vpack.c.b16 %v1276, %v1272
        %v1529 = vpack.c.b16 %v1281, %v1277
        %v1530 = vpack.c.b16 %v1282, %v1278
        %v1531 = vpack.c.b16 %v1283, %v1279
        %v1532 = vpack.c.b16 %v1284, %v1280
        %v1533 = vpack.c.b16 %v1289, %v1285
        %v1534 = vpack.c.b16 %v1290, %v1286
        %v1535 = vpack.c.b16 %v1291, %v1287
        %v1536 = vpack.c.b16 %v1292, %v1288
        %v1537 = vpack.c.b16 %v1297, %v1293
        %v1538 = vpack.c.b16 %v1298, %v1294
        %v1539 = vpack.c.b16 %v1299, %v1295
        %v1540 = vpack.c.b16 %v1300, %v1296
        %v1541 = vpack.c.b16 %v1305, %v1301
        %v1542 = vpack.c.b16 %v1306, %v1302
        %v1543 = vpack.c.b16 %v1307, %v1303
        %v1544 = vpack.c.b16 %v1308, %v1304
        %v1545 = vpack.c.b16 %v1313, %v1309
        %v1546 = vpack.c.b16 %v1314, %v1310
        %v1547 = vpack.c.b16 %v1315, %v1311
        %v1548 = vpack.c.b16 %v1316, %v1312
        %v1549 = vpack.c.b16 %v1321, %v1317
        %v1550 = vpack.c.b16 %v1322, %v1318
        %v1551 = vpack.c.b16 %v1323, %v1319
        %v1552 = vpack.c.b16 %v1324, %v1320
        %v1553 = vpack.c.b16 %v1329, %v1325
        %v1554 = vpack.c.b16 %v1330, %v1326
        %v1555 = vpack.c.b16 %v1331, %v1327
        %v1556 = vpack.c.b16 %v1332, %v1328
        %v1557 = vpack.c.b16 %v1337, %v1333
        %v1558 = vpack.c.b16 %v1338, %v1334
        %v1559 = vpack.c.b16 %v1339, %v1335
        %v1560 = vpack.c.b16 %v1340, %v1336
        %v1561 = vpack.c.b16 %v1345, %v1341
        %v1562 = vpack.c.b16 %v1346, %v1342
        %v1563 = vpack.c.b16 %v1347, %v1343
        %v1564 = vpack.c.b16 %v1348, %v1344
        %v1565 = vpack.c.b16 %v1353, %v1349
        %v1566 = vpack.c.b16 %v1354, %v1350
        %v1567 = vpack.c.b16 %v1355, %v1351
        %v1568 = vpack.c.b16 %v1356, %v1352
        %v1569 = vpack.c.b16 %v1361, %v1357
        %v1570 = vpack.c.b16 %v1362, %v1358
        %v1571 = vpack.c.b16 %v1363, %v1359
        %v1572 = vpack.c.b16 %v1364, %v1360
        %v1573 = vpack.c.b16 %v1369, %v1365
        %v1574 = vpack.c.b16 %v1370, %v1366
        %v1575 = vpack.c.b16 %v1371, %v1367
        %v1576 = vpack.c.b16 %v1372, %v1368
        %v1577 = vpack.c.b16 %v1377, %v1373
        %v1578 = vpack.c.b16 %v1378, %v1374
        %v1579 = vpack.c.b16 %v1379, %v1375
        %v1580 = vpack.c.b16 %v1380, %v1376
        %v1581 = vpack.c.b16 %v1385, %v1381
        %v1582 = vpack.c.b16 %v1386, %v1382
        %v1583 = vpack.c.b16 %v1387, %v1383
        %v1584 = vpack.c.b16 %v1388, %v1384
        %v1585 = vpack.c.b16 %v1393, %v1389
        %v1586 = vpack.c.b16 %v1394, %v1390
        %v1587 = vpack.c.b16 %v1395, %v1391
        %v1588 = vpack.c.b16 %v1396, %v1392
        %v1589 = vpack.c.b16 %v1401, %v1397
        %v1590 = vpack.c.b16 %v1402, %v1398
        %v1591 = vpack.c.b16 %v1403, %v1399
        %v1592 = vpack.c.b16 %v1404, %v1400
        %v1593 = vpack.c.b16 %v1409, %v1405
        %v1594 = vpack.c.b16 %v1410, %v1406
        %v1595 = vpack.c.b16 %v1411, %v1407
        %v1596 = vpack.c.b16 %v1412, %v1408
        %v1597 = vpack.c.b16 %v1417, %v1413
        %v1598 = vpack.c.b16 %v1418, %v1414
        %v1599 = vpack.c.b16 %v1419, %v1415
        %v1600 = vpack.c.b16 %v1420, %v1416
        %v1601 = vpack.c.b16 %v1425, %v1421
        %v1602 = vpack.c.b16 %v1426, %v1422
        %v1603 = vpack.c.b16 %v1427, %v1423
        %v1604 = vpack.c.b16 %v1428, %v1424
        %v1605 = vpack.c.b16 %v1433, %v1429
        %v1606 = vpack.c.b16 %v1434, %v1430
        %v1607 = vpack.c.b16 %v1435, %v1431
        %v1608 = vpack.c.b16 %v1436, %v1432
        %v1609 = vpack.c.b16 %v1441, %v1437
        %v1610 = vpack.c.b16 %v1442, %v1438
        %v1611 = vpack.c.b16 %v1443, %v1439
        %v1612 = vpack.c.b16 %v1444, %v1440
        %v1613 = vpack.c.b16 %v1449, %v1445
        %v1614 = vpack.c.b16 %v1450, %v1446
        %v1615 = vpack.c.b16 %v1451, %v1447
        %v1616 = vpack.c.b16 %v1452, %v1448
        %v1617 = vpack.c.b16 %v1457, %v1453
        %v1618 = vpack.c.b16 %v1458, %v1454
        %v1619 = vpack.c.b16 %v1459, %v1455
        %v1620 = vpack.c.b16 %v1460, %v1456
        %v1621 = vpack.c.b16 %v1465, %v1461
        %v1622 = vpack.c.b16 %v1466, %v1462
        %v1623 = vpack.c.b16 %v1467, %v1463
        %v1624 = vpack.c.b16 %v1468, %v1464
        %v1625 = vpack.c.b16 %v1473, %v1469
        %v1626 = vpack.c.b16 %v1474, %v1470
        %v1627 = vpack.c.b16 %v1475, %v1471
        %v1628 = vpack.c.b16 %v1476, %v1472
        %v1629 = vpack.c.b16 %v1481, %v1477
        %v1630 = vpack.c.b16 %v1482, %v1478
        %v1631 = vpack.c.b16 %v1483, %v1479
        %v1632 = vpack.c.b16 %v1484, %v1480
        %v1633 = vpack.c.b16 %v1489, %v1485
        %v1634 = vpack.c.b16 %v1490, %v1486
        %v1635 = vpack.c.b16 %v1491, %v1487
        %v1636 = vpack.c.b16 %v1492, %v1488
        %v1637 = vpack.c.b16 %v1497, %v1493
        %v1638 = vpack.c.b16 %v1498, %v1494
        %v1639 = vpack.c.b16 %v1499, %v1495
        %v1640 = vpack.c.b16 %v1500, %v1496
        %v1641 = vpack.c.b16 %v1505, %v1501
        %v1642 = vpack.c.b16 %v1506, %v1502
        %v1643 = vpack.c.b16 %v1507, %v1503
        %v1644 = vpack.c.b16 %v1508, %v1504
        %v1645 = vpack.c.b16 %v1513, %v1509
        %v1646 = vpack.c.b16 %v1514, %v1510
        %v1647 = vpack.c.b16 %v1515, %v1511
        %v1648 = vpack.c.b16 %v1516, %v1512
        %v1649 = vpack.c.b16 %v1521, %v1517
        %v1650 = vpack.c.b16 %v1522, %v1518
        %v1651 = vpack.c.b16 %v1523, %v1519
        %v1652 = vpack.c.b16 %v1524, %v1520
        %1781 = vmatpush.bf16.msra.mxu0 %v1553
        %1782 = vmatpush.bf16.msra.mxu0 %v1549
        %1783 = vmatpush.bf16.msra.mxu0 %v1545
        %1784 = vmatpush.bf16.msra.mxu0 %v1541
        %1785 = vmatpush.bf16.msra.mxu0 %v1537
        %1786 = vmatpush.bf16.msra.mxu0 %v1533
        %1787 = vmatpush.bf16.msra.mxu0 %v1529
        %1788 = vmatpush.bf16.msra.mxu0 %v1525
        %1789 = vmatmul.bf16.gmra.mxu0 %v939
        %v1790 = vpop.f32.mrf.mxu0
        %v1791 = vadd.f32 %v1133, %v1790
        %v1792 = vpop.f32.mrf.mxu0
        %v1793 = vadd.f32 %v1133, %v1792
        %1794 = vmatmul.bf16.gmra.mxu0 %v943
        %v1795 = vpop.f32.mrf.mxu0
        %v1796 = vadd.f32 %v1133, %v1795
        %v1797 = vpop.f32.mrf.mxu0
        %v1798 = vadd.f32 %v1133, %v1797
        %1799 = vmatmul.bf16.gmra.mxu0 %v947
        %v1800 = vpop.f32.mrf.mxu0
        %v1801 = vadd.f32 %v1133, %v1800
        %v1802 = vpop.f32.mrf.mxu0
        %v1803 = vadd.f32 %v1133, %v1802
        %1804 = vmatmul.bf16.gmra.mxu0 %v951
        %v1805 = vpop.f32.mrf.mxu0
        %v1806 = vadd.f32 %v1133, %v1805
        %v1807 = vpop.f32.mrf.mxu0
        %v1808 = vadd.f32 %v1133, %v1807
        %1809 = vmatmul.bf16.gmra.mxu0 %v955
        %v1810 = vpop.f32.mrf.mxu0
        %v1811 = vadd.f32 %v1133, %v1810
        %v1812 = vpop.f32.mrf.mxu0
        %v1813 = vadd.f32 %v1133, %v1812
        %1814 = vmatmul.bf16.gmra.mxu0 %v959
        %v1815 = vpop.f32.mrf.mxu0
        %v1816 = vadd.f32 %v1133, %v1815
        %v1817 = vpop.f32.mrf.mxu0
        %v1818 = vadd.f32 %v1133, %v1817
        %1819 = vmatmul.bf16.gmra.mxu0 %v963
        %v1820 = vpop.f32.mrf.mxu0
        %v1821 = vadd.f32 %v1133, %v1820
        %v1822 = vpop.f32.mrf.mxu0
        %v1823 = vadd.f32 %v1133, %v1822
        %1824 = vmatmul.bf16.gmra.mxu0 %v967
        %v1825 = vpop.f32.mrf.mxu0
        %v1826 = vadd.f32 %v1133, %v1825
        %v1827 = vpop.f32.mrf.mxu0
        %v1828 = vadd.f32 %v1133, %v1827
        %1829 = vmatmul.bf16.gmra.mxu0 %v971
        %v1830 = vpop.f32.mrf.mxu0
        %v1831 = vadd.f32 %v1133, %v1830
        %v1832 = vpop.f32.mrf.mxu0
        %v1833 = vadd.f32 %v1133, %v1832
        %1834 = vmatmul.bf16.gmra.mxu0 %v975
        %v1835 = vpop.f32.mrf.mxu0
        %v1836 = vadd.f32 %v1133, %v1835
        %v1837 = vpop.f32.mrf.mxu0
        %v1838 = vadd.f32 %v1133, %v1837
        %1839 = vmatmul.bf16.gmra.mxu0 %v979
        %v1840 = vpop.f32.mrf.mxu0
        %v1841 = vadd.f32 %v1133, %v1840
        %v1842 = vpop.f32.mrf.mxu0
        %v1843 = vadd.f32 %v1133, %v1842
        %1844 = vmatmul.bf16.gmra.mxu0 %v983
        %v1845 = vpop.f32.mrf.mxu0
        %v1846 = vadd.f32 %v1133, %v1845
        %v1847 = vpop.f32.mrf.mxu0
        %v1848 = vadd.f32 %v1133, %v1847
        %1849 = vmatmul.bf16.gmra.mxu0 %v987
        %v1850 = vpop.f32.mrf.mxu0
        %v1851 = vadd.f32 %v1133, %v1850
        %v1852 = vpop.f32.mrf.mxu0
        %v1853 = vadd.f32 %v1133, %v1852
        %1854 = vmatmul.bf16.gmra.mxu0 %v991
        %v1855 = vpop.f32.mrf.mxu0
        %v1856 = vadd.f32 %v1133, %v1855
        %v1857 = vpop.f32.mrf.mxu0
        %v1858 = vadd.f32 %v1133, %v1857
        %1859 = vmatmul.bf16.gmra.mxu0 %v995
        %v1860 = vpop.f32.mrf.mxu0
        %v1861 = vadd.f32 %v1133, %v1860
        %v1862 = vpop.f32.mrf.mxu0
        %v1863 = vadd.f32 %v1133, %v1862
        %1864 = vmatmul.bf16.gmra.mxu0 %v999
        %v1865 = vpop.f32.mrf.mxu0
        %v1866 = vadd.f32 %v1133, %v1865
        %v1867 = vpop.f32.mrf.mxu0
        %v1868 = vadd.f32 %v1133, %v1867
        %1869 = vdwg.mxu0
        %1870 = vmatpush.bf16.msra.mxu0 %v1585
        %1871 = vmatpush.bf16.msra.mxu0 %v1581
        %1872 = vmatpush.bf16.msra.mxu0 %v1577
        %1873 = vmatpush.bf16.msra.mxu0 %v1573
        %1874 = vmatpush.bf16.msra.mxu0 %v1569
        %1875 = vmatpush.bf16.msra.mxu0 %v1565
        %1876 = vmatpush.bf16.msra.mxu0 %v1561
        %1877 = vmatpush.bf16.msra.mxu0 %v1557
        %1878 = vmatmul.bf16.gmra.mxu0 %v940
        %v1879 = vpop.f32.mrf.mxu0
        %v1880 = vadd.f32 %v1791, %v1879
        %v1881 = vpop.f32.mrf.mxu0
        %v1882 = vadd.f32 %v1793, %v1881
        %1883 = vmatmul.bf16.gmra.mxu0 %v944
        %v1884 = vpop.f32.mrf.mxu0
        %v1885 = vadd.f32 %v1796, %v1884
        %v1886 = vpop.f32.mrf.mxu0
        %v1887 = vadd.f32 %v1798, %v1886
        %1888 = vmatmul.bf16.gmra.mxu0 %v948
        %v1889 = vpop.f32.mrf.mxu0
        %v1890 = vadd.f32 %v1801, %v1889
        %v1891 = vpop.f32.mrf.mxu0
        %v1892 = vadd.f32 %v1803, %v1891
        %1893 = vmatmul.bf16.gmra.mxu0 %v952
        %v1894 = vpop.f32.mrf.mxu0
        %v1895 = vadd.f32 %v1806, %v1894
        %v1896 = vpop.f32.mrf.mxu0
        %v1897 = vadd.f32 %v1808, %v1896
        %1898 = vmatmul.bf16.gmra.mxu0 %v956
        %v1899 = vpop.f32.mrf.mxu0
        %v1900 = vadd.f32 %v1811, %v1899
        %v1901 = vpop.f32.mrf.mxu0
        %v1902 = vadd.f32 %v1813, %v1901
        %1903 = vmatmul.bf16.gmra.mxu0 %v960
        %v1904 = vpop.f32.mrf.mxu0
        %v1905 = vadd.f32 %v1816, %v1904
        %v1906 = vpop.f32.mrf.mxu0
        %v1907 = vadd.f32 %v1818, %v1906
        %1908 = vmatmul.bf16.gmra.mxu0 %v964
        %v1909 = vpop.f32.mrf.mxu0
        %v1910 = vadd.f32 %v1821, %v1909
        %v1911 = vpop.f32.mrf.mxu0
        %v1912 = vadd.f32 %v1823, %v1911
        %1913 = vmatmul.bf16.gmra.mxu0 %v968
        %v1914 = vpop.f32.mrf.mxu0
        %v1915 = vadd.f32 %v1826, %v1914
        %v1916 = vpop.f32.mrf.mxu0
        %v1917 = vadd.f32 %v1828, %v1916
        %1918 = vmatmul.bf16.gmra.mxu0 %v972
        %v1919 = vpop.f32.mrf.mxu0
        %v1920 = vadd.f32 %v1831, %v1919
        %v1921 = vpop.f32.mrf.mxu0
        %v1922 = vadd.f32 %v1833, %v1921
        %1923 = vmatmul.bf16.gmra.mxu0 %v976
        %v1924 = vpop.f32.mrf.mxu0
        %v1925 = vadd.f32 %v1836, %v1924
        %v1926 = vpop.f32.mrf.mxu0
        %v1927 = vadd.f32 %v1838, %v1926
        %1928 = vmatmul.bf16.gmra.mxu0 %v980
        %v1929 = vpop.f32.mrf.mxu0
        %v1930 = vadd.f32 %v1841, %v1929
        %v1931 = vpop.f32.mrf.mxu0
        %v1932 = vadd.f32 %v1843, %v1931
        %1933 = vmatmul.bf16.gmra.mxu0 %v984
        %v1934 = vpop.f32.mrf.mxu0
        %v1935 = vadd.f32 %v1846, %v1934
        %v1936 = vpop.f32.mrf.mxu0
        %v1937 = vadd.f32 %v1848, %v1936
        %1938 = vmatmul.bf16.gmra.mxu0 %v988
        %v1939 = vpop.f32.mrf.mxu0
        %v1940 = vadd.f32 %v1851, %v1939
        %v1941 = vpop.f32.mrf.mxu0
        %v1942 = vadd.f32 %v1853, %v1941
        %1943 = vmatmul.bf16.gmra.mxu0 %v992
        %v1944 = vpop.f32.mrf.mxu0
        %v1945 = vadd.f32 %v1856, %v1944
        %v1946 = vpop.f32.mrf.mxu0
        %v1947 = vadd.f32 %v1858, %v1946
        %1948 = vmatmul.bf16.gmra.mxu0 %v996
        %v1949 = vpop.f32.mrf.mxu0
        %v1950 = vadd.f32 %v1861, %v1949
        %v1951 = vpop.f32.mrf.mxu0
        %v1952 = vadd.f32 %v1863, %v1951
        %1953 = vmatmul.bf16.gmra.mxu0 %v1000
        %v1954 = vpop.f32.mrf.mxu0
        %v1955 = vadd.f32 %v1866, %v1954
        %v1956 = vpop.f32.mrf.mxu0
        %v1957 = vadd.f32 %v1868, %v1956
        %1958 = vdwg.mxu0
        %1959 = vmatpush.bf16.msra.mxu0 %v1617
        %1960 = vmatpush.bf16.msra.mxu0 %v1613
        %1961 = vmatpush.bf16.msra.mxu0 %v1609
        %1962 = vmatpush.bf16.msra.mxu0 %v1605
        %1963 = vmatpush.bf16.msra.mxu0 %v1601
        %1964 = vmatpush.bf16.msra.mxu0 %v1597
        %1965 = vmatpush.bf16.msra.mxu0 %v1593
        %1966 = vmatpush.bf16.msra.mxu0 %v1589
        %1967 = vmatmul.bf16.gmra.mxu0 %v941
        %v1968 = vpop.f32.mrf.mxu0
        %v1969 = vadd.f32 %v1880, %v1968
        %v1970 = vpop.f32.mrf.mxu0
        %v1971 = vadd.f32 %v1882, %v1970
        %1972 = vmatmul.bf16.gmra.mxu0 %v945
        %v1973 = vpop.f32.mrf.mxu0
        %v1974 = vadd.f32 %v1885, %v1973
        %v1975 = vpop.f32.mrf.mxu0
        %v1976 = vadd.f32 %v1887, %v1975
        %1977 = vmatmul.bf16.gmra.mxu0 %v949
        %v1978 = vpop.f32.mrf.mxu0
        %v1979 = vadd.f32 %v1890, %v1978
        %v1980 = vpop.f32.mrf.mxu0
        %v1981 = vadd.f32 %v1892, %v1980
        %1982 = vmatmul.bf16.gmra.mxu0 %v953
        %v1983 = vpop.f32.mrf.mxu0
        %v1984 = vadd.f32 %v1895, %v1983
        %v1985 = vpop.f32.mrf.mxu0
        %v1986 = vadd.f32 %v1897, %v1985
        %1987 = vmatmul.bf16.gmra.mxu0 %v957
        %v1988 = vpop.f32.mrf.mxu0
        %v1989 = vadd.f32 %v1900, %v1988
        %v1990 = vpop.f32.mrf.mxu0
        %v1991 = vadd.f32 %v1902, %v1990
        %1992 = vmatmul.bf16.gmra.mxu0 %v961
        %v1993 = vpop.f32.mrf.mxu0
        %v1994 = vadd.f32 %v1905, %v1993
        %v1995 = vpop.f32.mrf.mxu0
        %v1996 = vadd.f32 %v1907, %v1995
        %1997 = vmatmul.bf16.gmra.mxu0 %v965
        %v1998 = vpop.f32.mrf.mxu0
        %v1999 = vadd.f32 %v1910, %v1998
        %v2000 = vpop.f32.mrf.mxu0
        %v2001 = vadd.f32 %v1912, %v2000
        %2002 = vmatmul.bf16.gmra.mxu0 %v969
        %v2003 = vpop.f32.mrf.mxu0
        %v2004 = vadd.f32 %v1915, %v2003
        %v2005 = vpop.f32.mrf.mxu0
        %v2006 = vadd.f32 %v1917, %v2005
        %2007 = vmatmul.bf16.gmra.mxu0 %v973
        %v2008 = vpop.f32.mrf.mxu0
        %v2009 = vadd.f32 %v1920, %v2008
        %v2010 = vpop.f32.mrf.mxu0
        %v2011 = vadd.f32 %v1922, %v2010
        %2012 = vmatmul.bf16.gmra.mxu0 %v977
        %v2013 = vpop.f32.mrf.mxu0
        %v2014 = vadd.f32 %v1925, %v2013
        %v2015 = vpop.f32.mrf.mxu0
        %v2016 = vadd.f32 %v1927, %v2015
        %2017 = vmatmul.bf16.gmra.mxu0 %v981
        %v2018 = vpop.f32.mrf.mxu0
        %v2019 = vadd.f32 %v1930, %v2018
        %v2020 = vpop.f32.mrf.mxu0
        %v2021 = vadd.f32 %v1932, %v2020
        %2022 = vmatmul.bf16.gmra.mxu0 %v985
        %v2023 = vpop.f32.mrf.mxu0
        %v2024 = vadd.f32 %v1935, %v2023
        %v2025 = vpop.f32.mrf.mxu0
        %v2026 = vadd.f32 %v1937, %v2025
        %2027 = vmatmul.bf16.gmra.mxu0 %v989
        %v2028 = vpop.f32.mrf.mxu0
        %v2029 = vadd.f32 %v1940, %v2028
        %v2030 = vpop.f32.mrf.mxu0
        %v2031 = vadd.f32 %v1942, %v2030
        %2032 = vmatmul.bf16.gmra.mxu0 %v993
        %v2033 = vpop.f32.mrf.mxu0
        %v2034 = vadd.f32 %v1945, %v2033
        %v2035 = vpop.f32.mrf.mxu0
        %v2036 = vadd.f32 %v1947, %v2035
        %2037 = vmatmul.bf16.gmra.mxu0 %v997
        %v2038 = vpop.f32.mrf.mxu0
        %v2039 = vadd.f32 %v1950, %v2038
        %v2040 = vpop.f32.mrf.mxu0
        %v2041 = vadd.f32 %v1952, %v2040
        %2042 = vmatmul.bf16.gmra.mxu0 %v1001
        %v2043 = vpop.f32.mrf.mxu0
        %v2044 = vadd.f32 %v1955, %v2043
        %v2045 = vpop.f32.mrf.mxu0
        %v2046 = vadd.f32 %v1957, %v2045
        %2047 = vdwg.mxu0
        %2048 = vmatpush.bf16.msra.mxu0 %v1649
        %2049 = vmatpush.bf16.msra.mxu0 %v1645
        %2050 = vmatpush.bf16.msra.mxu0 %v1641
        %2051 = vmatpush.bf16.msra.mxu0 %v1637
        %2052 = vmatpush.bf16.msra.mxu0 %v1633
        %2053 = vmatpush.bf16.msra.mxu0 %v1629
        %2054 = vmatpush.bf16.msra.mxu0 %v1625
        %2055 = vmatpush.bf16.msra.mxu0 %v1621
        %2056 = vmatmul.bf16.gmra.mxu0 %v942
        %v2057 = vpop.f32.mrf.mxu0
        %v2058 = vadd.f32 %v1969, %v2057
        %v2059 = vpop.f32.mrf.mxu0
        %v2060 = vadd.f32 %v1971, %v2059
        %2061 = vmatmul.bf16.gmra.mxu0 %v946
        %v2062 = vpop.f32.mrf.mxu0
        %v2063 = vadd.f32 %v1974, %v2062
        %v2064 = vpop.f32.mrf.mxu0
        %v2065 = vadd.f32 %v1976, %v2064
        %2066 = vmatmul.bf16.gmra.mxu0 %v950
        %v2067 = vpop.f32.mrf.mxu0
        %v2068 = vadd.f32 %v1979, %v2067
        %v2069 = vpop.f32.mrf.mxu0
        %v2070 = vadd.f32 %v1981, %v2069
        %2071 = vmatmul.bf16.gmra.mxu0 %v954
        %v2072 = vpop.f32.mrf.mxu0
        %v2073 = vadd.f32 %v1984, %v2072
        %v2074 = vpop.f32.mrf.mxu0
        %v2075 = vadd.f32 %v1986, %v2074
        %2076 = vmatmul.bf16.gmra.mxu0 %v958
        %v2077 = vpop.f32.mrf.mxu0
        %v2078 = vadd.f32 %v1989, %v2077
        %v2079 = vpop.f32.mrf.mxu0
        %v2080 = vadd.f32 %v1991, %v2079
        %2081 = vmatmul.bf16.gmra.mxu0 %v962
        %v2082 = vpop.f32.mrf.mxu0
        %v2083 = vadd.f32 %v1994, %v2082
        %v2084 = vpop.f32.mrf.mxu0
        %v2085 = vadd.f32 %v1996, %v2084
        %2086 = vmatmul.bf16.gmra.mxu0 %v966
        %v2087 = vpop.f32.mrf.mxu0
        %v2088 = vadd.f32 %v1999, %v2087
        %v2089 = vpop.f32.mrf.mxu0
        %v2090 = vadd.f32 %v2001, %v2089
        %2091 = vmatmul.bf16.gmra.mxu0 %v970
        %v2092 = vpop.f32.mrf.mxu0
        %v2093 = vadd.f32 %v2004, %v2092
        %v2094 = vpop.f32.mrf.mxu0
        %v2095 = vadd.f32 %v2006, %v2094
        %2096 = vmatmul.bf16.gmra.mxu0 %v974
        %v2097 = vpop.f32.mrf.mxu0
        %v2098 = vadd.f32 %v2009, %v2097
        %v2099 = vpop.f32.mrf.mxu0
        %v2100 = vadd.f32 %v2011, %v2099
        %2101 = vmatmul.bf16.gmra.mxu0 %v978
        %v2102 = vpop.f32.mrf.mxu0
        %v2103 = vadd.f32 %v2014, %v2102
        %v2104 = vpop.f32.mrf.mxu0
        %v2105 = vadd.f32 %v2016, %v2104
        %2106 = vmatmul.bf16.gmra.mxu0 %v982
        %v2107 = vpop.f32.mrf.mxu0
        %v2108 = vadd.f32 %v2019, %v2107
        %v2109 = vpop.f32.mrf.mxu0
        %v2110 = vadd.f32 %v2021, %v2109
        %2111 = vmatmul.bf16.gmra.mxu0 %v986
        %v2112 = vpop.f32.mrf.mxu0
        %v2113 = vadd.f32 %v2024, %v2112
        %v2114 = vpop.f32.mrf.mxu0
        %v2115 = vadd.f32 %v2026, %v2114
        %2116 = vmatmul.bf16.gmra.mxu0 %v990
        %v2117 = vpop.f32.mrf.mxu0
        %v2118 = vadd.f32 %v2029, %v2117
        %v2119 = vpop.f32.mrf.mxu0
        %v2120 = vadd.f32 %v2031, %v2119
        %2121 = vmatmul.bf16.gmra.mxu0 %v994
        %v2122 = vpop.f32.mrf.mxu0
        %v2123 = vadd.f32 %v2034, %v2122
        %v2124 = vpop.f32.mrf.mxu0
        %v2125 = vadd.f32 %v2036, %v2124
        %2126 = vmatmul.bf16.gmra.mxu0 %v998
        %v2127 = vpop.f32.mrf.mxu0
        %v2128 = vadd.f32 %v2039, %v2127
        %v2129 = vpop.f32.mrf.mxu0
        %v2130 = vadd.f32 %v2041, %v2129
        %2131 = vmatmul.bf16.gmra.mxu0 %v1002
        %v2132 = vpop.f32.mrf.mxu0
        %v2133 = vadd.f32 %v2044, %v2132
        %v2134 = vpop.f32.mrf.mxu0
        %v2135 = vadd.f32 %v2046, %v2134
        %2136 = vdwg.mxu0
        %2137 = vmatpush.bf16.msra.mxu0 %v1554
        %2138 = vmatpush.bf16.msra.mxu0 %v1550
        %2139 = vmatpush.bf16.msra.mxu0 %v1546
        %2140 = vmatpush.bf16.msra.mxu0 %v1542
        %2141 = vmatpush.bf16.msra.mxu0 %v1538
        %2142 = vmatpush.bf16.msra.mxu0 %v1534
        %2143 = vmatpush.bf16.msra.mxu0 %v1530
        %2144 = vmatpush.bf16.msra.mxu0 %v1526
        %2145 = vmatmul.bf16.gmra.mxu0 %v939
        %v2146 = vpop.f32.mrf.mxu0
        %v2147 = vadd.f32 %v1134, %v2146
        %v2148 = vpop.f32.mrf.mxu0
        %v2149 = vadd.f32 %v1134, %v2148
        %2150 = vmatmul.bf16.gmra.mxu0 %v943
        %v2151 = vpop.f32.mrf.mxu0
        %v2152 = vadd.f32 %v1134, %v2151
        %v2153 = vpop.f32.mrf.mxu0
        %v2154 = vadd.f32 %v1134, %v2153
        %2155 = vmatmul.bf16.gmra.mxu0 %v947
        %v2156 = vpop.f32.mrf.mxu0
        %v2157 = vadd.f32 %v1134, %v2156
        %v2158 = vpop.f32.mrf.mxu0
        %v2159 = vadd.f32 %v1134, %v2158
        %2160 = vmatmul.bf16.gmra.mxu0 %v951
        %v2161 = vpop.f32.mrf.mxu0
        %v2162 = vadd.f32 %v1134, %v2161
        %v2163 = vpop.f32.mrf.mxu0
        %v2164 = vadd.f32 %v1134, %v2163
        %2165 = vmatmul.bf16.gmra.mxu0 %v955
        %v2166 = vpop.f32.mrf.mxu0
        %v2167 = vadd.f32 %v1134, %v2166
        %v2168 = vpop.f32.mrf.mxu0
        %v2169 = vadd.f32 %v1134, %v2168
        %2170 = vmatmul.bf16.gmra.mxu0 %v959
        %v2171 = vpop.f32.mrf.mxu0
        %v2172 = vadd.f32 %v1134, %v2171
        %v2173 = vpop.f32.mrf.mxu0
        %v2174 = vadd.f32 %v1134, %v2173
        %2175 = vmatmul.bf16.gmra.mxu0 %v963
        %v2176 = vpop.f32.mrf.mxu0
        %v2177 = vadd.f32 %v1134, %v2176
        %v2178 = vpop.f32.mrf.mxu0
        %v2179 = vadd.f32 %v1134, %v2178
        %2180 = vmatmul.bf16.gmra.mxu0 %v967
        %v2181 = vpop.f32.mrf.mxu0
        %v2182 = vadd.f32 %v1134, %v2181
        %v2183 = vpop.f32.mrf.mxu0
        %v2184 = vadd.f32 %v1134, %v2183
        %2185 = vmatmul.bf16.gmra.mxu0 %v971
        %v2186 = vpop.f32.mrf.mxu0
        %v2187 = vadd.f32 %v1134, %v2186
        %v2188 = vpop.f32.mrf.mxu0
        %v2189 = vadd.f32 %v1134, %v2188
        %2190 = vmatmul.bf16.gmra.mxu0 %v975
        %v2191 = vpop.f32.mrf.mxu0
        %v2192 = vadd.f32 %v1134, %v2191
        %v2193 = vpop.f32.mrf.mxu0
        %v2194 = vadd.f32 %v1134, %v2193
        %2195 = vmatmul.bf16.gmra.mxu0 %v979
        %v2196 = vpop.f32.mrf.mxu0
        %v2197 = vadd.f32 %v1134, %v2196
        %v2198 = vpop.f32.mrf.mxu0
        %v2199 = vadd.f32 %v1134, %v2198
        %2200 = vmatmul.bf16.gmra.mxu0 %v983
        %v2201 = vpop.f32.mrf.mxu0
        %v2202 = vadd.f32 %v1134, %v2201
        %v2203 = vpop.f32.mrf.mxu0
        %v2204 = vadd.f32 %v1134, %v2203
        %2205 = vmatmul.bf16.gmra.mxu0 %v987
        %v2206 = vpop.f32.mrf.mxu0
        %v2207 = vadd.f32 %v1134, %v2206
        %v2208 = vpop.f32.mrf.mxu0
        %v2209 = vadd.f32 %v1134, %v2208
        %2210 = vmatmul.bf16.gmra.mxu0 %v991
        %v2211 = vpop.f32.mrf.mxu0
        %v2212 = vadd.f32 %v1134, %v2211
        %v2213 = vpop.f32.mrf.mxu0
        %v2214 = vadd.f32 %v1134, %v2213
        %2215 = vmatmul.bf16.gmra.mxu0 %v995
        %v2216 = vpop.f32.mrf.mxu0
        %v2217 = vadd.f32 %v1134, %v2216
        %v2218 = vpop.f32.mrf.mxu0
        %v2219 = vadd.f32 %v1134, %v2218
        %2220 = vmatmul.bf16.gmra.mxu0 %v999
        %v2221 = vpop.f32.mrf.mxu0
        %v2222 = vadd.f32 %v1134, %v2221
        %v2223 = vpop.f32.mrf.mxu0
        %v2224 = vadd.f32 %v1134, %v2223
        %2225 = vdwg.mxu0
        %2226 = vmatpush.bf16.msra.mxu0 %v1586
        %2227 = vmatpush.bf16.msra.mxu0 %v1582
        %2228 = vmatpush.bf16.msra.mxu0 %v1578
        %2229 = vmatpush.bf16.msra.mxu0 %v1574
        %2230 = vmatpush.bf16.msra.mxu0 %v1570
        %2231 = vmatpush.bf16.msra.mxu0 %v1566
        %2232 = vmatpush.bf16.msra.mxu0 %v1562
        %2233 = vmatpush.bf16.msra.mxu0 %v1558
        %2234 = vmatmul.bf16.gmra.mxu0 %v940
        %v2235 = vpop.f32.mrf.mxu0
        %v2236 = vadd.f32 %v2147, %v2235
        %v2237 = vpop.f32.mrf.mxu0
        %v2238 = vadd.f32 %v2149, %v2237
        %2239 = vmatmul.bf16.gmra.mxu0 %v944
        %v2240 = vpop.f32.mrf.mxu0
        %v2241 = vadd.f32 %v2152, %v2240
        %v2242 = vpop.f32.mrf.mxu0
        %v2243 = vadd.f32 %v2154, %v2242
        %2244 = vmatmul.bf16.gmra.mxu0 %v948
        %v2245 = vpop.f32.mrf.mxu0
        %v2246 = vadd.f32 %v2157, %v2245
        %v2247 = vpop.f32.mrf.mxu0
        %v2248 = vadd.f32 %v2159, %v2247
        %2249 = vmatmul.bf16.gmra.mxu0 %v952
        %v2250 = vpop.f32.mrf.mxu0
        %v2251 = vadd.f32 %v2162, %v2250
        %v2252 = vpop.f32.mrf.mxu0
        %v2253 = vadd.f32 %v2164, %v2252
        %2254 = vmatmul.bf16.gmra.mxu0 %v956
        %v2255 = vpop.f32.mrf.mxu0
        %v2256 = vadd.f32 %v2167, %v2255
        %v2257 = vpop.f32.mrf.mxu0
        %v2258 = vadd.f32 %v2169, %v2257
        %2259 = vmatmul.bf16.gmra.mxu0 %v960
        %v2260 = vpop.f32.mrf.mxu0
        %v2261 = vadd.f32 %v2172, %v2260
        %v2262 = vpop.f32.mrf.mxu0
        %v2263 = vadd.f32 %v2174, %v2262
        %2264 = vmatmul.bf16.gmra.mxu0 %v964
        %v2265 = vpop.f32.mrf.mxu0
        %v2266 = vadd.f32 %v2177, %v2265
        %v2267 = vpop.f32.mrf.mxu0
        %v2268 = vadd.f32 %v2179, %v2267
        %2269 = vmatmul.bf16.gmra.mxu0 %v968
        %v2270 = vpop.f32.mrf.mxu0
        %v2271 = vadd.f32 %v2182, %v2270
        %v2272 = vpop.f32.mrf.mxu0
        %v2273 = vadd.f32 %v2184, %v2272
        %2274 = vmatmul.bf16.gmra.mxu0 %v972
        %v2275 = vpop.f32.mrf.mxu0
        %v2276 = vadd.f32 %v2187, %v2275
        %v2277 = vpop.f32.mrf.mxu0
        %v2278 = vadd.f32 %v2189, %v2277
        %2279 = vmatmul.bf16.gmra.mxu0 %v976
        %v2280 = vpop.f32.mrf.mxu0
        %v2281 = vadd.f32 %v2192, %v2280
        %v2282 = vpop.f32.mrf.mxu0
        %v2283 = vadd.f32 %v2194, %v2282
        %2284 = vmatmul.bf16.gmra.mxu0 %v980
        %v2285 = vpop.f32.mrf.mxu0
        %v2286 = vadd.f32 %v2197, %v2285
        %v2287 = vpop.f32.mrf.mxu0
        %v2288 = vadd.f32 %v2199, %v2287
        %2289 = vmatmul.bf16.gmra.mxu0 %v984
        %v2290 = vpop.f32.mrf.mxu0
        %v2291 = vadd.f32 %v2202, %v2290
        %v2292 = vpop.f32.mrf.mxu0
        %v2293 = vadd.f32 %v2204, %v2292
        %2294 = vmatmul.bf16.gmra.mxu0 %v988
        %v2295 = vpop.f32.mrf.mxu0
        %v2296 = vadd.f32 %v2207, %v2295
        %v2297 = vpop.f32.mrf.mxu0
        %v2298 = vadd.f32 %v2209, %v2297
        %2299 = vmatmul.bf16.gmra.mxu0 %v992
        %v2300 = vpop.f32.mrf.mxu0
        %v2301 = vadd.f32 %v2212, %v2300
        %v2302 = vpop.f32.mrf.mxu0
        %v2303 = vadd.f32 %v2214, %v2302
        %2304 = vmatmul.bf16.gmra.mxu0 %v996
        %v2305 = vpop.f32.mrf.mxu0
        %v2306 = vadd.f32 %v2217, %v2305
        %v2307 = vpop.f32.mrf.mxu0
        %v2308 = vadd.f32 %v2219, %v2307
        %2309 = vmatmul.bf16.gmra.mxu0 %v1000
        %v2310 = vpop.f32.mrf.mxu0
        %v2311 = vadd.f32 %v2222, %v2310
        %v2312 = vpop.f32.mrf.mxu0
        %v2313 = vadd.f32 %v2224, %v2312
        %2314 = vdwg.mxu0
        %2315 = vmatpush.bf16.msra.mxu0 %v1618
        %2316 = vmatpush.bf16.msra.mxu0 %v1614
        %2317 = vmatpush.bf16.msra.mxu0 %v1610
        %2318 = vmatpush.bf16.msra.mxu0 %v1606
        %2319 = vmatpush.bf16.msra.mxu0 %v1602
        %2320 = vmatpush.bf16.msra.mxu0 %v1598
        %2321 = vmatpush.bf16.msra.mxu0 %v1594
        %2322 = vmatpush.bf16.msra.mxu0 %v1590
        %2323 = vmatmul.bf16.gmra.mxu0 %v941
        %v2324 = vpop.f32.mrf.mxu0
        %v2325 = vadd.f32 %v2236, %v2324
        %v2326 = vpop.f32.mrf.mxu0
        %v2327 = vadd.f32 %v2238, %v2326
        %2328 = vmatmul.bf16.gmra.mxu0 %v945
        %v2329 = vpop.f32.mrf.mxu0
        %v2330 = vadd.f32 %v2241, %v2329
        %v2331 = vpop.f32.mrf.mxu0
        %v2332 = vadd.f32 %v2243, %v2331
        %2333 = vmatmul.bf16.gmra.mxu0 %v949
        %v2334 = vpop.f32.mrf.mxu0
        %v2335 = vadd.f32 %v2246, %v2334
        %v2336 = vpop.f32.mrf.mxu0
        %v2337 = vadd.f32 %v2248, %v2336
        %2338 = vmatmul.bf16.gmra.mxu0 %v953
        %v2339 = vpop.f32.mrf.mxu0
        %v2340 = vadd.f32 %v2251, %v2339
        %v2341 = vpop.f32.mrf.mxu0
        %v2342 = vadd.f32 %v2253, %v2341
        %2343 = vmatmul.bf16.gmra.mxu0 %v957
        %v2344 = vpop.f32.mrf.mxu0
        %v2345 = vadd.f32 %v2256, %v2344
        %v2346 = vpop.f32.mrf.mxu0
        %v2347 = vadd.f32 %v2258, %v2346
        %2348 = vmatmul.bf16.gmra.mxu0 %v961
        %v2349 = vpop.f32.mrf.mxu0
        %v2350 = vadd.f32 %v2261, %v2349
        %v2351 = vpop.f32.mrf.mxu0
        %v2352 = vadd.f32 %v2263, %v2351
        %2353 = vmatmul.bf16.gmra.mxu0 %v965
        %v2354 = vpop.f32.mrf.mxu0
        %v2355 = vadd.f32 %v2266, %v2354
        %v2356 = vpop.f32.mrf.mxu0
        %v2357 = vadd.f32 %v2268, %v2356
        %2358 = vmatmul.bf16.gmra.mxu0 %v969
        %v2359 = vpop.f32.mrf.mxu0
        %v2360 = vadd.f32 %v2271, %v2359
        %v2361 = vpop.f32.mrf.mxu0
        %v2362 = vadd.f32 %v2273, %v2361
        %2363 = vmatmul.bf16.gmra.mxu0 %v973
        %v2364 = vpop.f32.mrf.mxu0
        %v2365 = vadd.f32 %v2276, %v2364
        %v2366 = vpop.f32.mrf.mxu0
        %v2367 = vadd.f32 %v2278, %v2366
        %2368 = vmatmul.bf16.gmra.mxu0 %v977
        %v2369 = vpop.f32.mrf.mxu0
        %v2370 = vadd.f32 %v2281, %v2369
        %v2371 = vpop.f32.mrf.mxu0
        %v2372 = vadd.f32 %v2283, %v2371
        %2373 = vmatmul.bf16.gmra.mxu0 %v981
        %v2374 = vpop.f32.mrf.mxu0
        %v2375 = vadd.f32 %v2286, %v2374
        %v2376 = vpop.f32.mrf.mxu0
        %v2377 = vadd.f32 %v2288, %v2376
        %2378 = vmatmul.bf16.gmra.mxu0 %v985
        %v2379 = vpop.f32.mrf.mxu0
        %v2380 = vadd.f32 %v2291, %v2379
        %v2381 = vpop.f32.mrf.mxu0
        %v2382 = vadd.f32 %v2293, %v2381
        %2383 = vmatmul.bf16.gmra.mxu0 %v989
        %v2384 = vpop.f32.mrf.mxu0
        %v2385 = vadd.f32 %v2296, %v2384
        %v2386 = vpop.f32.mrf.mxu0
        %v2387 = vadd.f32 %v2298, %v2386
        %2388 = vmatmul.bf16.gmra.mxu0 %v993
        %v2389 = vpop.f32.mrf.mxu0
        %v2390 = vadd.f32 %v2301, %v2389
        %v2391 = vpop.f32.mrf.mxu0
        %v2392 = vadd.f32 %v2303, %v2391
        %2393 = vmatmul.bf16.gmra.mxu0 %v997
        %v2394 = vpop.f32.mrf.mxu0
        %v2395 = vadd.f32 %v2306, %v2394
        %v2396 = vpop.f32.mrf.mxu0
        %v2397 = vadd.f32 %v2308, %v2396
        %2398 = vmatmul.bf16.gmra.mxu0 %v1001
        %v2399 = vpop.f32.mrf.mxu0
        %v2400 = vadd.f32 %v2311, %v2399
        %v2401 = vpop.f32.mrf.mxu0
        %v2402 = vadd.f32 %v2313, %v2401
        %2403 = vdwg.mxu0
        %2404 = vmatpush.bf16.msra.mxu0 %v1650
        %2405 = vmatpush.bf16.msra.mxu0 %v1646
        %2406 = vmatpush.bf16.msra.mxu0 %v1642
        %2407 = vmatpush.bf16.msra.mxu0 %v1638
        %2408 = vmatpush.bf16.msra.mxu0 %v1634
        %2409 = vmatpush.bf16.msra.mxu0 %v1630
        %2410 = vmatpush.bf16.msra.mxu0 %v1626
        %2411 = vmatpush.bf16.msra.mxu0 %v1622
        %2412 = vmatmul.bf16.gmra.mxu0 %v942
        %v2413 = vpop.f32.mrf.mxu0
        %v2414 = vadd.f32 %v2325, %v2413
        %v2415 = vpop.f32.mrf.mxu0
        %v2416 = vadd.f32 %v2327, %v2415
        %2417 = vmatmul.bf16.gmra.mxu0 %v946
        %v2418 = vpop.f32.mrf.mxu0
        %v2419 = vadd.f32 %v2330, %v2418
        %v2420 = vpop.f32.mrf.mxu0
        %v2421 = vadd.f32 %v2332, %v2420
        %2422 = vmatmul.bf16.gmra.mxu0 %v950
        %v2423 = vpop.f32.mrf.mxu0
        %v2424 = vadd.f32 %v2335, %v2423
        %v2425 = vpop.f32.mrf.mxu0
        %v2426 = vadd.f32 %v2337, %v2425
        %2427 = vmatmul.bf16.gmra.mxu0 %v954
        %v2428 = vpop.f32.mrf.mxu0
        %v2429 = vadd.f32 %v2340, %v2428
        %v2430 = vpop.f32.mrf.mxu0
        %v2431 = vadd.f32 %v2342, %v2430
        %2432 = vmatmul.bf16.gmra.mxu0 %v958
        %v2433 = vpop.f32.mrf.mxu0
        %v2434 = vadd.f32 %v2345, %v2433
        %v2435 = vpop.f32.mrf.mxu0
        %v2436 = vadd.f32 %v2347, %v2435
        %2437 = vmatmul.bf16.gmra.mxu0 %v962
        %v2438 = vpop.f32.mrf.mxu0
        %v2439 = vadd.f32 %v2350, %v2438
        %v2440 = vpop.f32.mrf.mxu0
        %v2441 = vadd.f32 %v2352, %v2440
        %2442 = vmatmul.bf16.gmra.mxu0 %v966
        %v2443 = vpop.f32.mrf.mxu0
        %v2444 = vadd.f32 %v2355, %v2443
        %v2445 = vpop.f32.mrf.mxu0
        %v2446 = vadd.f32 %v2357, %v2445
        %2447 = vmatmul.bf16.gmra.mxu0 %v970
        %v2448 = vpop.f32.mrf.mxu0
        %v2449 = vadd.f32 %v2360, %v2448
        %v2450 = vpop.f32.mrf.mxu0
        %v2451 = vadd.f32 %v2362, %v2450
        %2452 = vmatmul.bf16.gmra.mxu0 %v974
        %v2453 = vpop.f32.mrf.mxu0
        %v2454 = vadd.f32 %v2365, %v2453
        %v2455 = vpop.f32.mrf.mxu0
        %v2456 = vadd.f32 %v2367, %v2455
        %2457 = vmatmul.bf16.gmra.mxu0 %v978
        %v2458 = vpop.f32.mrf.mxu0
        %v2459 = vadd.f32 %v2370, %v2458
        %v2460 = vpop.f32.mrf.mxu0
        %v2461 = vadd.f32 %v2372, %v2460
        %2462 = vmatmul.bf16.gmra.mxu0 %v982
        %v2463 = vpop.f32.mrf.mxu0
        %v2464 = vadd.f32 %v2375, %v2463
        %v2465 = vpop.f32.mrf.mxu0
        %v2466 = vadd.f32 %v2377, %v2465
        %2467 = vmatmul.bf16.gmra.mxu0 %v986
        %v2468 = vpop.f32.mrf.mxu0
        %v2469 = vadd.f32 %v2380, %v2468
        %v2470 = vpop.f32.mrf.mxu0
        %v2471 = vadd.f32 %v2382, %v2470
        %2472 = vmatmul.bf16.gmra.mxu0 %v990
        %v2473 = vpop.f32.mrf.mxu0
        %v2474 = vadd.f32 %v2385, %v2473
        %v2475 = vpop.f32.mrf.mxu0
        %v2476 = vadd.f32 %v2387, %v2475
        %2477 = vmatmul.bf16.gmra.mxu0 %v994
        %v2478 = vpop.f32.mrf.mxu0
        %v2479 = vadd.f32 %v2390, %v2478
        %v2480 = vpop.f32.mrf.mxu0
        %v2481 = vadd.f32 %v2392, %v2480
        %2482 = vmatmul.bf16.gmra.mxu0 %v998
        %v2483 = vpop.f32.mrf.mxu0
        %v2484 = vadd.f32 %v2395, %v2483
        %v2485 = vpop.f32.mrf.mxu0
        %v2486 = vadd.f32 %v2397, %v2485
        %2487 = vmatmul.bf16.gmra.mxu0 %v1002
        %v2488 = vpop.f32.mrf.mxu0
        %v2489 = vadd.f32 %v2400, %v2488
        %v2490 = vpop.f32.mrf.mxu0
        %v2491 = vadd.f32 %v2402, %v2490
        %2492 = vdwg.mxu0
        %2493 = vmatpush.bf16.msra.mxu0 %v1555
        %2494 = vmatpush.bf16.msra.mxu0 %v1551
        %2495 = vmatpush.bf16.msra.mxu0 %v1547
        %2496 = vmatpush.bf16.msra.mxu0 %v1543
        %2497 = vmatpush.bf16.msra.mxu0 %v1539
        %2498 = vmatpush.bf16.msra.mxu0 %v1535
        %2499 = vmatpush.bf16.msra.mxu0 %v1531
        %2500 = vmatpush.bf16.msra.mxu0 %v1527
        %2501 = vmatmul.bf16.gmra.mxu0 %v939
        %v2502 = vpop.f32.mrf.mxu0
        %v2503 = vadd.f32 %v1135, %v2502
        %v2504 = vpop.f32.mrf.mxu0
        %v2505 = vadd.f32 %v1135, %v2504
        %2506 = vmatmul.bf16.gmra.mxu0 %v943
        %v2507 = vpop.f32.mrf.mxu0
        %v2508 = vadd.f32 %v1135, %v2507
        %v2509 = vpop.f32.mrf.mxu0
        %v2510 = vadd.f32 %v1135, %v2509
        %2511 = vmatmul.bf16.gmra.mxu0 %v947
        %v2512 = vpop.f32.mrf.mxu0
        %v2513 = vadd.f32 %v1135, %v2512
        %v2514 = vpop.f32.mrf.mxu0
        %v2515 = vadd.f32 %v1135, %v2514
        %2516 = vmatmul.bf16.gmra.mxu0 %v951
        %v2517 = vpop.f32.mrf.mxu0
        %v2518 = vadd.f32 %v1135, %v2517
        %v2519 = vpop.f32.mrf.mxu0
        %v2520 = vadd.f32 %v1135, %v2519
        %2521 = vmatmul.bf16.gmra.mxu0 %v955
        %v2522 = vpop.f32.mrf.mxu0
        %v2523 = vadd.f32 %v1135, %v2522
        %v2524 = vpop.f32.mrf.mxu0
        %v2525 = vadd.f32 %v1135, %v2524
        %2526 = vmatmul.bf16.gmra.mxu0 %v959
        %v2527 = vpop.f32.mrf.mxu0
        %v2528 = vadd.f32 %v1135, %v2527
        %v2529 = vpop.f32.mrf.mxu0
        %v2530 = vadd.f32 %v1135, %v2529
        %2531 = vmatmul.bf16.gmra.mxu0 %v963
        %v2532 = vpop.f32.mrf.mxu0
        %v2533 = vadd.f32 %v1135, %v2532
        %v2534 = vpop.f32.mrf.mxu0
        %v2535 = vadd.f32 %v1135, %v2534
        %2536 = vmatmul.bf16.gmra.mxu0 %v967
        %v2537 = vpop.f32.mrf.mxu0
        %v2538 = vadd.f32 %v1135, %v2537
        %v2539 = vpop.f32.mrf.mxu0
        %v2540 = vadd.f32 %v1135, %v2539
        %2541 = vmatmul.bf16.gmra.mxu0 %v971
        %v2542 = vpop.f32.mrf.mxu0
        %v2543 = vadd.f32 %v1135, %v2542
        %v2544 = vpop.f32.mrf.mxu0
        %v2545 = vadd.f32 %v1135, %v2544
        %2546 = vmatmul.bf16.gmra.mxu0 %v975
        %v2547 = vpop.f32.mrf.mxu0
        %v2548 = vadd.f32 %v1135, %v2547
        %v2549 = vpop.f32.mrf.mxu0
        %v2550 = vadd.f32 %v1135, %v2549
        %2551 = vmatmul.bf16.gmra.mxu0 %v979
        %v2552 = vpop.f32.mrf.mxu0
        %v2553 = vadd.f32 %v1135, %v2552
        %v2554 = vpop.f32.mrf.mxu0
        %v2555 = vadd.f32 %v1135, %v2554
        %2556 = vmatmul.bf16.gmra.mxu0 %v983
        %v2557 = vpop.f32.mrf.mxu0
        %v2558 = vadd.f32 %v1135, %v2557
        %v2559 = vpop.f32.mrf.mxu0
        %v2560 = vadd.f32 %v1135, %v2559
        %2561 = vmatmul.bf16.gmra.mxu0 %v987
        %v2562 = vpop.f32.mrf.mxu0
        %v2563 = vadd.f32 %v1135, %v2562
        %v2564 = vpop.f32.mrf.mxu0
        %v2565 = vadd.f32 %v1135, %v2564
        %2566 = vmatmul.bf16.gmra.mxu0 %v991
        %v2567 = vpop.f32.mrf.mxu0
        %v2568 = vadd.f32 %v1135, %v2567
        %v2569 = vpop.f32.mrf.mxu0
        %v2570 = vadd.f32 %v1135, %v2569
        %2571 = vmatmul.bf16.gmra.mxu0 %v995
        %v2572 = vpop.f32.mrf.mxu0
        %v2573 = vadd.f32 %v1135, %v2572
        %v2574 = vpop.f32.mrf.mxu0
        %v2575 = vadd.f32 %v1135, %v2574
        %2576 = vmatmul.bf16.gmra.mxu0 %v999
        %v2577 = vpop.f32.mrf.mxu0
        %v2578 = vadd.f32 %v1135, %v2577
        %v2579 = vpop.f32.mrf.mxu0
        %v2580 = vadd.f32 %v1135, %v2579
        %2581 = vdwg.mxu0
        %2582 = vmatpush.bf16.msra.mxu0 %v1587
        %2583 = vmatpush.bf16.msra.mxu0 %v1583
        %2584 = vmatpush.bf16.msra.mxu0 %v1579
        %2585 = vmatpush.bf16.msra.mxu0 %v1575
        %2586 = vmatpush.bf16.msra.mxu0 %v1571
        %2587 = vmatpush.bf16.msra.mxu0 %v1567
        %2588 = vmatpush.bf16.msra.mxu0 %v1563
        %2589 = vmatpush.bf16.msra.mxu0 %v1559
        %2590 = vmatmul.bf16.gmra.mxu0 %v940
        %v2591 = vpop.f32.mrf.mxu0
        %v2592 = vadd.f32 %v2503, %v2591
        %v2593 = vpop.f32.mrf.mxu0
        %v2594 = vadd.f32 %v2505, %v2593
        %2595 = vmatmul.bf16.gmra.mxu0 %v944
        %v2596 = vpop.f32.mrf.mxu0
        %v2597 = vadd.f32 %v2508, %v2596
        %v2598 = vpop.f32.mrf.mxu0
        %v2599 = vadd.f32 %v2510, %v2598
        %2600 = vmatmul.bf16.gmra.mxu0 %v948
        %v2601 = vpop.f32.mrf.mxu0
        %v2602 = vadd.f32 %v2513, %v2601
        %v2603 = vpop.f32.mrf.mxu0
        %v2604 = vadd.f32 %v2515, %v2603
        %2605 = vmatmul.bf16.gmra.mxu0 %v952
        %v2606 = vpop.f32.mrf.mxu0
        %v2607 = vadd.f32 %v2518, %v2606
        %v2608 = vpop.f32.mrf.mxu0
        %v2609 = vadd.f32 %v2520, %v2608
        %2610 = vmatmul.bf16.gmra.mxu0 %v956
        %v2611 = vpop.f32.mrf.mxu0
        %v2612 = vadd.f32 %v2523, %v2611
        %v2613 = vpop.f32.mrf.mxu0
        %v2614 = vadd.f32 %v2525, %v2613
        %2615 = vmatmul.bf16.gmra.mxu0 %v960
        %v2616 = vpop.f32.mrf.mxu0
        %v2617 = vadd.f32 %v2528, %v2616
        %v2618 = vpop.f32.mrf.mxu0
        %v2619 = vadd.f32 %v2530, %v2618
        %2620 = vmatmul.bf16.gmra.mxu0 %v964
        %v2621 = vpop.f32.mrf.mxu0
        %v2622 = vadd.f32 %v2533, %v2621
        %v2623 = vpop.f32.mrf.mxu0
        %v2624 = vadd.f32 %v2535, %v2623
        %2625 = vmatmul.bf16.gmra.mxu0 %v968
        %v2626 = vpop.f32.mrf.mxu0
        %v2627 = vadd.f32 %v2538, %v2626
        %v2628 = vpop.f32.mrf.mxu0
        %v2629 = vadd.f32 %v2540, %v2628
        %2630 = vmatmul.bf16.gmra.mxu0 %v972
        %v2631 = vpop.f32.mrf.mxu0
        %v2632 = vadd.f32 %v2543, %v2631
        %v2633 = vpop.f32.mrf.mxu0
        %v2634 = vadd.f32 %v2545, %v2633
        %2635 = vmatmul.bf16.gmra.mxu0 %v976
        %v2636 = vpop.f32.mrf.mxu0
        %v2637 = vadd.f32 %v2548, %v2636
        %v2638 = vpop.f32.mrf.mxu0
        %v2639 = vadd.f32 %v2550, %v2638
        %2640 = vmatmul.bf16.gmra.mxu0 %v980
        %v2641 = vpop.f32.mrf.mxu0
        %v2642 = vadd.f32 %v2553, %v2641
        %v2643 = vpop.f32.mrf.mxu0
        %v2644 = vadd.f32 %v2555, %v2643
        %2645 = vmatmul.bf16.gmra.mxu0 %v984
        %v2646 = vpop.f32.mrf.mxu0
        %v2647 = vadd.f32 %v2558, %v2646
        %v2648 = vpop.f32.mrf.mxu0
        %v2649 = vadd.f32 %v2560, %v2648
        %2650 = vmatmul.bf16.gmra.mxu0 %v988
        %v2651 = vpop.f32.mrf.mxu0
        %v2652 = vadd.f32 %v2563, %v2651
        %v2653 = vpop.f32.mrf.mxu0
        %v2654 = vadd.f32 %v2565, %v2653
        %2655 = vmatmul.bf16.gmra.mxu0 %v992
        %v2656 = vpop.f32.mrf.mxu0
        %v2657 = vadd.f32 %v2568, %v2656
        %v2658 = vpop.f32.mrf.mxu0
        %v2659 = vadd.f32 %v2570, %v2658
        %2660 = vmatmul.bf16.gmra.mxu0 %v996
        %v2661 = vpop.f32.mrf.mxu0
        %v2662 = vadd.f32 %v2573, %v2661
        %v2663 = vpop.f32.mrf.mxu0
        %v2664 = vadd.f32 %v2575, %v2663
        %2665 = vmatmul.bf16.gmra.mxu0 %v1000
        %v2666 = vpop.f32.mrf.mxu0
        %v2667 = vadd.f32 %v2578, %v2666
        %v2668 = vpop.f32.mrf.mxu0
        %v2669 = vadd.f32 %v2580, %v2668
        %2670 = vdwg.mxu0
        %2671 = vmatpush.bf16.msra.mxu0 %v1619
        %2672 = vmatpush.bf16.msra.mxu0 %v1615
        %2673 = vmatpush.bf16.msra.mxu0 %v1611
        %2674 = vmatpush.bf16.msra.mxu0 %v1607
        %2675 = vmatpush.bf16.msra.mxu0 %v1603
        %2676 = vmatpush.bf16.msra.mxu0 %v1599
        %2677 = vmatpush.bf16.msra.mxu0 %v1595
        %2678 = vmatpush.bf16.msra.mxu0 %v1591
        %2679 = vmatmul.bf16.gmra.mxu0 %v941
        %v2680 = vpop.f32.mrf.mxu0
        %v2681 = vadd.f32 %v2592, %v2680
        %v2682 = vpop.f32.mrf.mxu0
        %v2683 = vadd.f32 %v2594, %v2682
        %2684 = vmatmul.bf16.gmra.mxu0 %v945
        %v2685 = vpop.f32.mrf.mxu0
        %v2686 = vadd.f32 %v2597, %v2685
        %v2687 = vpop.f32.mrf.mxu0
        %v2688 = vadd.f32 %v2599, %v2687
        %2689 = vmatmul.bf16.gmra.mxu0 %v949
        %v2690 = vpop.f32.mrf.mxu0
        %v2691 = vadd.f32 %v2602, %v2690
        %v2692 = vpop.f32.mrf.mxu0
        %v2693 = vadd.f32 %v2604, %v2692
        %2694 = vmatmul.bf16.gmra.mxu0 %v953
        %v2695 = vpop.f32.mrf.mxu0
        %v2696 = vadd.f32 %v2607, %v2695
        %v2697 = vpop.f32.mrf.mxu0
        %v2698 = vadd.f32 %v2609, %v2697
        %2699 = vmatmul.bf16.gmra.mxu0 %v957
        %v2700 = vpop.f32.mrf.mxu0
        %v2701 = vadd.f32 %v2612, %v2700
        %v2702 = vpop.f32.mrf.mxu0
        %v2703 = vadd.f32 %v2614, %v2702
        %2704 = vmatmul.bf16.gmra.mxu0 %v961
        %v2705 = vpop.f32.mrf.mxu0
        %v2706 = vadd.f32 %v2617, %v2705
        %v2707 = vpop.f32.mrf.mxu0
        %v2708 = vadd.f32 %v2619, %v2707
        %2709 = vmatmul.bf16.gmra.mxu0 %v965
        %v2710 = vpop.f32.mrf.mxu0
        %v2711 = vadd.f32 %v2622, %v2710
        %v2712 = vpop.f32.mrf.mxu0
        %v2713 = vadd.f32 %v2624, %v2712
        %2714 = vmatmul.bf16.gmra.mxu0 %v969
        %v2715 = vpop.f32.mrf.mxu0
        %v2716 = vadd.f32 %v2627, %v2715
        %v2717 = vpop.f32.mrf.mxu0
        %v2718 = vadd.f32 %v2629, %v2717
        %2719 = vmatmul.bf16.gmra.mxu0 %v973
        %v2720 = vpop.f32.mrf.mxu0
        %v2721 = vadd.f32 %v2632, %v2720
        %v2722 = vpop.f32.mrf.mxu0
        %v2723 = vadd.f32 %v2634, %v2722
        %2724 = vmatmul.bf16.gmra.mxu0 %v977
        %v2725 = vpop.f32.mrf.mxu0
        %v2726 = vadd.f32 %v2637, %v2725
        %v2727 = vpop.f32.mrf.mxu0
        %v2728 = vadd.f32 %v2639, %v2727
        %2729 = vmatmul.bf16.gmra.mxu0 %v981
        %v2730 = vpop.f32.mrf.mxu0
        %v2731 = vadd.f32 %v2642, %v2730
        %v2732 = vpop.f32.mrf.mxu0
        %v2733 = vadd.f32 %v2644, %v2732
        %2734 = vmatmul.bf16.gmra.mxu0 %v985
        %v2735 = vpop.f32.mrf.mxu0
        %v2736 = vadd.f32 %v2647, %v2735
        %v2737 = vpop.f32.mrf.mxu0
        %v2738 = vadd.f32 %v2649, %v2737
        %2739 = vmatmul.bf16.gmra.mxu0 %v989
        %v2740 = vpop.f32.mrf.mxu0
        %v2741 = vadd.f32 %v2652, %v2740
        %v2742 = vpop.f32.mrf.mxu0
        %v2743 = vadd.f32 %v2654, %v2742
        %2744 = vmatmul.bf16.gmra.mxu0 %v993
        %v2745 = vpop.f32.mrf.mxu0
        %v2746 = vadd.f32 %v2657, %v2745
        %v2747 = vpop.f32.mrf.mxu0
        %v2748 = vadd.f32 %v2659, %v2747
        %2749 = vmatmul.bf16.gmra.mxu0 %v997
        %v2750 = vpop.f32.mrf.mxu0
        %v2751 = vadd.f32 %v2662, %v2750
        %v2752 = vpop.f32.mrf.mxu0
        %v2753 = vadd.f32 %v2664, %v2752
        %2754 = vmatmul.bf16.gmra.mxu0 %v1001
        %v2755 = vpop.f32.mrf.mxu0
        %v2756 = vadd.f32 %v2667, %v2755
        %v2757 = vpop.f32.mrf.mxu0
        %v2758 = vadd.f32 %v2669, %v2757
        %2759 = vdwg.mxu0
        %2760 = vmatpush.bf16.msra.mxu0 %v1651
        %2761 = vmatpush.bf16.msra.mxu0 %v1647
        %2762 = vmatpush.bf16.msra.mxu0 %v1643
        %2763 = vmatpush.bf16.msra.mxu0 %v1639
        %2764 = vmatpush.bf16.msra.mxu0 %v1635
        %2765 = vmatpush.bf16.msra.mxu0 %v1631
        %2766 = vmatpush.bf16.msra.mxu0 %v1627
        %2767 = vmatpush.bf16.msra.mxu0 %v1623
        %2768 = vmatmul.bf16.gmra.mxu0 %v942
        %v2769 = vpop.f32.mrf.mxu0
        %v2770 = vadd.f32 %v2681, %v2769
        %v2771 = vpop.f32.mrf.mxu0
        %v2772 = vadd.f32 %v2683, %v2771
        %2773 = vmatmul.bf16.gmra.mxu0 %v946
        %v2774 = vpop.f32.mrf.mxu0
        %v2775 = vadd.f32 %v2686, %v2774
        %v2776 = vpop.f32.mrf.mxu0
        %v2777 = vadd.f32 %v2688, %v2776
        %2778 = vmatmul.bf16.gmra.mxu0 %v950
        %v2779 = vpop.f32.mrf.mxu0
        %v2780 = vadd.f32 %v2691, %v2779
        %v2781 = vpop.f32.mrf.mxu0
        %v2782 = vadd.f32 %v2693, %v2781
        %2783 = vmatmul.bf16.gmra.mxu0 %v954
        %v2784 = vpop.f32.mrf.mxu0
        %v2785 = vadd.f32 %v2696, %v2784
        %v2786 = vpop.f32.mrf.mxu0
        %v2787 = vadd.f32 %v2698, %v2786
        %2788 = vmatmul.bf16.gmra.mxu0 %v958
        %v2789 = vpop.f32.mrf.mxu0
        %v2790 = vadd.f32 %v2701, %v2789
        %v2791 = vpop.f32.mrf.mxu0
        %v2792 = vadd.f32 %v2703, %v2791
        %2793 = vmatmul.bf16.gmra.mxu0 %v962
        %v2794 = vpop.f32.mrf.mxu0
        %v2795 = vadd.f32 %v2706, %v2794
        %v2796 = vpop.f32.mrf.mxu0
        %v2797 = vadd.f32 %v2708, %v2796
        %2798 = vmatmul.bf16.gmra.mxu0 %v966
        %v2799 = vpop.f32.mrf.mxu0
        %v2800 = vadd.f32 %v2711, %v2799
        %v2801 = vpop.f32.mrf.mxu0
        %v2802 = vadd.f32 %v2713, %v2801
        %2803 = vmatmul.bf16.gmra.mxu0 %v970
        %v2804 = vpop.f32.mrf.mxu0
        %v2805 = vadd.f32 %v2716, %v2804
        %v2806 = vpop.f32.mrf.mxu0
        %v2807 = vadd.f32 %v2718, %v2806
        %2808 = vmatmul.bf16.gmra.mxu0 %v974
        %v2809 = vpop.f32.mrf.mxu0
        %v2810 = vadd.f32 %v2721, %v2809
        %v2811 = vpop.f32.mrf.mxu0
        %v2812 = vadd.f32 %v2723, %v2811
        %2813 = vmatmul.bf16.gmra.mxu0 %v978
        %v2814 = vpop.f32.mrf.mxu0
        %v2815 = vadd.f32 %v2726, %v2814
        %v2816 = vpop.f32.mrf.mxu0
        %v2817 = vadd.f32 %v2728, %v2816
        %2818 = vmatmul.bf16.gmra.mxu0 %v982
        %v2819 = vpop.f32.mrf.mxu0
        %v2820 = vadd.f32 %v2731, %v2819
        %v2821 = vpop.f32.mrf.mxu0
        %v2822 = vadd.f32 %v2733, %v2821
        %2823 = vmatmul.bf16.gmra.mxu0 %v986
        %v2824 = vpop.f32.mrf.mxu0
        %v2825 = vadd.f32 %v2736, %v2824
        %v2826 = vpop.f32.mrf.mxu0
        %v2827 = vadd.f32 %v2738, %v2826
        %2828 = vmatmul.bf16.gmra.mxu0 %v990
        %v2829 = vpop.f32.mrf.mxu0
        %v2830 = vadd.f32 %v2741, %v2829
        %v2831 = vpop.f32.mrf.mxu0
        %v2832 = vadd.f32 %v2743, %v2831
        %2833 = vmatmul.bf16.gmra.mxu0 %v994
        %v2834 = vpop.f32.mrf.mxu0
        %v2835 = vadd.f32 %v2746, %v2834
        %v2836 = vpop.f32.mrf.mxu0
        %v2837 = vadd.f32 %v2748, %v2836
        %2838 = vmatmul.bf16.gmra.mxu0 %v998
        %v2839 = vpop.f32.mrf.mxu0
        %v2840 = vadd.f32 %v2751, %v2839
        %v2841 = vpop.f32.mrf.mxu0
        %v2842 = vadd.f32 %v2753, %v2841
        %2843 = vmatmul.bf16.gmra.mxu0 %v1002
        %v2844 = vpop.f32.mrf.mxu0
        %v2845 = vadd.f32 %v2756, %v2844
        %v2846 = vpop.f32.mrf.mxu0
        %v2847 = vadd.f32 %v2758, %v2846
        %2848 = vdwg.mxu0
        %2849 = vmatpush.bf16.msra.mxu0 %v1556
        %2850 = vmatpush.bf16.msra.mxu0 %v1552
        %2851 = vmatpush.bf16.msra.mxu0 %v1548
        %2852 = vmatpush.bf16.msra.mxu0 %v1544
        %2853 = vmatpush.bf16.msra.mxu0 %v1540
        %2854 = vmatpush.bf16.msra.mxu0 %v1536
        %2855 = vmatpush.bf16.msra.mxu0 %v1532
        %2856 = vmatpush.bf16.msra.mxu0 %v1528
        %2857 = vmatmul.bf16.gmra.mxu0 %v939
        %v2858 = vpop.f32.mrf.mxu0
        %v2859 = vadd.f32 %v1136, %v2858
        %v2860 = vpop.f32.mrf.mxu0
        %v2861 = vadd.f32 %v1136, %v2860
        %2862 = vmatmul.bf16.gmra.mxu0 %v943
        %v2863 = vpop.f32.mrf.mxu0
        %v2864 = vadd.f32 %v1136, %v2863
        %v2865 = vpop.f32.mrf.mxu0
        %v2866 = vadd.f32 %v1136, %v2865
        %2867 = vmatmul.bf16.gmra.mxu0 %v947
        %v2868 = vpop.f32.mrf.mxu0
        %v2869 = vadd.f32 %v1136, %v2868
        %v2870 = vpop.f32.mrf.mxu0
        %v2871 = vadd.f32 %v1136, %v2870
        %2872 = vmatmul.bf16.gmra.mxu0 %v951
        %v2873 = vpop.f32.mrf.mxu0
        %v2874 = vadd.f32 %v1136, %v2873
        %v2875 = vpop.f32.mrf.mxu0
        %v2876 = vadd.f32 %v1136, %v2875
        %2877 = vmatmul.bf16.gmra.mxu0 %v955
        %v2878 = vpop.f32.mrf.mxu0
        %v2879 = vadd.f32 %v1136, %v2878
        %v2880 = vpop.f32.mrf.mxu0
        %v2881 = vadd.f32 %v1136, %v2880
        %2882 = vmatmul.bf16.gmra.mxu0 %v959
        %v2883 = vpop.f32.mrf.mxu0
        %v2884 = vadd.f32 %v1136, %v2883
        %v2885 = vpop.f32.mrf.mxu0
        %v2886 = vadd.f32 %v1136, %v2885
        %2887 = vmatmul.bf16.gmra.mxu0 %v963
        %v2888 = vpop.f32.mrf.mxu0
        %v2889 = vadd.f32 %v1136, %v2888
        %v2890 = vpop.f32.mrf.mxu0
        %v2891 = vadd.f32 %v1136, %v2890
        %2892 = vmatmul.bf16.gmra.mxu0 %v967
        %v2893 = vpop.f32.mrf.mxu0
        %v2894 = vadd.f32 %v1136, %v2893
        %v2895 = vpop.f32.mrf.mxu0
        %v2896 = vadd.f32 %v1136, %v2895
        %2897 = vmatmul.bf16.gmra.mxu0 %v971
        %v2898 = vpop.f32.mrf.mxu0
        %v2899 = vadd.f32 %v1136, %v2898
        %v2900 = vpop.f32.mrf.mxu0
        %v2901 = vadd.f32 %v1136, %v2900
        %2902 = vmatmul.bf16.gmra.mxu0 %v975
        %v2903 = vpop.f32.mrf.mxu0
        %v2904 = vadd.f32 %v1136, %v2903
        %v2905 = vpop.f32.mrf.mxu0
        %v2906 = vadd.f32 %v1136, %v2905
        %2907 = vmatmul.bf16.gmra.mxu0 %v979
        %v2908 = vpop.f32.mrf.mxu0
        %v2909 = vadd.f32 %v1136, %v2908
        %v2910 = vpop.f32.mrf.mxu0
        %v2911 = vadd.f32 %v1136, %v2910
        %2912 = vmatmul.bf16.gmra.mxu0 %v983
        %v2913 = vpop.f32.mrf.mxu0
        %v2914 = vadd.f32 %v1136, %v2913
        %v2915 = vpop.f32.mrf.mxu0
        %v2916 = vadd.f32 %v1136, %v2915
        %2917 = vmatmul.bf16.gmra.mxu0 %v987
        %v2918 = vpop.f32.mrf.mxu0
        %v2919 = vadd.f32 %v1136, %v2918
        %v2920 = vpop.f32.mrf.mxu0
        %v2921 = vadd.f32 %v1136, %v2920
        %2922 = vmatmul.bf16.gmra.mxu0 %v991
        %v2923 = vpop.f32.mrf.mxu0
        %v2924 = vadd.f32 %v1136, %v2923
        %v2925 = vpop.f32.mrf.mxu0
        %v2926 = vadd.f32 %v1136, %v2925
        %2927 = vmatmul.bf16.gmra.mxu0 %v995
        %v2928 = vpop.f32.mrf.mxu0
        %v2929 = vadd.f32 %v1136, %v2928
        %v2930 = vpop.f32.mrf.mxu0
        %v2931 = vadd.f32 %v1136, %v2930
        %2932 = vmatmul.bf16.gmra.mxu0 %v999
        %v2933 = vpop.f32.mrf.mxu0
        %v2934 = vadd.f32 %v1136, %v2933
        %v2935 = vpop.f32.mrf.mxu0
        %v2936 = vadd.f32 %v1136, %v2935
        %2937 = vdwg.mxu0
        %2938 = vmatpush.bf16.msra.mxu0 %v1588
        %2939 = vmatpush.bf16.msra.mxu0 %v1584
        %2940 = vmatpush.bf16.msra.mxu0 %v1580
        %2941 = vmatpush.bf16.msra.mxu0 %v1576
        %2942 = vmatpush.bf16.msra.mxu0 %v1572
        %2943 = vmatpush.bf16.msra.mxu0 %v1568
        %2944 = vmatpush.bf16.msra.mxu0 %v1564
        %2945 = vmatpush.bf16.msra.mxu0 %v1560
        %2946 = vmatmul.bf16.gmra.mxu0 %v940
        %v2947 = vpop.f32.mrf.mxu0
        %v2948 = vadd.f32 %v2859, %v2947
        %v2949 = vpop.f32.mrf.mxu0
        %v2950 = vadd.f32 %v2861, %v2949
        %2951 = vmatmul.bf16.gmra.mxu0 %v944
        %v2952 = vpop.f32.mrf.mxu0
        %v2953 = vadd.f32 %v2864, %v2952
        %v2954 = vpop.f32.mrf.mxu0
        %v2955 = vadd.f32 %v2866, %v2954
        %2956 = vmatmul.bf16.gmra.mxu0 %v948
        %v2957 = vpop.f32.mrf.mxu0
        %v2958 = vadd.f32 %v2869, %v2957
        %v2959 = vpop.f32.mrf.mxu0
        %v2960 = vadd.f32 %v2871, %v2959
        %2961 = vmatmul.bf16.gmra.mxu0 %v952
        %v2962 = vpop.f32.mrf.mxu0
        %v2963 = vadd.f32 %v2874, %v2962
        %v2964 = vpop.f32.mrf.mxu0
        %v2965 = vadd.f32 %v2876, %v2964
        %2966 = vmatmul.bf16.gmra.mxu0 %v956
        %v2967 = vpop.f32.mrf.mxu0
        %v2968 = vadd.f32 %v2879, %v2967
        %v2969 = vpop.f32.mrf.mxu0
        %v2970 = vadd.f32 %v2881, %v2969
        %2971 = vmatmul.bf16.gmra.mxu0 %v960
        %v2972 = vpop.f32.mrf.mxu0
        %v2973 = vadd.f32 %v2884, %v2972
        %v2974 = vpop.f32.mrf.mxu0
        %v2975 = vadd.f32 %v2886, %v2974
        %2976 = vmatmul.bf16.gmra.mxu0 %v964
        %v2977 = vpop.f32.mrf.mxu0
        %v2978 = vadd.f32 %v2889, %v2977
        %v2979 = vpop.f32.mrf.mxu0
        %v2980 = vadd.f32 %v2891, %v2979
        %2981 = vmatmul.bf16.gmra.mxu0 %v968
        %v2982 = vpop.f32.mrf.mxu0
        %v2983 = vadd.f32 %v2894, %v2982
        %v2984 = vpop.f32.mrf.mxu0
        %v2985 = vadd.f32 %v2896, %v2984
        %2986 = vmatmul.bf16.gmra.mxu0 %v972
        %v2987 = vpop.f32.mrf.mxu0
        %v2988 = vadd.f32 %v2899, %v2987
        %v2989 = vpop.f32.mrf.mxu0
        %v2990 = vadd.f32 %v2901, %v2989
        %2991 = vmatmul.bf16.gmra.mxu0 %v976
        %v2992 = vpop.f32.mrf.mxu0
        %v2993 = vadd.f32 %v2904, %v2992
        %v2994 = vpop.f32.mrf.mxu0
        %v2995 = vadd.f32 %v2906, %v2994
        %2996 = vmatmul.bf16.gmra.mxu0 %v980
        %v2997 = vpop.f32.mrf.mxu0
        %v2998 = vadd.f32 %v2909, %v2997
        %v2999 = vpop.f32.mrf.mxu0
        %v3000 = vadd.f32 %v2911, %v2999
        %3001 = vmatmul.bf16.gmra.mxu0 %v984
        %v3002 = vpop.f32.mrf.mxu0
        %v3003 = vadd.f32 %v2914, %v3002
        %v3004 = vpop.f32.mrf.mxu0
        %v3005 = vadd.f32 %v2916, %v3004
        %3006 = vmatmul.bf16.gmra.mxu0 %v988
        %v3007 = vpop.f32.mrf.mxu0
        %v3008 = vadd.f32 %v2919, %v3007
        %v3009 = vpop.f32.mrf.mxu0
        %v3010 = vadd.f32 %v2921, %v3009
        %3011 = vmatmul.bf16.gmra.mxu0 %v992
        %v3012 = vpop.f32.mrf.mxu0
        %v3013 = vadd.f32 %v2924, %v3012
        %v3014 = vpop.f32.mrf.mxu0
        %v3015 = vadd.f32 %v2926, %v3014
        %3016 = vmatmul.bf16.gmra.mxu0 %v996
        %v3017 = vpop.f32.mrf.mxu0
        %v3018 = vadd.f32 %v2929, %v3017
        %v3019 = vpop.f32.mrf.mxu0
        %v3020 = vadd.f32 %v2931, %v3019
        %3021 = vmatmul.bf16.gmra.mxu0 %v1000
        %v3022 = vpop.f32.mrf.mxu0
        %v3023 = vadd.f32 %v2934, %v3022
        %v3024 = vpop.f32.mrf.mxu0
        %v3025 = vadd.f32 %v2936, %v3024
        %3026 = vdwg.mxu0
        %3027 = vmatpush.bf16.msra.mxu0 %v1620
        %3028 = vmatpush.bf16.msra.mxu0 %v1616
        %3029 = vmatpush.bf16.msra.mxu0 %v1612
        %3030 = vmatpush.bf16.msra.mxu0 %v1608
        %3031 = vmatpush.bf16.msra.mxu0 %v1604
        %3032 = vmatpush.bf16.msra.mxu0 %v1600
        %3033 = vmatpush.bf16.msra.mxu0 %v1596
        %3034 = vmatpush.bf16.msra.mxu0 %v1592
        %3035 = vmatmul.bf16.gmra.mxu0 %v941
        %v3036 = vpop.f32.mrf.mxu0
        %v3037 = vadd.f32 %v2948, %v3036
        %v3038 = vpop.f32.mrf.mxu0
        %v3039 = vadd.f32 %v2950, %v3038
        %3040 = vmatmul.bf16.gmra.mxu0 %v945
        %v3041 = vpop.f32.mrf.mxu0
        %v3042 = vadd.f32 %v2953, %v3041
        %v3043 = vpop.f32.mrf.mxu0
        %v3044 = vadd.f32 %v2955, %v3043
        %3045 = vmatmul.bf16.gmra.mxu0 %v949
        %v3046 = vpop.f32.mrf.mxu0
        %v3047 = vadd.f32 %v2958, %v3046
        %v3048 = vpop.f32.mrf.mxu0
        %v3049 = vadd.f32 %v2960, %v3048
        %3050 = vmatmul.bf16.gmra.mxu0 %v953
        %v3051 = vpop.f32.mrf.mxu0
        %v3052 = vadd.f32 %v2963, %v3051
        %v3053 = vpop.f32.mrf.mxu0
        %v3054 = vadd.f32 %v2965, %v3053
        %3055 = vmatmul.bf16.gmra.mxu0 %v957
        %v3056 = vpop.f32.mrf.mxu0
        %v3057 = vadd.f32 %v2968, %v3056
        %v3058 = vpop.f32.mrf.mxu0
        %v3059 = vadd.f32 %v2970, %v3058
        %3060 = vmatmul.bf16.gmra.mxu0 %v961
        %v3061 = vpop.f32.mrf.mxu0
        %v3062 = vadd.f32 %v2973, %v3061
        %v3063 = vpop.f32.mrf.mxu0
        %v3064 = vadd.f32 %v2975, %v3063
        %3065 = vmatmul.bf16.gmra.mxu0 %v965
        %v3066 = vpop.f32.mrf.mxu0
        %v3067 = vadd.f32 %v2978, %v3066
        %v3068 = vpop.f32.mrf.mxu0
        %v3069 = vadd.f32 %v2980, %v3068
        %3070 = vmatmul.bf16.gmra.mxu0 %v969
        %v3071 = vpop.f32.mrf.mxu0
        %v3072 = vadd.f32 %v2983, %v3071
        %v3073 = vpop.f32.mrf.mxu0
        %v3074 = vadd.f32 %v2985, %v3073
        %3075 = vmatmul.bf16.gmra.mxu0 %v973
        %v3076 = vpop.f32.mrf.mxu0
        %v3077 = vadd.f32 %v2988, %v3076
        %v3078 = vpop.f32.mrf.mxu0
        %v3079 = vadd.f32 %v2990, %v3078
        %3080 = vmatmul.bf16.gmra.mxu0 %v977
        %v3081 = vpop.f32.mrf.mxu0
        %v3082 = vadd.f32 %v2993, %v3081
        %v3083 = vpop.f32.mrf.mxu0
        %v3084 = vadd.f32 %v2995, %v3083
        %3085 = vmatmul.bf16.gmra.mxu0 %v981
        %v3086 = vpop.f32.mrf.mxu0
        %v3087 = vadd.f32 %v2998, %v3086
        %v3088 = vpop.f32.mrf.mxu0
        %v3089 = vadd.f32 %v3000, %v3088
        %3090 = vmatmul.bf16.gmra.mxu0 %v985
        %v3091 = vpop.f32.mrf.mxu0
        %v3092 = vadd.f32 %v3003, %v3091
        %v3093 = vpop.f32.mrf.mxu0
        %v3094 = vadd.f32 %v3005, %v3093
        %3095 = vmatmul.bf16.gmra.mxu0 %v989
        %v3096 = vpop.f32.mrf.mxu0
        %v3097 = vadd.f32 %v3008, %v3096
        %v3098 = vpop.f32.mrf.mxu0
        %v3099 = vadd.f32 %v3010, %v3098
        %3100 = vmatmul.bf16.gmra.mxu0 %v993
        %v3101 = vpop.f32.mrf.mxu0
        %v3102 = vadd.f32 %v3013, %v3101
        %v3103 = vpop.f32.mrf.mxu0
        %v3104 = vadd.f32 %v3015, %v3103
        %3105 = vmatmul.bf16.gmra.mxu0 %v997
        %v3106 = vpop.f32.mrf.mxu0
        %v3107 = vadd.f32 %v3018, %v3106
        %v3108 = vpop.f32.mrf.mxu0
        %v3109 = vadd.f32 %v3020, %v3108
        %3110 = vmatmul.bf16.gmra.mxu0 %v1001
        %v3111 = vpop.f32.mrf.mxu0
        %v3112 = vadd.f32 %v3023, %v3111
        %v3113 = vpop.f32.mrf.mxu0
        %v3114 = vadd.f32 %v3025, %v3113
        %3115 = vdwg.mxu0
        %3116 = vmatpush.bf16.msra.mxu0 %v1652
        %3117 = vmatpush.bf16.msra.mxu0 %v1648
        %3118 = vmatpush.bf16.msra.mxu0 %v1644
        %3119 = vmatpush.bf16.msra.mxu0 %v1640
        %3120 = vmatpush.bf16.msra.mxu0 %v1636
        %3121 = vmatpush.bf16.msra.mxu0 %v1632
        %3122 = vmatpush.bf16.msra.mxu0 %v1628
        %3123 = vmatpush.bf16.msra.mxu0 %v1624
        %3124 = vmatmul.bf16.gmra.mxu0 %v942
        %v3125 = vpop.f32.mrf.mxu0
        %v3126 = vadd.f32 %v3037, %v3125
        %v3127 = vpop.f32.mrf.mxu0
        %v3128 = vadd.f32 %v3039, %v3127
        %3129 = vmatmul.bf16.gmra.mxu0 %v946
        %v3130 = vpop.f32.mrf.mxu0
        %v3131 = vadd.f32 %v3042, %v3130
        %v3132 = vpop.f32.mrf.mxu0
        %v3133 = vadd.f32 %v3044, %v3132
        %3134 = vmatmul.bf16.gmra.mxu0 %v950
        %v3135 = vpop.f32.mrf.mxu0
        %v3136 = vadd.f32 %v3047, %v3135
        %v3137 = vpop.f32.mrf.mxu0
        %v3138 = vadd.f32 %v3049, %v3137
        %3139 = vmatmul.bf16.gmra.mxu0 %v954
        %v3140 = vpop.f32.mrf.mxu0
        %v3141 = vadd.f32 %v3052, %v3140
        %v3142 = vpop.f32.mrf.mxu0
        %v3143 = vadd.f32 %v3054, %v3142
        %3144 = vmatmul.bf16.gmra.mxu0 %v958
        %v3145 = vpop.f32.mrf.mxu0
        %v3146 = vadd.f32 %v3057, %v3145
        %v3147 = vpop.f32.mrf.mxu0
        %v3148 = vadd.f32 %v3059, %v3147
        %3149 = vmatmul.bf16.gmra.mxu0 %v962
        %v3150 = vpop.f32.mrf.mxu0
        %v3151 = vadd.f32 %v3062, %v3150
        %v3152 = vpop.f32.mrf.mxu0
        %v3153 = vadd.f32 %v3064, %v3152
        %3154 = vmatmul.bf16.gmra.mxu0 %v966
        %v3155 = vpop.f32.mrf.mxu0
        %v3156 = vadd.f32 %v3067, %v3155
        %v3157 = vpop.f32.mrf.mxu0
        %v3158 = vadd.f32 %v3069, %v3157
        %3159 = vmatmul.bf16.gmra.mxu0 %v970
        %v3160 = vpop.f32.mrf.mxu0
        %v3161 = vadd.f32 %v3072, %v3160
        %v3162 = vpop.f32.mrf.mxu0
        %v3163 = vadd.f32 %v3074, %v3162
        %3164 = vmatmul.bf16.gmra.mxu0 %v974
        %v3165 = vpop.f32.mrf.mxu0
        %v3166 = vadd.f32 %v3077, %v3165
        %v3167 = vpop.f32.mrf.mxu0
        %v3168 = vadd.f32 %v3079, %v3167
        %3169 = vmatmul.bf16.gmra.mxu0 %v978
        %v3170 = vpop.f32.mrf.mxu0
        %v3171 = vadd.f32 %v3082, %v3170
        %v3172 = vpop.f32.mrf.mxu0
        %v3173 = vadd.f32 %v3084, %v3172
        %3174 = vmatmul.bf16.gmra.mxu0 %v982
        %v3175 = vpop.f32.mrf.mxu0
        %v3176 = vadd.f32 %v3087, %v3175
        %v3177 = vpop.f32.mrf.mxu0
        %v3178 = vadd.f32 %v3089, %v3177
        %3179 = vmatmul.bf16.gmra.mxu0 %v986
        %v3180 = vpop.f32.mrf.mxu0
        %v3181 = vadd.f32 %v3092, %v3180
        %v3182 = vpop.f32.mrf.mxu0
        %v3183 = vadd.f32 %v3094, %v3182
        %3184 = vmatmul.bf16.gmra.mxu0 %v990
        %v3185 = vpop.f32.mrf.mxu0
        %v3186 = vadd.f32 %v3097, %v3185
        %v3187 = vpop.f32.mrf.mxu0
        %v3188 = vadd.f32 %v3099, %v3187
        %3189 = vmatmul.bf16.gmra.mxu0 %v994
        %v3190 = vpop.f32.mrf.mxu0
        %v3191 = vadd.f32 %v3102, %v3190
        %v3192 = vpop.f32.mrf.mxu0
        %v3193 = vadd.f32 %v3104, %v3192
        %3194 = vmatmul.bf16.gmra.mxu0 %v998
        %v3195 = vpop.f32.mrf.mxu0
        %v3196 = vadd.f32 %v3107, %v3195
        %v3197 = vpop.f32.mrf.mxu0
        %v3198 = vadd.f32 %v3109, %v3197
        %3199 = vmatmul.bf16.gmra.mxu0 %v1002
        %v3200 = vpop.f32.mrf.mxu0
        %v3201 = vadd.f32 %v3112, %v3200
        %v3202 = vpop.f32.mrf.mxu0
        %v3203 = vadd.f32 %v3114, %v3202
        %3204 = vdwg.mxu0
        %v3205 = vmax.f32 %v2058, 0.0
        %v3206 = vmax.f32 %v2414, 0.0
        %v3207 = vmax.f32 %v2770, 0.0
        %v3208 = vmax.f32 %v3126, 0.0
        %v3209 = vmax.f32 %v2060, 0.0
        %v3210 = vmax.f32 %v2416, 0.0
        %v3211 = vmax.f32 %v2772, 0.0
        %v3212 = vmax.f32 %v3128, 0.0
        %v3213 = vmax.f32 %v2063, 0.0
        %v3214 = vmax.f32 %v2419, 0.0
        %v3215 = vmax.f32 %v2775, 0.0
        %v3216 = vmax.f32 %v3131, 0.0
        %v3217 = vmax.f32 %v2065, 0.0
        %v3218 = vmax.f32 %v2421, 0.0
        %v3219 = vmax.f32 %v2777, 0.0
        %v3220 = vmax.f32 %v3133, 0.0
        %v3221 = vmax.f32 %v2068, 0.0
        %v3222 = vmax.f32 %v2424, 0.0
        %v3223 = vmax.f32 %v2780, 0.0
        %v3224 = vmax.f32 %v3136, 0.0
        %v3225 = vmax.f32 %v2070, 0.0
        %v3226 = vmax.f32 %v2426, 0.0
        %v3227 = vmax.f32 %v2782, 0.0
        %v3228 = vmax.f32 %v3138, 0.0
        %v3229 = vmax.f32 %v2073, 0.0
        %v3230 = vmax.f32 %v2429, 0.0
        %v3231 = vmax.f32 %v2785, 0.0
        %v3232 = vmax.f32 %v3141, 0.0
        %v3233 = vmax.f32 %v2075, 0.0
        %v3234 = vmax.f32 %v2431, 0.0
        %v3235 = vmax.f32 %v2787, 0.0
        %v3236 = vmax.f32 %v3143, 0.0
        %v3237 = vmax.f32 %v2078, 0.0
        %v3238 = vmax.f32 %v2434, 0.0
        %v3239 = vmax.f32 %v2790, 0.0
        %v3240 = vmax.f32 %v3146, 0.0
        %v3241 = vmax.f32 %v2080, 0.0
        %v3242 = vmax.f32 %v2436, 0.0
        %v3243 = vmax.f32 %v2792, 0.0
        %v3244 = vmax.f32 %v3148, 0.0
        %v3245 = vmax.f32 %v2083, 0.0
        %v3246 = vmax.f32 %v2439, 0.0
        %v3247 = vmax.f32 %v2795, 0.0
        %v3248 = vmax.f32 %v3151, 0.0
        %v3249 = vmax.f32 %v2085, 0.0
        %v3250 = vmax.f32 %v2441, 0.0
        %v3251 = vmax.f32 %v2797, 0.0
        %v3252 = vmax.f32 %v3153, 0.0
        %v3253 = vmax.f32 %v2088, 0.0
        %v3254 = vmax.f32 %v2444, 0.0
        %v3255 = vmax.f32 %v2800, 0.0
        %v3256 = vmax.f32 %v3156, 0.0
        %v3257 = vmax.f32 %v2090, 0.0
        %v3258 = vmax.f32 %v2446, 0.0
        %v3259 = vmax.f32 %v2802, 0.0
        %v3260 = vmax.f32 %v3158, 0.0
        %v3261 = vmax.f32 %v2093, 0.0
        %v3262 = vmax.f32 %v2449, 0.0
        %v3263 = vmax.f32 %v2805, 0.0
        %v3264 = vmax.f32 %v3161, 0.0
        %v3265 = vmax.f32 %v2095, 0.0
        %v3266 = vmax.f32 %v2451, 0.0
        %v3267 = vmax.f32 %v2807, 0.0
        %v3268 = vmax.f32 %v3163, 0.0
        %v3269 = vmax.f32 %v2098, 0.0
        %v3270 = vmax.f32 %v2454, 0.0
        %v3271 = vmax.f32 %v2810, 0.0
        %v3272 = vmax.f32 %v3166, 0.0
        %v3273 = vmax.f32 %v2100, 0.0
        %v3274 = vmax.f32 %v2456, 0.0
        %v3275 = vmax.f32 %v2812, 0.0
        %v3276 = vmax.f32 %v3168, 0.0
        %v3277 = vmax.f32 %v2103, 0.0
        %v3278 = vmax.f32 %v2459, 0.0
        %v3279 = vmax.f32 %v2815, 0.0
        %v3280 = vmax.f32 %v3171, 0.0
        %v3281 = vmax.f32 %v2105, 0.0
        %v3282 = vmax.f32 %v2461, 0.0
        %v3283 = vmax.f32 %v2817, 0.0
        %v3284 = vmax.f32 %v3173, 0.0
        %v3285 = vmax.f32 %v2108, 0.0
        %v3286 = vmax.f32 %v2464, 0.0
        %v3287 = vmax.f32 %v2820, 0.0
        %v3288 = vmax.f32 %v3176, 0.0
        %v3289 = vmax.f32 %v2110, 0.0
        %v3290 = vmax.f32 %v2466, 0.0
        %v3291 = vmax.f32 %v2822, 0.0
        %v3292 = vmax.f32 %v3178, 0.0
        %v3293 = vmax.f32 %v2113, 0.0
        %v3294 = vmax.f32 %v2469, 0.0
        %v3295 = vmax.f32 %v2825, 0.0
        %v3296 = vmax.f32 %v3181, 0.0
        %v3297 = vmax.f32 %v2115, 0.0
        %v3298 = vmax.f32 %v2471, 0.0
        %v3299 = vmax.f32 %v2827, 0.0
        %v3300 = vmax.f32 %v3183, 0.0
        %v3301 = vmax.f32 %v2118, 0.0
        %v3302 = vmax.f32 %v2474, 0.0
        %v3303 = vmax.f32 %v2830, 0.0
        %v3304 = vmax.f32 %v3186, 0.0
        %v3305 = vmax.f32 %v2120, 0.0
        %v3306 = vmax.f32 %v2476, 0.0
        %v3307 = vmax.f32 %v2832, 0.0
        %v3308 = vmax.f32 %v3188, 0.0
        %v3309 = vmax.f32 %v2123, 0.0
        %v3310 = vmax.f32 %v2479, 0.0
        %v3311 = vmax.f32 %v2835, 0.0
        %v3312 = vmax.f32 %v3191, 0.0
        %v3313 = vmax.f32 %v2125, 0.0
        %v3314 = vmax.f32 %v2481, 0.0
        %v3315 = vmax.f32 %v2837, 0.0
        %v3316 = vmax.f32 %v3193, 0.0
        %v3317 = vmax.f32 %v2128, 0.0
        %v3318 = vmax.f32 %v2484, 0.0
        %v3319 = vmax.f32 %v2840, 0.0
        %v3320 = vmax.f32 %v3196, 0.0
        %v3321 = vmax.f32 %v2130, 0.0
        %v3322 = vmax.f32 %v2486, 0.0
        %v3323 = vmax.f32 %v2842, 0.0
        %v3324 = vmax.f32 %v3198, 0.0
        %v3325 = vmax.f32 %v2133, 0.0
        %v3326 = vmax.f32 %v2489, 0.0
        %v3327 = vmax.f32 %v2845, 0.0
        %v3328 = vmax.f32 %v3201, 0.0
        %v3329 = vmax.f32 %v2135, 0.0
        %v3330 = vmax.f32 %v2491, 0.0
        %v3331 = vmax.f32 %v2847, 0.0
        %v3332 = vmax.f32 %v3203, 0.0
        %v3333 = vpack.c.bf16 %v3209, %v3205
        %v3334 = vpack.c.bf16 %v3210, %v3206
        %v3335 = vpack.c.bf16 %v3211, %v3207
        %v3336 = vpack.c.bf16 %v3212, %v3208
        %v3337 = vpack.c.bf16 %v3217, %v3213
        %v3338 = vpack.c.bf16 %v3218, %v3214
        %v3339 = vpack.c.bf16 %v3219, %v3215
        %v3340 = vpack.c.bf16 %v3220, %v3216
        %v3341 = vpack.c.bf16 %v3225, %v3221
        %v3342 = vpack.c.bf16 %v3226, %v3222
        %v3343 = vpack.c.bf16 %v3227, %v3223
        %v3344 = vpack.c.bf16 %v3228, %v3224
        %v3345 = vpack.c.bf16 %v3233, %v3229
        %v3346 = vpack.c.bf16 %v3234, %v3230
        %v3347 = vpack.c.bf16 %v3235, %v3231
        %v3348 = vpack.c.bf16 %v3236, %v3232
        %v3349 = vpack.c.bf16 %v3241, %v3237
        %v3350 = vpack.c.bf16 %v3242, %v3238
        %v3351 = vpack.c.bf16 %v3243, %v3239
        %v3352 = vpack.c.bf16 %v3244, %v3240
        %v3353 = vpack.c.bf16 %v3249, %v3245
        %v3354 = vpack.c.bf16 %v3250, %v3246
        %v3355 = vpack.c.bf16 %v3251, %v3247
        %v3356 = vpack.c.bf16 %v3252, %v3248
        %v3357 = vpack.c.bf16 %v3257, %v3253
        %v3358 = vpack.c.bf16 %v3258, %v3254
        %v3359 = vpack.c.bf16 %v3259, %v3255
        %v3360 = vpack.c.bf16 %v3260, %v3256
        %v3361 = vpack.c.bf16 %v3265, %v3261
        %v3362 = vpack.c.bf16 %v3266, %v3262
        %v3363 = vpack.c.bf16 %v3267, %v3263
        %v3364 = vpack.c.bf16 %v3268, %v3264
        %v3365 = vpack.c.bf16 %v3273, %v3269
        %v3366 = vpack.c.bf16 %v3274, %v3270
        %v3367 = vpack.c.bf16 %v3275, %v3271
        %v3368 = vpack.c.bf16 %v3276, %v3272
        %v3369 = vpack.c.bf16 %v3281, %v3277
        %v3370 = vpack.c.bf16 %v3282, %v3278
        %v3371 = vpack.c.bf16 %v3283, %v3279
        %v3372 = vpack.c.bf16 %v3284, %v3280
        %v3373 = vpack.c.bf16 %v3289, %v3285
        %v3374 = vpack.c.bf16 %v3290, %v3286
        %v3375 = vpack.c.bf16 %v3291, %v3287
        %v3376 = vpack.c.bf16 %v3292, %v3288
        %v3377 = vpack.c.bf16 %v3297, %v3293
        %v3378 = vpack.c.bf16 %v3298, %v3294
        %v3379 = vpack.c.bf16 %v3299, %v3295
        %v3380 = vpack.c.bf16 %v3300, %v3296
        %v3381 = vpack.c.bf16 %v3305, %v3301
        %v3382 = vpack.c.bf16 %v3306, %v3302
        %v3383 = vpack.c.bf16 %v3307, %v3303
        %v3384 = vpack.c.bf16 %v3308, %v3304
        %v3385 = vpack.c.bf16 %v3313, %v3309
        %v3386 = vpack.c.bf16 %v3314, %v3310
        %v3387 = vpack.c.bf16 %v3315, %v3311
        %v3388 = vpack.c.bf16 %v3316, %v3312
        %v3389 = vpack.c.bf16 %v3321, %v3317
        %v3390 = vpack.c.bf16 %v3322, %v3318
        %v3391 = vpack.c.bf16 %v3323, %v3319
        %v3392 = vpack.c.bf16 %v3324, %v3320
        %v3393 = vpack.c.bf16 %v3329, %v3325
        %v3394 = vpack.c.bf16 %v3330, %v3326
        %v3395 = vpack.c.bf16 %v3331, %v3327
        %v3396 = vpack.c.bf16 %v3332, %v3328
        %v3397 = vld [vmem:[%s5] sm:$0xf]
        %v3398 = vld [vmem:[%s5 + $0x4] sm:$0xf]
        %v3399 = vld [vmem:[%s5 + $0x8] sm:$0xf]
        %v3400 = vld [vmem:[%s5 + $0xc] sm:$0xf]
        %v3401 = vld [vmem:[%s5 + $0x10] sm:$0xf]
        %v3402 = vld [vmem:[%s5 + $0x14] sm:$0xf]
        %v3403 = vld [vmem:[%s5 + $0x18] sm:$0xf]
        %v3404 = vld [vmem:[%s5 + $0x1c] sm:$0xf]
        %v3405 = vld [vmem:[%s5 + $0x20] sm:$0xf]
        %v3406 = vld [vmem:[%s5 + $0x24] sm:$0xf]
        %v3407 = vld [vmem:[%s5 + $0x28] sm:$0xf]
        %v3408 = vld [vmem:[%s5 + $0x2c] sm:$0xf]
        %v3409 = vld [vmem:[%s5 + $0x30] sm:$0xf]
        %v3410 = vld [vmem:[%s5 + $0x34] sm:$0xf]
        %v3411 = vld [vmem:[%s5 + $0x38] sm:$0xf]
        %v3412 = vld [vmem:[%s5 + $0x3c] sm:$0xf]
        %v3413 = vld [vmem:[%s5 + $0x40] sm:$0xf]
        %v3414 = vld [vmem:[%s5 + $0x44] sm:$0xf]
        %v3415 = vld [vmem:[%s5 + $0x48] sm:$0xf]
        %v3416 = vld [vmem:[%s5 + $0x4c] sm:$0xf]
        %v3417 = vld [vmem:[%s5 + $0x50] sm:$0xf]
        %v3418 = vld [vmem:[%s5 + $0x54] sm:$0xf]
        %v3419 = vld [vmem:[%s5 + $0x58] sm:$0xf]
        %v3420 = vld [vmem:[%s5 + $0x5c] sm:$0xf]
        %v3421 = vld [vmem:[%s5 + $0x60] sm:$0xf]
        %v3422 = vld [vmem:[%s5 + $0x64] sm:$0xf]
        %v3423 = vld [vmem:[%s5 + $0x68] sm:$0xf]
        %v3424 = vld [vmem:[%s5 + $0x6c] sm:$0xf]
        %v3425 = vld [vmem:[%s5 + $0x70] sm:$0xf]
        %v3426 = vld [vmem:[%s5 + $0x74] sm:$0xf]
        %v3427 = vld [vmem:[%s5 + $0x78] sm:$0xf]
        %v3428 = vld [vmem:[%s5 + $0x7c] sm:$0xf]
        %v3429 = vld [vmem:[%s5 + $0x80] sm:$0xf]
        %v3430 = vld [vmem:[%s5 + $0x84] sm:$0xf]
        %v3431 = vld [vmem:[%s5 + $0x88] sm:$0xf]
        %v3432 = vld [vmem:[%s5 + $0x8c] sm:$0xf]
        %v3433 = vld [vmem:[%s5 + $0x90] sm:$0xf]
        %v3434 = vld [vmem:[%s5 + $0x94] sm:$0xf]
        %v3435 = vld [vmem:[%s5 + $0x98] sm:$0xf]
        %v3436 = vld [vmem:[%s5 + $0x9c] sm:$0xf]
        %v3437 = vld [vmem:[%s5 + $0xa0] sm:$0xf]
        %v3438 = vld [vmem:[%s5 + $0xa4] sm:$0xf]
        %v3439 = vld [vmem:[%s5 + $0xa8] sm:$0xf]
        %v3440 = vld [vmem:[%s5 + $0xac] sm:$0xf]
        %v3441 = vld [vmem:[%s5 + $0xb0] sm:$0xf]
        %v3442 = vld [vmem:[%s5 + $0xb4] sm:$0xf]
        %v3443 = vld [vmem:[%s5 + $0xb8] sm:$0xf]
        %v3444 = vld [vmem:[%s5 + $0xbc] sm:$0xf]
        %v3445 = vld [vmem:[%s5 + $0xc0] sm:$0xf]
        %v3446 = vld [vmem:[%s5 + $0xc4] sm:$0xf]
        %v3447 = vld [vmem:[%s5 + $0xc8] sm:$0xf]
        %v3448 = vld [vmem:[%s5 + $0xcc] sm:$0xf]
        %v3449 = vld [vmem:[%s5 + $0xd0] sm:$0xf]
        %v3450 = vld [vmem:[%s5 + $0xd4] sm:$0xf]
        %v3451 = vld [vmem:[%s5 + $0xd8] sm:$0xf]
        %v3452 = vld [vmem:[%s5 + $0xdc] sm:$0xf]
        %v3453 = vld [vmem:[%s5 + $0xe0] sm:$0xf]
        %v3454 = vld [vmem:[%s5 + $0xe4] sm:$0xf]
        %v3455 = vld [vmem:[%s5 + $0xe8] sm:$0xf]
        %v3456 = vld [vmem:[%s5 + $0xec] sm:$0xf]
        %v3457 = vld [vmem:[%s5 + $0xf0] sm:$0xf]
        %v3458 = vld [vmem:[%s5 + $0xf4] sm:$0xf]
        %v3459 = vld [vmem:[%s5 + $0xf8] sm:$0xf]
        %v3460 = vld [vmem:[%s5 + $0xfc] sm:$0xf]
        %v3461 = vld [vmem:[%s6] sm:$0x1]
        %v3463 = vperm.slane %v3461, 0
        %v3529 = vunpack.c.l.b16 %v3397
        %v3530 = vunpack.c.l.b16 %v3398
        %v3531 = vunpack.c.l.b16 %v3399
        %v3532 = vunpack.c.l.b16 %v3400
        %v3533 = vunpack.c.l.b16 %v3401
        %v3534 = vunpack.c.l.b16 %v3402
        %v3535 = vunpack.c.l.b16 %v3403
        %v3536 = vunpack.c.l.b16 %v3404
        %v3537 = vunpack.c.l.b16 %v3405
        %v3538 = vunpack.c.l.b16 %v3406
        %v3539 = vunpack.c.l.b16 %v3407
        %v3540 = vunpack.c.l.b16 %v3408
        %v3541 = vunpack.c.l.b16 %v3409
        %v3542 = vunpack.c.l.b16 %v3410
        %v3543 = vunpack.c.l.b16 %v3411
        %v3544 = vunpack.c.l.b16 %v3412
        %v3545 = vunpack.c.l.b16 %v3413
        %v3546 = vunpack.c.l.b16 %v3414
        %v3547 = vunpack.c.l.b16 %v3415
        %v3548 = vunpack.c.l.b16 %v3416
        %v3549 = vunpack.c.l.b16 %v3417
        %v3550 = vunpack.c.l.b16 %v3418
        %v3551 = vunpack.c.l.b16 %v3419
        %v3552 = vunpack.c.l.b16 %v3420
        %v3553 = vunpack.c.l.b16 %v3421
        %v3554 = vunpack.c.l.b16 %v3422
        %v3555 = vunpack.c.l.b16 %v3423
        %v3556 = vunpack.c.l.b16 %v3424
        %v3557 = vunpack.c.l.b16 %v3425
        %v3558 = vunpack.c.l.b16 %v3426
        %v3559 = vunpack.c.l.b16 %v3427
        %v3560 = vunpack.c.l.b16 %v3428
        %v3561 = vunpack.c.l.b16 %v3429
        %v3562 = vunpack.c.l.b16 %v3430
        %v3563 = vunpack.c.l.b16 %v3431
        %v3564 = vunpack.c.l.b16 %v3432
        %v3565 = vunpack.c.l.b16 %v3433
        %v3566 = vunpack.c.l.b16 %v3434
        %v3567 = vunpack.c.l.b16 %v3435
        %v3568 = vunpack.c.l.b16 %v3436
        %v3569 = vunpack.c.l.b16 %v3437
        %v3570 = vunpack.c.l.b16 %v3438
        %v3571 = vunpack.c.l.b16 %v3439
        %v3572 = vunpack.c.l.b16 %v3440
        %v3573 = vunpack.c.l.b16 %v3441
        %v3574 = vunpack.c.l.b16 %v3442
        %v3575 = vunpack.c.l.b16 %v3443
        %v3576 = vunpack.c.l.b16 %v3444
        %v3577 = vunpack.c.l.b16 %v3445
        %v3578 = vunpack.c.l.b16 %v3446
        %v3579 = vunpack.c.l.b16 %v3447
        %v3580 = vunpack.c.l.b16 %v3448
        %v3581 = vunpack.c.l.b16 %v3449
        %v3582 = vunpack.c.l.b16 %v3450
        %v3583 = vunpack.c.l.b16 %v3451
        %v3584 = vunpack.c.l.b16 %v3452
        %v3585 = vunpack.c.l.b16 %v3453
        %v3586 = vunpack.c.l.b16 %v3454
        %v3587 = vunpack.c.l.b16 %v3455
        %v3588 = vunpack.c.l.b16 %v3456
        %v3589 = vunpack.c.l.b16 %v3457
        %v3590 = vunpack.c.l.b16 %v3458
        %v3591 = vunpack.c.l.b16 %v3459
        %v3592 = vunpack.c.l.b16 %v3460
        %v3593 = vpack.c.b16 %v3530, %v3529
        %v3594 = vpack.c.b16 %v3532, %v3531
        %v3595 = vpack.c.b16 %v3534, %v3533
        %v3596 = vpack.c.b16 %v3536, %v3535
        %v3597 = vpack.c.b16 %v3538, %v3537
        %v3598 = vpack.c.b16 %v3540, %v3539
        %v3599 = vpack.c.b16 %v3542, %v3541
        %v3600 = vpack.c.b16 %v3544, %v3543
        %v3601 = vpack.c.b16 %v3546, %v3545
        %v3602 = vpack.c.b16 %v3548, %v3547
        %v3603 = vpack.c.b16 %v3550, %v3549
        %v3604 = vpack.c.b16 %v3552, %v3551
        %v3605 = vpack.c.b16 %v3554, %v3553
        %v3606 = vpack.c.b16 %v3556, %v3555
        %v3607 = vpack.c.b16 %v3558, %v3557
        %v3608 = vpack.c.b16 %v3560, %v3559
        %v3609 = vpack.c.b16 %v3562, %v3561
        %v3610 = vpack.c.b16 %v3564, %v3563
        %v3611 = vpack.c.b16 %v3566, %v3565
        %v3612 = vpack.c.b16 %v3568, %v3567
        %v3613 = vpack.c.b16 %v3570, %v3569
        %v3614 = vpack.c.b16 %v3572, %v3571
        %v3615 = vpack.c.b16 %v3574, %v3573
        %v3616 = vpack.c.b16 %v3576, %v3575
        %v3617 = vpack.c.b16 %v3578, %v3577
        %v3618 = vpack.c.b16 %v3580, %v3579
        %v3619 = vpack.c.b16 %v3582, %v3581
        %v3620 = vpack.c.b16 %v3584, %v3583
        %v3621 = vpack.c.b16 %v3586, %v3585
        %v3622 = vpack.c.b16 %v3588, %v3587
        %v3623 = vpack.c.b16 %v3590, %v3589
        %v3624 = vpack.c.b16 %v3592, %v3591
        %3657 = vmatpush.bf16.msra.mxu0 %v3600
        %3658 = vmatpush.bf16.msra.mxu0 %v3599
        %3659 = vmatpush.bf16.msra.mxu0 %v3598
        %3660 = vmatpush.bf16.msra.mxu0 %v3597
        %3661 = vmatpush.bf16.msra.mxu0 %v3596
        %3662 = vmatpush.bf16.msra.mxu0 %v3595
        %3663 = vmatpush.bf16.msra.mxu0 %v3594
        %3664 = vmatpush.bf16.msra.mxu0 %v3593
        %3665 = vmatmul.bf16.gmra.mxu0 %v3333
        %v3666 = vpop.f32.mrf.mxu0
        %v3667 = vadd.f32 %v3463, %v3666
        %v3668 = vpop.f32.mrf.mxu0
        %v3669 = vadd.f32 %v3463, %v3668
        %3670 = vmatmul.bf16.gmra.mxu0 %v3337
        %v3671 = vpop.f32.mrf.mxu0
        %v3672 = vadd.f32 %v3463, %v3671
        %v3673 = vpop.f32.mrf.mxu0
        %v3674 = vadd.f32 %v3463, %v3673
        %3675 = vmatmul.bf16.gmra.mxu0 %v3341
        %v3676 = vpop.f32.mrf.mxu0
        %v3677 = vadd.f32 %v3463, %v3676
        %v3678 = vpop.f32.mrf.mxu0
        %v3679 = vadd.f32 %v3463, %v3678
        %3680 = vmatmul.bf16.gmra.mxu0 %v3345
        %v3681 = vpop.f32.mrf.mxu0
        %v3682 = vadd.f32 %v3463, %v3681
        %v3683 = vpop.f32.mrf.mxu0
        %v3684 = vadd.f32 %v3463, %v3683
        %3685 = vmatmul.bf16.gmra.mxu0 %v3349
        %v3686 = vpop.f32.mrf.mxu0
        %v3687 = vadd.f32 %v3463, %v3686
        %v3688 = vpop.f32.mrf.mxu0
        %v3689 = vadd.f32 %v3463, %v3688
        %3690 = vmatmul.bf16.gmra.mxu0 %v3353
        %v3691 = vpop.f32.mrf.mxu0
        %v3692 = vadd.f32 %v3463, %v3691
        %v3693 = vpop.f32.mrf.mxu0
        %v3694 = vadd.f32 %v3463, %v3693
        %3695 = vmatmul.bf16.gmra.mxu0 %v3357
        %v3696 = vpop.f32.mrf.mxu0
        %v3697 = vadd.f32 %v3463, %v3696
        %v3698 = vpop.f32.mrf.mxu0
        %v3699 = vadd.f32 %v3463, %v3698
        %3700 = vmatmul.bf16.gmra.mxu0 %v3361
        %v3701 = vpop.f32.mrf.mxu0
        %v3702 = vadd.f32 %v3463, %v3701
        %v3703 = vpop.f32.mrf.mxu0
        %v3704 = vadd.f32 %v3463, %v3703
        %3705 = vmatmul.bf16.gmra.mxu0 %v3365
        %v3706 = vpop.f32.mrf.mxu0
        %v3707 = vadd.f32 %v3463, %v3706
        %v3708 = vpop.f32.mrf.mxu0
        %v3709 = vadd.f32 %v3463, %v3708
        %3710 = vmatmul.bf16.gmra.mxu0 %v3369
        %v3711 = vpop.f32.mrf.mxu0
        %v3712 = vadd.f32 %v3463, %v3711
        %v3713 = vpop.f32.mrf.mxu0
        %v3714 = vadd.f32 %v3463, %v3713
        %3715 = vmatmul.bf16.gmra.mxu0 %v3373
        %v3716 = vpop.f32.mrf.mxu0
        %v3717 = vadd.f32 %v3463, %v3716
        %v3718 = vpop.f32.mrf.mxu0
        %v3719 = vadd.f32 %v3463, %v3718
        %3720 = vmatmul.bf16.gmra.mxu0 %v3377
        %v3721 = vpop.f32.mrf.mxu0
        %v3722 = vadd.f32 %v3463, %v3721
        %v3723 = vpop.f32.mrf.mxu0
        %v3724 = vadd.f32 %v3463, %v3723
        %3725 = vmatmul.bf16.gmra.mxu0 %v3381
        %v3726 = vpop.f32.mrf.mxu0
        %v3727 = vadd.f32 %v3463, %v3726
        %v3728 = vpop.f32.mrf.mxu0
        %v3729 = vadd.f32 %v3463, %v3728
        %3730 = vmatmul.bf16.gmra.mxu0 %v3385
        %v3731 = vpop.f32.mrf.mxu0
        %v3732 = vadd.f32 %v3463, %v3731
        %v3733 = vpop.f32.mrf.mxu0
        %v3734 = vadd.f32 %v3463, %v3733
        %3735 = vmatmul.bf16.gmra.mxu0 %v3389
        %v3736 = vpop.f32.mrf.mxu0
        %v3737 = vadd.f32 %v3463, %v3736
        %v3738 = vpop.f32.mrf.mxu0
        %v3739 = vadd.f32 %v3463, %v3738
        %3740 = vmatmul.bf16.gmra.mxu0 %v3393
        %v3741 = vpop.f32.mrf.mxu0
        %v3742 = vadd.f32 %v3463, %v3741
        %v3743 = vpop.f32.mrf.mxu0
        %v3744 = vadd.f32 %v3463, %v3743
        %3745 = vdwg.mxu0
        %3746 = vmatpush.bf16.msra.mxu0 %v3608
        %3747 = vmatpush.bf16.msra.mxu0 %v3607
        %3748 = vmatpush.bf16.msra.mxu0 %v3606
        %3749 = vmatpush.bf16.msra.mxu0 %v3605
        %3750 = vmatpush.bf16.msra.mxu0 %v3604
        %3751 = vmatpush.bf16.msra.mxu0 %v3603
        %3752 = vmatpush.bf16.msra.mxu0 %v3602
        %3753 = vmatpush.bf16.msra.mxu0 %v3601
        %3754 = vmatmul.bf16.gmra.mxu0 %v3334
        %v3755 = vpop.f32.mrf.mxu0
        %v3756 = vadd.f32 %v3667, %v3755
        %v3757 = vpop.f32.mrf.mxu0
        %v3758 = vadd.f32 %v3669, %v3757
        %3759 = vmatmul.bf16.gmra.mxu0 %v3338
        %v3760 = vpop.f32.mrf.mxu0
        %v3761 = vadd.f32 %v3672, %v3760
        %v3762 = vpop.f32.mrf.mxu0
        %v3763 = vadd.f32 %v3674, %v3762
        %3764 = vmatmul.bf16.gmra.mxu0 %v3342
        %v3765 = vpop.f32.mrf.mxu0
        %v3766 = vadd.f32 %v3677, %v3765
        %v3767 = vpop.f32.mrf.mxu0
        %v3768 = vadd.f32 %v3679, %v3767
        %3769 = vmatmul.bf16.gmra.mxu0 %v3346
        %v3770 = vpop.f32.mrf.mxu0
        %v3771 = vadd.f32 %v3682, %v3770
        %v3772 = vpop.f32.mrf.mxu0
        %v3773 = vadd.f32 %v3684, %v3772
        %3774 = vmatmul.bf16.gmra.mxu0 %v3350
        %v3775 = vpop.f32.mrf.mxu0
        %v3776 = vadd.f32 %v3687, %v3775
        %v3777 = vpop.f32.mrf.mxu0
        %v3778 = vadd.f32 %v3689, %v3777
        %3779 = vmatmul.bf16.gmra.mxu0 %v3354
        %v3780 = vpop.f32.mrf.mxu0
        %v3781 = vadd.f32 %v3692, %v3780
        %v3782 = vpop.f32.mrf.mxu0
        %v3783 = vadd.f32 %v3694, %v3782
        %3784 = vmatmul.bf16.gmra.mxu0 %v3358
        %v3785 = vpop.f32.mrf.mxu0
        %v3786 = vadd.f32 %v3697, %v3785
        %v3787 = vpop.f32.mrf.mxu0
        %v3788 = vadd.f32 %v3699, %v3787
        %3789 = vmatmul.bf16.gmra.mxu0 %v3362
        %v3790 = vpop.f32.mrf.mxu0
        %v3791 = vadd.f32 %v3702, %v3790
        %v3792 = vpop.f32.mrf.mxu0
        %v3793 = vadd.f32 %v3704, %v3792
        %3794 = vmatmul.bf16.gmra.mxu0 %v3366
        %v3795 = vpop.f32.mrf.mxu0
        %v3796 = vadd.f32 %v3707, %v3795
        %v3797 = vpop.f32.mrf.mxu0
        %v3798 = vadd.f32 %v3709, %v3797
        %3799 = vmatmul.bf16.gmra.mxu0 %v3370
        %v3800 = vpop.f32.mrf.mxu0
        %v3801 = vadd.f32 %v3712, %v3800
        %v3802 = vpop.f32.mrf.mxu0
        %v3803 = vadd.f32 %v3714, %v3802
        %3804 = vmatmul.bf16.gmra.mxu0 %v3374
        %v3805 = vpop.f32.mrf.mxu0
        %v3806 = vadd.f32 %v3717, %v3805
        %v3807 = vpop.f32.mrf.mxu0
        %v3808 = vadd.f32 %v3719, %v3807
        %3809 = vmatmul.bf16.gmra.mxu0 %v3378
        %v3810 = vpop.f32.mrf.mxu0
        %v3811 = vadd.f32 %v3722, %v3810
        %v3812 = vpop.f32.mrf.mxu0
        %v3813 = vadd.f32 %v3724, %v3812
        %3814 = vmatmul.bf16.gmra.mxu0 %v3382
        %v3815 = vpop.f32.mrf.mxu0
        %v3816 = vadd.f32 %v3727, %v3815
        %v3817 = vpop.f32.mrf.mxu0
        %v3818 = vadd.f32 %v3729, %v3817
        %3819 = vmatmul.bf16.gmra.mxu0 %v3386
        %v3820 = vpop.f32.mrf.mxu0
        %v3821 = vadd.f32 %v3732, %v3820
        %v3822 = vpop.f32.mrf.mxu0
        %v3823 = vadd.f32 %v3734, %v3822
        %3824 = vmatmul.bf16.gmra.mxu0 %v3390
        %v3825 = vpop.f32.mrf.mxu0
        %v3826 = vadd.f32 %v3737, %v3825
        %v3827 = vpop.f32.mrf.mxu0
        %v3828 = vadd.f32 %v3739, %v3827
        %3829 = vmatmul.bf16.gmra.mxu0 %v3394
        %v3830 = vpop.f32.mrf.mxu0
        %v3831 = vadd.f32 %v3742, %v3830
        %v3832 = vpop.f32.mrf.mxu0
        %v3833 = vadd.f32 %v3744, %v3832
        %3834 = vdwg.mxu0
        %3835 = vmatpush.bf16.msra.mxu0 %v3616
        %3836 = vmatpush.bf16.msra.mxu0 %v3615
        %3837 = vmatpush.bf16.msra.mxu0 %v3614
        %3838 = vmatpush.bf16.msra.mxu0 %v3613
        %3839 = vmatpush.bf16.msra.mxu0 %v3612
        %3840 = vmatpush.bf16.msra.mxu0 %v3611
        %3841 = vmatpush.bf16.msra.mxu0 %v3610
        %3842 = vmatpush.bf16.msra.mxu0 %v3609
        %3843 = vmatmul.bf16.gmra.mxu0 %v3335
        %v3844 = vpop.f32.mrf.mxu0
        %v3845 = vadd.f32 %v3756, %v3844
        %v3846 = vpop.f32.mrf.mxu0
        %v3847 = vadd.f32 %v3758, %v3846
        %3848 = vmatmul.bf16.gmra.mxu0 %v3339
        %v3849 = vpop.f32.mrf.mxu0
        %v3850 = vadd.f32 %v3761, %v3849
        %v3851 = vpop.f32.mrf.mxu0
        %v3852 = vadd.f32 %v3763, %v3851
        %3853 = vmatmul.bf16.gmra.mxu0 %v3343
        %v3854 = vpop.f32.mrf.mxu0
        %v3855 = vadd.f32 %v3766, %v3854
        %v3856 = vpop.f32.mrf.mxu0
        %v3857 = vadd.f32 %v3768, %v3856
        %3858 = vmatmul.bf16.gmra.mxu0 %v3347
        %v3859 = vpop.f32.mrf.mxu0
        %v3860 = vadd.f32 %v3771, %v3859
        %v3861 = vpop.f32.mrf.mxu0
        %v3862 = vadd.f32 %v3773, %v3861
        %3863 = vmatmul.bf16.gmra.mxu0 %v3351
        %v3864 = vpop.f32.mrf.mxu0
        %v3865 = vadd.f32 %v3776, %v3864
        %v3866 = vpop.f32.mrf.mxu0
        %v3867 = vadd.f32 %v3778, %v3866
        %3868 = vmatmul.bf16.gmra.mxu0 %v3355
        %v3869 = vpop.f32.mrf.mxu0
        %v3870 = vadd.f32 %v3781, %v3869
        %v3871 = vpop.f32.mrf.mxu0
        %v3872 = vadd.f32 %v3783, %v3871
        %3873 = vmatmul.bf16.gmra.mxu0 %v3359
        %v3874 = vpop.f32.mrf.mxu0
        %v3875 = vadd.f32 %v3786, %v3874
        %v3876 = vpop.f32.mrf.mxu0
        %v3877 = vadd.f32 %v3788, %v3876
        %3878 = vmatmul.bf16.gmra.mxu0 %v3363
        %v3879 = vpop.f32.mrf.mxu0
        %v3880 = vadd.f32 %v3791, %v3879
        %v3881 = vpop.f32.mrf.mxu0
        %v3882 = vadd.f32 %v3793, %v3881
        %3883 = vmatmul.bf16.gmra.mxu0 %v3367
        %v3884 = vpop.f32.mrf.mxu0
        %v3885 = vadd.f32 %v3796, %v3884
        %v3886 = vpop.f32.mrf.mxu0
        %v3887 = vadd.f32 %v3798, %v3886
        %3888 = vmatmul.bf16.gmra.mxu0 %v3371
        %v3889 = vpop.f32.mrf.mxu0
        %v3890 = vadd.f32 %v3801, %v3889
        %v3891 = vpop.f32.mrf.mxu0
        %v3892 = vadd.f32 %v3803, %v3891
        %3893 = vmatmul.bf16.gmra.mxu0 %v3375
        %v3894 = vpop.f32.mrf.mxu0
        %v3895 = vadd.f32 %v3806, %v3894
        %v3896 = vpop.f32.mrf.mxu0
        %v3897 = vadd.f32 %v3808, %v3896
        %3898 = vmatmul.bf16.gmra.mxu0 %v3379
        %v3899 = vpop.f32.mrf.mxu0
        %v3900 = vadd.f32 %v3811, %v3899
        %v3901 = vpop.f32.mrf.mxu0
        %v3902 = vadd.f32 %v3813, %v3901
        %3903 = vmatmul.bf16.gmra.mxu0 %v3383
        %v3904 = vpop.f32.mrf.mxu0
        %v3905 = vadd.f32 %v3816, %v3904
        %v3906 = vpop.f32.mrf.mxu0
        %v3907 = vadd.f32 %v3818, %v3906
        %3908 = vmatmul.bf16.gmra.mxu0 %v3387
        %v3909 = vpop.f32.mrf.mxu0
        %v3910 = vadd.f32 %v3821, %v3909
        %v3911 = vpop.f32.mrf.mxu0
        %v3912 = vadd.f32 %v3823, %v3911
        %3913 = vmatmul.bf16.gmra.mxu0 %v3391
        %v3914 = vpop.f32.mrf.mxu0
        %v3915 = vadd.f32 %v3826, %v3914
        %v3916 = vpop.f32.mrf.mxu0
        %v3917 = vadd.f32 %v3828, %v3916
        %3918 = vmatmul.bf16.gmra.mxu0 %v3395
        %v3919 = vpop.f32.mrf.mxu0
        %v3920 = vadd.f32 %v3831, %v3919
        %v3921 = vpop.f32.mrf.mxu0
        %v3922 = vadd.f32 %v3833, %v3921
        %3923 = vdwg.mxu0
        %3924 = vmatpush.bf16.msra.mxu0 %v3624
        %3925 = vmatpush.bf16.msra.mxu0 %v3623
        %3926 = vmatpush.bf16.msra.mxu0 %v3622
        %3927 = vmatpush.bf16.msra.mxu0 %v3621
        %3928 = vmatpush.bf16.msra.mxu0 %v3620
        %3929 = vmatpush.bf16.msra.mxu0 %v3619
        %3930 = vmatpush.bf16.msra.mxu0 %v3618
        %3931 = vmatpush.bf16.msra.mxu0 %v3617
        %3932 = vmatmul.bf16.gmra.mxu0 %v3336
        %v3933 = vpop.f32.mrf.mxu0
        %v3934 = vadd.f32 %v3845, %v3933
        %v3935 = vpop.f32.mrf.mxu0
        %v3936 = vadd.f32 %v3847, %v3935
        %3937 = vmatmul.bf16.gmra.mxu0 %v3340
        %v3938 = vpop.f32.mrf.mxu0
        %v3939 = vadd.f32 %v3850, %v3938
        %v3940 = vpop.f32.mrf.mxu0
        %v3941 = vadd.f32 %v3852, %v3940
        %3942 = vmatmul.bf16.gmra.mxu0 %v3344
        %v3943 = vpop.f32.mrf.mxu0
        %v3944 = vadd.f32 %v3855, %v3943
        %v3945 = vpop.f32.mrf.mxu0
        %v3946 = vadd.f32 %v3857, %v3945
        %3947 = vmatmul.bf16.gmra.mxu0 %v3348
        %v3948 = vpop.f32.mrf.mxu0
        %v3949 = vadd.f32 %v3860, %v3948
        %v3950 = vpop.f32.mrf.mxu0
        %v3951 = vadd.f32 %v3862, %v3950
        %3952 = vmatmul.bf16.gmra.mxu0 %v3352
        %v3953 = vpop.f32.mrf.mxu0
        %v3954 = vadd.f32 %v3865, %v3953
        %v3955 = vpop.f32.mrf.mxu0
        %v3956 = vadd.f32 %v3867, %v3955
        %3957 = vmatmul.bf16.gmra.mxu0 %v3356
        %v3958 = vpop.f32.mrf.mxu0
        %v3959 = vadd.f32 %v3870, %v3958
        %v3960 = vpop.f32.mrf.mxu0
        %v3961 = vadd.f32 %v3872, %v3960
        %3962 = vmatmul.bf16.gmra.mxu0 %v3360
        %v3963 = vpop.f32.mrf.mxu0
        %v3964 = vadd.f32 %v3875, %v3963
        %v3965 = vpop.f32.mrf.mxu0
        %v3966 = vadd.f32 %v3877, %v3965
        %3967 = vmatmul.bf16.gmra.mxu0 %v3364
        %v3968 = vpop.f32.mrf.mxu0
        %v3969 = vadd.f32 %v3880, %v3968
        %v3970 = vpop.f32.mrf.mxu0
        %v3971 = vadd.f32 %v3882, %v3970
        %3972 = vmatmul.bf16.gmra.mxu0 %v3368
        %v3973 = vpop.f32.mrf.mxu0
        %v3974 = vadd.f32 %v3885, %v3973
        %v3975 = vpop.f32.mrf.mxu0
        %v3976 = vadd.f32 %v3887, %v3975
        %3977 = vmatmul.bf16.gmra.mxu0 %v3372
        %v3978 = vpop.f32.mrf.mxu0
        %v3979 = vadd.f32 %v3890, %v3978
        %v3980 = vpop.f32.mrf.mxu0
        %v3981 = vadd.f32 %v3892, %v3980
        %3982 = vmatmul.bf16.gmra.mxu0 %v3376
        %v3983 = vpop.f32.mrf.mxu0
        %v3984 = vadd.f32 %v3895, %v3983
        %v3985 = vpop.f32.mrf.mxu0
        %v3986 = vadd.f32 %v3897, %v3985
        %3987 = vmatmul.bf16.gmra.mxu0 %v3380
        %v3988 = vpop.f32.mrf.mxu0
        %v3989 = vadd.f32 %v3900, %v3988
        %v3990 = vpop.f32.mrf.mxu0
        %v3991 = vadd.f32 %v3902, %v3990
        %3992 = vmatmul.bf16.gmra.mxu0 %v3384
        %v3993 = vpop.f32.mrf.mxu0
        %v3994 = vadd.f32 %v3905, %v3993
        %v3995 = vpop.f32.mrf.mxu0
        %v3996 = vadd.f32 %v3907, %v3995
        %3997 = vmatmul.bf16.gmra.mxu0 %v3388
        %v3998 = vpop.f32.mrf.mxu0
        %v3999 = vadd.f32 %v3910, %v3998
        %v4000 = vpop.f32.mrf.mxu0
        %v4001 = vadd.f32 %v3912, %v4000
        %4002 = vmatmul.bf16.gmra.mxu0 %v3392
        %v4003 = vpop.f32.mrf.mxu0
        %v4004 = vadd.f32 %v3915, %v4003
        %v4005 = vpop.f32.mrf.mxu0
        %v4006 = vadd.f32 %v3917, %v4005
        %4007 = vmatmul.bf16.gmra.mxu0 %v3396
        %v4008 = vpop.f32.mrf.mxu0
        %v4009 = vadd.f32 %v3920, %v4008
        %v4010 = vpop.f32.mrf.mxu0
        %v4011 = vadd.f32 %v3922, %v4010
        %4012 = vdwg.mxu0
        %vm4013 = vcmask 130048
        %4014 = vst.msk [vmem:[%s297] sm:$0xff] %vm4013, %v3934
        %4015 = vst.msk [vmem:[%s297 + $0x8] sm:$0xff] %vm4013, %v3936
        %4016 = vst.msk [vmem:[%s297 + $0x10] sm:$0xff] %vm4013, %v3939
        %4017 = vst.msk [vmem:[%s297 + $0x18] sm:$0xff] %vm4013, %v3941
        %4018 = vst.msk [vmem:[%s297 + $0x20] sm:$0xff] %vm4013, %v3944
        %4019 = vst.msk [vmem:[%s297 + $0x28] sm:$0xff] %vm4013, %v3946
        %4020 = vst.msk [vmem:[%s297 + $0x30] sm:$0xff] %vm4013, %v3949
        %4021 = vst.msk [vmem:[%s297 + $0x38] sm:$0xff] %vm4013, %v3951
        %4022 = vst.msk [vmem:[%s297 + $0x40] sm:$0xff] %vm4013, %v3954
        %4023 = vst.msk [vmem:[%s297 + $0x48] sm:$0xff] %vm4013, %v3956
        %4024 = vst.msk [vmem:[%s297 + $0x50] sm:$0xff] %vm4013, %v3959
        %4025 = vst.msk [vmem:[%s297 + $0x58] sm:$0xff] %vm4013, %v3961
        %4026 = vst.msk [vmem:[%s297 + $0x60] sm:$0xff] %vm4013, %v3964
        %4027 = vst.msk [vmem:[%s297 + $0x68] sm:$0xff] %vm4013, %v3966
        %4028 = vst.msk [vmem:[%s297 + $0x70] sm:$0xff] %vm4013, %v3969
        %4029 = vst.msk [vmem:[%s297 + $0x78] sm:$0xff] %vm4013, %v3971
        %4030 = vst.msk [vmem:[%s297 + $0x80] sm:$0xff] %vm4013, %v3974
        %4031 = vst.msk [vmem:[%s297 + $0x88] sm:$0xff] %vm4013, %v3976
        %4032 = vst.msk [vmem:[%s297 + $0x90] sm:$0xff] %vm4013, %v3979
        %4033 = vst.msk [vmem:[%s297 + $0x98] sm:$0xff] %vm4013, %v3981
        %4034 = vst.msk [vmem:[%s297 + $0xa0] sm:$0xff] %vm4013, %v3984
        %4035 = vst.msk [vmem:[%s297 + $0xa8] sm:$0xff] %vm4013, %v3986
        %4036 = vst.msk [vmem:[%s297 + $0xb0] sm:$0xff] %vm4013, %v3989
        %4037 = vst.msk [vmem:[%s297 + $0xb8] sm:$0xff] %vm4013, %v3991
        %4038 = vst.msk [vmem:[%s297 + $0xc0] sm:$0xff] %vm4013, %v3994
        %4039 = vst.msk [vmem:[%s297 + $0xc8] sm:$0xff] %vm4013, %v3996
        %4040 = vst.msk [vmem:[%s297 + $0xd0] sm:$0xff] %vm4013, %v3999
        %4041 = vst.msk [vmem:[%s297 + $0xd8] sm:$0xff] %vm4013, %v4001
        %4042 = vst.msk [vmem:[%s297 + $0xe0] sm:$0xff] %vm4013, %v4004
        %4043 = vst.msk [vmem:[%s297 + $0xe8] sm:$0xff] %vm4013, %v4006
        %4044 = vst.msk [vmem:[%s297 + $0xf0] sm:$0xff] %vm4013, %v4009
        %4045 = vst.msk [vmem:[%s297 + $0xf8] sm:$0xff] %vm4013, %v4011
        %s4046 = smul.u32 32, %s19
        %p4047 = scmp.lt.s32.totalorder %s4046, 63
        %s4048 = scalar_select %p4047, %s4046, 63
        %s4049 = smul.addr %s4048, 8
        %s4050 = scalar_lea.vmem %s7, %s4049
        // Predicated region
        $region53: #{mlp_forward.1} parent=47 // pred_check
          %p4051 = pneg %p189
        $region54: #{mlp_forward.1} parent=47 // pred_check_branch
          %4053 = sbr.rel (%p4051) target = $region56
        $region55: #{mlp_forward.1} parent=47 // pred_region
          %s4054 = smul.u32 32, %s19
        $region56: #{mlp_forward.1} parent=47 // pred_fallthru
          _
      $region48: #{mlp_forward.1} parent=5 // pred_fallthru
        _
      %p4055 = scmp.le.s32.totalorder 2, %s14
      // Predicated region
      $region57: #{mlp_forward.1} parent=5 // pred_check
        %p4056 = pneg %p4055
      $region58: #{mlp_forward.1} parent=5 // pred_check_branch
        %4058 = sbr.rel (%p4056) target = $region60
      $region59: #{mlp_forward.1} parent=5 // pred_region
        %s4059 = ssub.s32 %s14, 2
        // Predicated region
        $region61: #{mlp_forward.1} parent=59 // pred_check
          %p4060 = pneg %p195
        $region62: #{mlp_forward.1} parent=59 // pred_check_branch
          %4062 = sbr.rel (%p4060) target = $region64
        $region63: #{mlp_forward.1} parent=59 // pred_region
          %s4063 = smul.u32 32, %s20
          %p4064 = scmp.lt.s32.totalorder %s4063, 63
          %s4065 = scalar_select %p4064, %s4063, 63
          %s4066 = smul.addr %s4065, 8
          %s4067 = scalar_lea.vmem %s7, %s4066
        $region64: #{mlp_forward.1} parent=59 // pred_fallthru
          _
      $region60: #{mlp_forward.1} parent=5 // pred_fallthru
        _
    $region6: #{mlp_forward.1} parent=1 // loop_footer
      %s18 = sadd.s32 1, %s14
    $region7: #{mlp_forward.1} parent=1 // loop_footer_branch
      %13 = sbr.rel target = $region3
    $region8: #{mlp_forward.1} parent=1 // loop_exit
      _
    %4068 = vsyncpa [#allocation3], 1
    %s4069 = scalar_lea.sflag [#allocation3], 1
    %4070 = vsyncpa %s4069, 1

</llo_original>
